<compile_context>
chip_gen: v7x
topology: tpu7x:2x2x1
jax: 0.10.0
libtpu: 0.0.40
codegen_flags: <defaults>
</compile_context>

<pallas_src>
import functools

import jax
import jax.numpy as jnp
import numpy as np
from jax import lax
from jax.experimental import pallas as pl
from jax.experimental.pallas import tpu as pltpu


# ----------------------------------------------------------------------------
# Kernel 1: ConvTranspose2d(kernel=2, stride=2) as a row-tiled matmul.
#
# out[n, 2i+a, 2j+b, o] = sum_c x[n, c, i, j] * w[c, o, a, b] + bias[o]
# For one tile of `th` input rows the kernel does two (th*W, Cin)@(Cin, 2*Cout)
# matmuls (one per output-row parity a) and stores each result, unchanged, into
# an output block whose row-major layout already matches NHWC (N, 2H, 2W, Cout).
# ----------------------------------------------------------------------------
def _deconv_kernel(x_ref, w_ref, b_ref, o_ref, *, th, w_cols):
    # x_ref: (1, Cin, th*W)       w_ref: (2, Cin, 2*Cout)    b_ref: (1, 2*Cout)
    # o_ref: (th, 2, W, 2*Cout)   -- (input row, parity a, j, (b, o))
    two_cout = w_ref.shape[-1]
    xt = x_ref[0].T                                            # (th*W, Cin)
    y0 = jnp.dot(xt, w_ref[0], preferred_element_type=jnp.float32) + b_ref[...]
    y1 = jnp.dot(xt, w_ref[1], preferred_element_type=jnp.float32) + b_ref[...]
    o_ref[:, 0, :, :] = y0.reshape(th, w_cols, two_cout).astype(o_ref.dtype)
    o_ref[:, 1, :, :] = y1.reshape(th, w_cols, two_cout).astype(o_ref.dtype)


def _pick_row_tile(h, w, c_heavy, bytes_budget=2 << 20):
    # Largest divisor of h whose (th*w, c_heavy) f32 tile fits the budget, subject
    # to the lane-tiling rule on the x block (th*w multiple of 128, or th == h).
    cands = [t for t in range(1, h + 1)
             if h % t == 0 and (t == h or (t * w) % 128 == 0)]
    fitting = [t for t in cands if t * w * c_heavy * 4 <= bytes_budget]
    return max(fitting) if fitting else min(cands)


def deconv2x2_stride2(x_nchw, w_ct, b):
    """ConvTranspose2d(k=2, s=2). x (N,Cin,H,W) NCHW; w (Cin,Cout,2,2); b (Cout,).
    Returns NHWC (N, 2H, 2W, Cout) via a free bitcast reshape of the kernel output."""
    N, Cin, H, W = x_nchw.shape
    Cout = w_ct.shape[1]
    # weight for parity a: wu[a, c, b*Cout + o] = w_ct[c, o, a, b]
    wu = jnp.transpose(w_ct, (2, 0, 3, 1)).reshape(2, Cin, 2 * Cout)
    bu = jnp.tile(b, (2,)).reshape(1, 2 * Cout)
    x2 = x_nchw.reshape(N, Cin, H * W)                         # free row-major reshape

    th = _pick_row_tile(H, W, max(Cin, 4 * Cout))
    bpi = H // th                                              # row blocks per image
    grid = (N, bpi)

    flops = 2 * N * H * W * Cin * 4 * Cout
    bytes_accessed = 4 * (x2.size + wu.size + bu.size + N * H * W * 4 * Cout)

    out4 = pl.pallas_call(
        functools.partial(_deconv_kernel, th=th, w_cols=W),
        out_shape=jax.ShapeDtypeStruct((N * H, 2, W, 2 * Cout), jnp.float32),
        grid=grid,
        in_specs=[
            pl.BlockSpec((1, Cin, th * W), lambda n, t: (n, 0, t)),
            pl.BlockSpec((2, Cin, 2 * Cout), lambda n, t: (0, 0, 0)),
            pl.BlockSpec((1, 2 * Cout), lambda n, t: (0, 0)),
        ],
        out_specs=pl.BlockSpec((th, 2, W, 2 * Cout),
                               lambda n, t: (n * bpi + t, 0, 0, 0)),
        compiler_params=pltpu.CompilerParams(
            dimension_semantics=("parallel", "parallel")),
        cost_estimate=pl.CostEstimate(flops=flops, transcendentals=0,
                                      bytes_accessed=bytes_accessed),
    )(x2, wu, bu)

    # (N*H, 2, W, 2*Cout) row-major == (N, 2H, 2W, Cout) NHWC: free reshape.
    return out4.reshape(N, 2 * H, 2 * W, Cout)


# ----------------------------------------------------------------------------
# Kernel 2: fused [concat -> Conv2d(3x3,p=1)+LeakyReLU -> Conv2d(3x3,p=1)+LeakyReLU]
# One batch element per grid step; everything between the two HBM endpoints
# (up / skip in, result out) stays in VMEM.
# ----------------------------------------------------------------------------
def _fused_double_conv_kernel(up_ref, skip_ref, w1_ref, b1_ref, w2_ref, b2_ref,
                              o_ref, pad_cat, pad_h, *, hh, ww, c_up, c_skip, c_out):
    # up_ref:   (1, hh, ww, c_up)           upsampled activation, NHWC
    # skip_ref: (1, c_skip, hh*ww)          skip connection, NCHW (spatially flat)
    # w1_ref:   (9*(c_up+c_skip), c_out)    conv1 weight, im2col layout
    # w2_ref:   (9*c_out, c_out)            conv2 weight, im2col layout
    # b*_ref:   (1, c_out)
    # o_ref:    (1, c_out, hh*ww)           NCHW output (lane-dense store)
    # pad_cat:  VMEM (hh+2, ww+2, c_up+c_skip)   zero-padded concat(up, skip)
    # pad_h:    VMEM (hh+2, ww+2, c_out)         zero-padded conv1 activation
    c_cat = c_up + c_skip

    # ---- fused concat + in-kernel halo padding (no HBM concat / pad tensors) ----
    pad_cat[...] = jnp.zeros_like(pad_cat)
    pad_cat[1:hh + 1, 1:ww + 1, 0:c_up] = up_ref[0]
    skip_t = skip_ref[0].T                                     # (hh*ww, c_skip)
    pad_cat[1:hh + 1, 1:ww + 1, c_up:c_cat] = skip_t.reshape(hh, ww, c_skip)

    # ---- conv1: single im2col matmul, K = 9*c_cat, then LeakyReLU(0.125) ----
    cols1 = jnp.concatenate(
        [pad_cat[dy:dy + hh, dx:dx + ww, :].reshape(hh * ww, c_cat)
         for dy in range(3) for dx in range(3)], axis=1)       # (hh*ww, 9*c_cat)
    a1 = jnp.dot(cols1, w1_ref[...], preferred_element_type=jnp.float32) + b1_ref[...]
    h = jnp.where(a1 >= 0, a1, 0.125 * a1)                     # (hh*ww, c_out)

    # ---- conv2 on the VMEM-resident intermediate ----
    pad_h[...] = jnp.zeros_like(pad_h)
    pad_h[1:hh + 1, 1:ww + 1, :] = h.reshape(hh, ww, c_out)
    cols2 = jnp.concatenate(
        [pad_h[dy:dy + hh, dx:dx + ww, :].reshape(hh * ww, c_out)
         for dy in range(3) for dx in range(3)], axis=1)       # (hh*ww, 9*c_out)
    a2 = jnp.dot(cols2, w2_ref[...], preferred_element_type=jnp.float32) + b2_ref[...]
    out = jnp.where(a2 >= 0, a2, 0.125 * a2)                   # (hh*ww, c_out)

    # ---- lane-dense NCHW store: lane dim is hh*ww, not c_out ----
    o_ref[0] = out.T.astype(o_ref.dtype)


def fused_concat_double_conv(up_nhwc, skip_nchw, w1_oihw, b1, w2_oihw, b2):
    """concat([up, skip], channel) -> conv3x3+LeakyReLU -> conv3x3+LeakyReLU.
    up_nhwc (N,Hh,Ww,Cup); skip_nchw (N,Cskip,Hh,Ww). Returns NCHW (N,Cout,Hh,Ww)."""
    N, Hh, Ww, Cup = up_nhwc.shape
    Cskip = skip_nchw.shape[1]
    Cout = w1_oihw.shape[0]
    Ccat = Cup + Cskip
    assert w1_oihw.shape[1] == Ccat and w2_oihw.shape[1] == Cout

    # im2col weight layout: row index = (dy*3 + dx) * Cin + c
    w1m = jnp.transpose(w1_oihw, (2, 3, 1, 0)).reshape(9 * Ccat, Cout)
    w2m = jnp.transpose(w2_oihw, (2, 3, 1, 0)).reshape(9 * Cout, Cout)
    b1m = b1.reshape(1, Cout)
    b2m = b2.reshape(1, Cout)
    skip2 = skip_nchw.reshape(N, Cskip, Hh * Ww)               # free reshape

    flops = 2 * N * Hh * Ww * 9 * Cout * (Ccat + Cout)
    bytes_accessed = 4 * (up_nhwc.size + skip2.size + w1m.size + w2m.size
                          + N * Cout * Hh * Ww)

    out = pl.pallas_call(
        functools.partial(_fused_double_conv_kernel, hh=Hh, ww=Ww,
                          c_up=Cup, c_skip=Cskip, c_out=Cout),
        out_shape=jax.ShapeDtypeStruct((N, Cout, Hh * Ww), jnp.float32),
        grid=(N,),
        in_specs=[
            pl.BlockSpec((1, Hh, Ww, Cup), lambda n: (n, 0, 0, 0)),
            pl.BlockSpec((1, Cskip, Hh * Ww), lambda n: (n, 0, 0)),
            pl.BlockSpec((9 * Ccat, Cout), lambda n: (0, 0)),
            pl.BlockSpec((1, Cout), lambda n: (0, 0)),
            pl.BlockSpec((9 * Cout, Cout), lambda n: (0, 0)),
            pl.BlockSpec((1, Cout), lambda n: (0, 0)),
        ],
        out_specs=pl.BlockSpec((1, Cout, Hh * Ww), lambda n: (n, 0, 0)),
        scratch_shapes=[
            pltpu.VMEM((Hh + 2, Ww + 2, Ccat), jnp.float32),
            pltpu.VMEM((Hh + 2, Ww + 2, Cout), jnp.float32),
        ],
        compiler_params=pltpu.CompilerParams(dimension_semantics=("parallel",)),
        cost_estimate=pl.CostEstimate(flops=flops, transcendentals=0,
                                      bytes_accessed=bytes_accessed),
    )(up_nhwc, skip2, w1m, b1m, w2m, b2m)

    return out.reshape(N, Cout, Hh, Ww)                        # free reshape, NCHW


# ----------------------------------------------------------------------------
# unetUp_origin forward (is_deconv=True, is_batchnorm=False, n_concat=2)
# ----------------------------------------------------------------------------
@jax.jit
def unet_up_origin_forward(params, inputs0_nchw, skip_nchw):
    """Matches unetUp_origin.forward(inputs0, skip); I/O is NCHW like PyTorch."""
    up = deconv2x2_stride2(inputs0_nchw, params["up_w"], params["up_b"])
    return fused_concat_double_conv(up, skip_nchw,
                                    params["conv1_w"], params["conv1_b"],
                                    params["conv2_w"], params["conv2_b"])


# ----------------------------------------------------------------------------
# Pure-JAX (lax) reference mirroring PyTorch semantics, for verification.
# ----------------------------------------------------------------------------
def _leaky(x):
    return jnp.where(x >= 0, x, 0.125 * x)


def _conv_ref(x_nchw, w_oihw, b):
    y = lax.conv_general_dilated(
        x_nchw, w_oihw, window_strides=(1, 1), padding=[(1, 1), (1, 1)],
        dimension_numbers=("NCHW", "OIHW", "NCHW"))
    return y + b[None, :, None, None]


def unet_up_origin_reference(params, inputs0_nchw, skip_nchw):
    N, _, H, W = inputs0_nchw.shape
    Cout = params["up_w"].shape[1]
    # ConvTranspose2d(k=2, s=2): out[n,o,2i+a,2j+b] = sum_c x[n,c,i,j] w[c,o,a,b] + bias[o]
    up = jnp.einsum("nchw,coab->nohawb", inputs0_nchw, params["up_w"])
    up = up.reshape(N, Cout, 2 * H, 2 * W) + params["up_b"][None, :, None, None]
    cat = jnp.concatenate([up, skip_nchw], axis=1)
    h = _leaky(_conv_ref(cat, params["conv1_w"], params["conv1_b"]))
    h = _leaky(_conv_ref(h, params["conv2_w"], params["conv2_b"]))
    return h


# ----------------------------------------------------------------------------
# main
# ----------------------------------------------------------------------------
if __name__ == "__main__":
    # Module config: unetUp_origin(in_size=8, out_size=4, is_deconv=True, n_concat=2)
    in_size, out_size, n_concat = 8, 4, 2
    N, H, W = 2, 8, 8  # inputs0 spatial; skip input is at 2H x 2W

    key = jax.random.PRNGKey(0)
    k = jax.random.split(key, 8)
    params = {
        # ConvTranspose2d(in_size, out_size, kernel=2, stride=2): weight (in, out, 2, 2)
        "up_w":    0.1 * jax.random.normal(k[0], (in_size, out_size, 2, 2), jnp.float32),
        "up_b":    0.1 * jax.random.normal(k[1], (out_size,), jnp.float32),
        # unetConv2(n_concat*out_size, out_size): two Conv2d(3x3, pad=1)
        "conv1_w": 0.1 * jax.random.normal(k[2], (out_size, n_concat * out_size, 3, 3), jnp.float32),
        "conv1_b": 0.1 * jax.random.normal(k[3], (out_size,), jnp.float32),
        "conv2_w": 0.1 * jax.random.normal(k[4], (out_size, out_size, 3, 3), jnp.float32),
        "conv2_b": 0.1 * jax.random.normal(k[5], (out_size,), jnp.float32),
    }

    inputs0 = jax.random.normal(k[6], (N, in_size, H, W), jnp.float32)         # NCHW
    skip1 = jax.random.normal(k[7], (N, out_size, 2 * H, 2 * W), jnp.float32)  # NCHW

    out = unet_up_origin_forward(params, inputs0, skip1)
    out = jax.block_until_ready(out)

    ref = jax.block_until_ready(unet_up_origin_reference(params, inputs0, skip1))
    assert out.shape == (N, out_size, 2 * H, 2 * W), out.shape
    np.testing.assert_allclose(np.asarray(out), np.asarray(ref), rtol=1e-4, atol=1e-5)

    print("KERNEL_OK")
</pallas_src>

<mosaic_0001>
module attributes {stable_mosaic.version = 11 : i64} {
  func.func @_deconv_kernel(%arg0: i32, %arg1: i32, %arg2: memref<1x8x64xf32, #tpu.memory_space<vmem>>, %arg3: memref<2x8x8xf32, #tpu.memory_space<vmem>>, %arg4: memref<1x8xf32, #tpu.memory_space<vmem>>, %arg5: memref<8x2x8x8xf32, #tpu.memory_space<vmem>>) attributes {dimension_semantics = [#tpu.dimension_semantics<parallel>, #tpu.dimension_semantics<parallel>], iteration_bounds = array<i64: 2, 1>, scalar_prefetch = 0 : i64, scratch_operands = 0 : i64, tpu.core_type = #tpu.core_type<tc>, window_params = [{transform_indices = @transform_0, window_bounds = array<i64: 1, 8, 64>}, {pipeline_mode = #tpu.pipeline_mode<synchronous>, transform_indices = @transform_1, window_bounds = array<i64: 2, 8, 8>}, {pipeline_mode = #tpu.pipeline_mode<synchronous>, transform_indices = @transform_2, window_bounds = array<i64: 1, 8>}, {transform_indices = @transform_3, window_bounds = array<i64: 8, 2, 8, 8>}]} {
    %c0 = arith.constant 0 : index
    %c0_0 = arith.constant 0 : index
    %c0_1 = arith.constant 0 : index
    %0 = vector.load %arg2[%c0, %c0_0, %c0_1] : memref<1x8x64xf32, #tpu.memory_space<vmem>>, vector<1x8x64xf32>
    %1 = vector.shape_cast %0 : vector<1x8x64xf32> to vector<8x64xf32>
    %2 = tpu.transpose %1, [1, 0] : vector<8x64xf32> -> vector<64x8xf32>
    %c0_2 = arith.constant 0 : index
    %c0_3 = arith.constant 0 : index
    %c0_4 = arith.constant 0 : index
    %3 = vector.load %arg3[%c0_2, %c0_3, %c0_4] : memref<2x8x8xf32, #tpu.memory_space<vmem>>, vector<1x8x8xf32>
    %4 = vector.shape_cast %3 : vector<1x8x8xf32> to vector<8x8xf32>
    %cst = arith.constant dense<0.000000e+00> : vector<64x8xf32>
    %5 = tpu.matmul %2, %4, %cst {dimension_numbers = #tpu.dot_dimension_numbers<[1], [0], [0], [1], [0, 0, 1, 1], [], []>} : vector<64x8xf32>, vector<8x8xf32>, vector<64x8xf32> -> vector<64x8xf32>
    %c0_5 = arith.constant 0 : index
    %c0_6 = arith.constant 0 : index
    %6 = vector.load %arg4[%c0_5, %c0_6] : memref<1x8xf32, #tpu.memory_space<vmem>>, vector<1x8xf32>
    %7 = vector.broadcast %6 : vector<1x8xf32> to vector<64x8xf32>
    %8 = arith.addf %5, %7 : vector<64x8xf32>
    %c1 = arith.constant 1 : index
    %c0_7 = arith.constant 0 : index
    %c0_8 = arith.constant 0 : index
    %9 = vector.load %arg3[%c1, %c0_7, %c0_8] : memref<2x8x8xf32, #tpu.memory_space<vmem>>, vector<1x8x8xf32>
    %10 = vector.shape_cast %9 : vector<1x8x8xf32> to vector<8x8xf32>
    %cst_9 = arith.constant dense<0.000000e+00> : vector<64x8xf32>
    %11 = tpu.matmul %2, %10, %cst_9 {dimension_numbers = #tpu.dot_dimension_numbers<[1], [0], [0], [1], [0, 0, 1, 1], [], []>} : vector<64x8xf32>, vector<8x8xf32>, vector<64x8xf32> -> vector<64x8xf32>
    %c0_10 = arith.constant 0 : index
    %c0_11 = arith.constant 0 : index
    %12 = vector.load %arg4[%c0_10, %c0_11] : memref<1x8xf32, #tpu.memory_space<vmem>>, vector<1x8xf32>
    %13 = vector.broadcast %12 : vector<1x8xf32> to vector<64x8xf32>
    %14 = arith.addf %11, %13 : vector<64x8xf32>
    %15 = vector.shape_cast %8 : vector<64x8xf32> to vector<8x8x8xf32>
    %c0_12 = arith.constant 0 : index
    %c0_13 = arith.constant 0 : index
    %c0_14 = arith.constant 0 : index
    %c0_15 = arith.constant 0 : index
    %16 = vector.load %arg5[%c0_12, %c0_13, %c0_14, %c0_15] : memref<8x2x8x8xf32, #tpu.memory_space<vmem>>, vector<8x1x8x8xf32>
    %17 = vector.shape_cast %16 : vector<8x1x8x8xf32> to vector<8x8x8xf32>
    %18 = vector.shape_cast %15 : vector<8x8x8xf32> to vector<8x1x8x8xf32>
    tpu.vector_store %arg5[%c0_12, %c0_13, %c0_14, %c0_15], %18 {strides = array<i32>} : memref<8x2x8x8xf32, #tpu.memory_space<vmem>>, vector<8x1x8x8xf32>,
    %19 = vector.shape_cast %14 : vector<64x8xf32> to vector<8x8x8xf32>
    %c0_16 = arith.constant 0 : index
    %c1_17 = arith.constant 1 : index
    %c0_18 = arith.constant 0 : index
    %c0_19 = arith.constant 0 : index
    %20 = vector.load %arg5[%c0_16, %c1_17, %c0_18, %c0_19] : memref<8x2x8x8xf32, #tpu.memory_space<vmem>>, vector<8x1x8x8xf32>
    %21 = vector.shape_cast %20 : vector<8x1x8x8xf32> to vector<8x8x8xf32>
    %22 = vector.shape_cast %19 : vector<8x8x8xf32> to vector<8x1x8x8xf32>
    tpu.vector_store %arg5[%c0_16, %c1_17, %c0_18, %c0_19], %22 {strides = array<i32>} : memref<8x2x8x8xf32, #tpu.memory_space<vmem>>, vector<8x1x8x8xf32>,
    return
  }
  func.func @transform_0(%arg0: i32, %arg1: i32) -> (i32, i32, i32) {
    %c0_i32 = arith.constant 0 : i32
    %c0_i32_0 = arith.constant 0 : i32
    return %arg0, %c0_i32, %arg1 : i32, i32, i32
  }
  func.func @transform_1(%arg0: i32, %arg1: i32) -> (i32, i32, i32) {
    %c0_i32 = arith.constant 0 : i32
    %c0_i32_0 = arith.constant 0 : i32
    %c0_i32_1 = arith.constant 0 : i32
    %c0_i32_2 = arith.constant 0 : i32
    return %c0_i32, %c0_i32_0, %c0_i32_1 : i32, i32, i32
  }
  func.func @transform_2(%arg0: i32, %arg1: i32) -> (i32, i32) {
    %c0_i32 = arith.constant 0 : i32
    %c0_i32_0 = arith.constant 0 : i32
    %c0_i32_1 = arith.constant 0 : i32
    return %c0_i32, %c0_i32_0 : i32, i32
  }
  func.func @transform_3(%arg0: i32, %arg1: i32) -> (i32, i32, i32, i32) {
    %c1_i32 = arith.constant 1 : i32
    %0 = arith.muli %arg0, %c1_i32 : i32
    %1 = arith.addi %0, %arg1 : i32
    %c0_i32 = arith.constant 0 : i32
    %c0_i32_0 = arith.constant 0 : i32
    %c0_i32_1 = arith.constant 0 : i32
    %c0_i32_2 = arith.constant 0 : i32
    return %1, %c0_i32, %c0_i32_0, %c0_i32_1 : i32, i32, i32, i32
  }
}

module attributes {stable_mosaic.version = 11 : i64} {
  func.func @_fused_double_conv_kernel(%arg0: i32, %arg1: memref<1x16x16x4xf32, #tpu.memory_space<vmem>>, %arg2: memref<1x4x256xf32, #tpu.memory_space<vmem>>, %arg3: memref<72x4xf32, #tpu.memory_space<vmem>>, %arg4: memref<1x4xf32, #tpu.memory_space<vmem>>, %arg5: memref<36x4xf32, #tpu.memory_space<vmem>>, %arg6: memref<1x4xf32, #tpu.memory_space<vmem>>, %arg7: memref<1x4x256xf32, #tpu.memory_space<vmem>>, %arg8: memref<18x18x8xf32, #tpu.memory_space<vmem>>, %arg9: memref<18x18x4xf32, #tpu.memory_space<vmem>>) attributes {dimension_semantics = [#tpu.dimension_semantics<parallel>], iteration_bounds = array<i64: 2>, scalar_prefetch = 0 : i64, scratch_operands = 2 : i64, tpu.core_type = #tpu.core_type<tc>, window_params = [{transform_indices = @transform_0, window_bounds = array<i64: 1, 16, 16, 4>}, {transform_indices = @transform_1, window_bounds = array<i64: 1, 4, 256>}, {pipeline_mode = #tpu.pipeline_mode<synchronous>, transform_indices = @transform_2, window_bounds = array<i64: 72, 4>}, {pipeline_mode = #tpu.pipeline_mode<synchronous>, transform_indices = @transform_3, window_bounds = array<i64: 1, 4>}, {pipeline_mode = #tpu.pipeline_mode<synchronous>, transform_indices = @transform_4, window_bounds = array<i64: 36, 4>}, {pipeline_mode = #tpu.pipeline_mode<synchronous>, transform_indices = @transform_5, window_bounds = array<i64: 1, 4>}, {transform_indices = @transform_6, window_bounds = array<i64: 1, 4, 256>}]} {
    %cst = arith.constant 0.000000e+00 : f32
    %0 = vector.broadcast %cst : f32 to vector<18x18x8xf32>
    %c0 = arith.constant 0 : index
    %c0_0 = arith.constant 0 : index
    %c0_1 = arith.constant 0 : index
    %1 = vector.load %arg8[%c0, %c0_0, %c0_1] : memref<18x18x8xf32, #tpu.memory_space<vmem>>, vector<18x18x8xf32>
    tpu.vector_store %arg8[%c0, %c0_0, %c0_1], %0 {strides = array<i32>} : memref<18x18x8xf32, #tpu.memory_space<vmem>>, vector<18x18x8xf32>,
    %c0_2 = arith.constant 0 : index
    %c0_3 = arith.constant 0 : index
    %c0_4 = arith.constant 0 : index
    %c0_5 = arith.constant 0 : index
    %2 = vector.load %arg1[%c0_2, %c0_3, %c0_4, %c0_5] : memref<1x16x16x4xf32, #tpu.memory_space<vmem>>, vector<1x16x16x4xf32>
    %3 = vector.shape_cast %2 : vector<1x16x16x4xf32> to vector<16x16x4xf32>
    %c1 = arith.constant 1 : index
    %c1_6 = arith.constant 1 : index
    %c0_7 = arith.constant 0 : index
    %4 = vector.load %arg8[%c1, %c1_6, %c0_7] : memref<18x18x8xf32, #tpu.memory_space<vmem>>, vector<16x16x4xf32>
    tpu.vector_store %arg8[%c1, %c1_6, %c0_7], %3 {strides = array<i32>} : memref<18x18x8xf32, #tpu.memory_space<vmem>>, vector<16x16x4xf32>,
    %c0_8 = arith.constant 0 : index
    %c0_9 = arith.constant 0 : index
    %c0_10 = arith.constant 0 : index
    %5 = vector.load %arg2[%c0_8, %c0_9, %c0_10] : memref<1x4x256xf32, #tpu.memory_space<vmem>>, vector<1x4x256xf32>
    %6 = vector.shape_cast %5 : vector<1x4x256xf32> to vector<4x256xf32>
    %7 = tpu.transpose %6, [1, 0] : vector<4x256xf32> -> vector<256x4xf32>
    %8 = vector.shape_cast %7 : vector<256x4xf32> to vector<16x16x4xf32>
    %c1_11 = arith.constant 1 : index
    %c1_12 = arith.constant 1 : index
    %c4 = arith.constant 4 : index
    %9 = vector.load %arg8[%c1_11, %c1_12, %c4] : memref<18x18x8xf32, #tpu.memory_space<vmem>>, vector<16x16x4xf32>
    tpu.vector_store %arg8[%c1_11, %c1_12, %c4], %8 {strides = array<i32>} : memref<18x18x8xf32, #tpu.memory_space<vmem>>, vector<16x16x4xf32>,
    %c0_13 = arith.constant 0 : index
    %c0_14 = arith.constant 0 : index
    %c0_15 = arith.constant 0 : index
    %10 = vector.load %arg8[%c0_13, %c0_14, %c0_15] : memref<18x18x8xf32, #tpu.memory_space<vmem>>, vector<16x16x8xf32>
    %11 = vector.shape_cast %10 : vector<16x16x8xf32> to vector<256x8xf32>
    %c0_16 = arith.constant 0 : index
    %c1_17 = arith.constant 1 : index
    %c0_18 = arith.constant 0 : index
    %12 = vector.load %arg8[%c0_16, %c1_17, %c0_18] : memref<18x18x8xf32, #tpu.memory_space<vmem>>, vector<16x16x8xf32>
    %13 = vector.shape_cast %12 : vector<16x16x8xf32> to vector<256x8xf32>
    %c0_19 = arith.constant 0 : index
    %c2 = arith.constant 2 : index
    %c0_20 = arith.constant 0 : index
    %14 = vector.load %arg8[%c0_19, %c2, %c0_20] : memref<18x18x8xf32, #tpu.memory_space<vmem>>, vector<16x16x8xf32>
    %15 = vector.shape_cast %14 : vector<16x16x8xf32> to vector<256x8xf32>
    %c1_21 = arith.constant 1 : index
    %c0_22 = arith.constant 0 : index
    %c0_23 = arith.constant 0 : index
    %16 = vector.load %arg8[%c1_21, %c0_22, %c0_23] : memref<18x18x8xf32, #tpu.memory_space<vmem>>, vector<16x16x8xf32>
    %17 = vector.shape_cast %16 : vector<16x16x8xf32> to vector<256x8xf32>
    %c1_24 = arith.constant 1 : index
    %c1_25 = arith.constant 1 : index
    %c0_26 = arith.constant 0 : index
    %18 = vector.load %arg8[%c1_24, %c1_25, %c0_26] : memref<18x18x8xf32, #tpu.memory_space<vmem>>, vector<16x16x8xf32>
    %19 = vector.shape_cast %18 : vector<16x16x8xf32> to vector<256x8xf32>
    %c1_27 = arith.constant 1 : index
    %c2_28 = arith.constant 2 : index
    %c0_29 = arith.constant 0 : index
    %20 = vector.load %arg8[%c1_27, %c2_28, %c0_29] : memref<18x18x8xf32, #tpu.memory_space<vmem>>, vector<16x16x8xf32>
    %21 = vector.shape_cast %20 : vector<16x16x8xf32> to vector<256x8xf32>
    %c2_30 = arith.constant 2 : index
    %c0_31 = arith.constant 0 : index
    %c0_32 = arith.constant 0 : index
    %22 = vector.load %arg8[%c2_30, %c0_31, %c0_32] : memref<18x18x8xf32, #tpu.memory_space<vmem>>, vector<16x16x8xf32>
    %23 = vector.shape_cast %22 : vector<16x16x8xf32> to vector<256x8xf32>
    %c2_33 = arith.constant 2 : index
    %c1_34 = arith.constant 1 : index
    %c0_35 = arith.constant 0 : index
    %24 = vector.load %arg8[%c2_33, %c1_34, %c0_35] : memref<18x18x8xf32, #tpu.memory_space<vmem>>, vector<16x16x8xf32>
    %25 = vector.shape_cast %24 : vector<16x16x8xf32> to vector<256x8xf32>
    %c2_36 = arith.constant 2 : index
    %c2_37 = arith.constant 2 : index
    %c0_38 = arith.constant 0 : index
    %26 = vector.load %arg8[%c2_36, %c2_37, %c0_38] : memref<18x18x8xf32, #tpu.memory_space<vmem>>, vector<16x16x8xf32>
    %27 = vector.shape_cast %26 : vector<16x16x8xf32> to vector<256x8xf32>
    %28 = tpu.concatenate %11, %13, %15, %17, %19, %21, %23, %25, %27 in 1 : vector<256x8xf32>, vector<256x8xf32>, vector<256x8xf32>, vector<256x8xf32>, vector<256x8xf32>, vector<256x8xf32>, vector<256x8xf32>, vector<256x8xf32>, vector<256x8xf32> -> vector<256x72xf32>
    %c0_39 = arith.constant 0 : index
    %c0_40 = arith.constant 0 : index
    %29 = vector.load %arg3[%c0_39, %c0_40] : memref<72x4xf32, #tpu.memory_space<vmem>>, vector<72x4xf32>
    %cst_41 = arith.constant dense<0.000000e+00> : vector<256x4xf32>
    %30 = tpu.matmul %28, %29, %cst_41 {dimension_numbers = #tpu.dot_dimension_numbers<[1], [0], [0], [1], [0, 0, 1, 1], [], []>} : vector<256x72xf32>, vector<72x4xf32>, vector<256x4xf32> -> vector<256x4xf32>
    %c0_42 = arith.constant 0 : index
    %c0_43 = arith.constant 0 : index
    %31 = vector.load %arg4[%c0_42, %c0_43] : memref<1x4xf32, #tpu.memory_space<vmem>>, vector<1x4xf32>
    %32 = vector.broadcast %31 : vector<1x4xf32> to vector<256x4xf32>
    %33 = arith.addf %30, %32 : vector<256x4xf32>
    %cst_44 = arith.constant 0.000000e+00 : f32
    %34 = vector.broadcast %cst_44 : f32 to vector<256x4xf32>
    %35 = arith.cmpf oge, %33, %34 : vector<256x4xf32>
    %cst_45 = arith.constant 1.250000e-01 : f32
    %36 = vector.broadcast %cst_45 : f32 to vector<256x4xf32>
    %37 = arith.mulf %36, %33 : vector<256x4xf32>
    %38 = arith.select %35, %33, %37 : vector<256x4xi1>, vector<256x4xf32>
    %cst_46 = arith.constant 0.000000e+00 : f32
    %39 = vector.broadcast %cst_46 : f32 to vector<18x18x4xf32>
    %c0_47 = arith.constant 0 : index
    %c0_48 = arith.constant 0 : index
    %c0_49 = arith.constant 0 : index
    %40 = vector.load %arg9[%c0_47, %c0_48, %c0_49] : memref<18x18x4xf32, #tpu.memory_space<vmem>>, vector<18x18x4xf32>
    tpu.vector_store %arg9[%c0_47, %c0_48, %c0_49], %39 {strides = array<i32>} : memref<18x18x4xf32, #tpu.memory_space<vmem>>, vector<18x18x4xf32>,
    %41 = vector.shape_cast %38 : vector<256x4xf32> to vector<16x16x4xf32>
    %c1_50 = arith.constant 1 : index
    %c1_51 = arith.constant 1 : index
    %c0_52 = arith.constant 0 : index
    %42 = vector.load %arg9[%c1_50, %c1_51, %c0_52] : memref<18x18x4xf32, #tpu.memory_space<vmem>>, vector<16x16x4xf32>
    tpu.vector_store %arg9[%c1_50, %c1_51, %c0_52], %41 {strides = array<i32>} : memref<18x18x4xf32, #tpu.memory_space<vmem>>, vector<16x16x4xf32>,
    %c0_53 = arith.constant 0 : index
    %c0_54 = arith.constant 0 : index
    %c0_55 = arith.constant 0 : index
    %43 = vector.load %arg9[%c0_53, %c0_54, %c0_55] : memref<18x18x4xf32, #tpu.memory_space<vmem>>, vector<16x16x4xf32>
    %44 = vector.shape_cast %43 : vector<16x16x4xf32> to vector<256x4xf32>
    %c0_56 = arith.constant 0 : index
    %c1_57 = arith.constant 1 : index
    %c0_58 = arith.constant 0 : index
    %45 = vector.load %arg9[%c0_56, %c1_57, %c0_58] : memref<18x18x4xf32, #tpu.memory_space<vmem>>, vector<16x16x4xf32>
    %46 = vector.shape_cast %45 : vector<16x16x4xf32> to vector<256x4xf32>
    %c0_59 = arith.constant 0 : index
    %c2_60 = arith.constant 2 : index
    %c0_61 = arith.constant 0 : index
    %47 = vector.load %arg9[%c0_59, %c2_60, %c0_61] : memref<18x18x4xf32, #tpu.memory_space<vmem>>, vector<16x16x4xf32>
    %48 = vector.shape_cast %47 : vector<16x16x4xf32> to vector<256x4xf32>
    %c1_62 = arith.constant 1 : index
    %c0_63 = arith.constant 0 : index
    %c0_64 = arith.constant 0 : index
    %49 = vector.load %arg9[%c1_62, %c0_63, %c0_64] : memref<18x18x4xf32, #tpu.memory_space<vmem>>, vector<16x16x4xf32>
    %50 = vector.shape_cast %49 : vector<16x16x4xf32> to vector<256x4xf32>
    %c1_65 = arith.constant 1 : index
    %c1_66 = arith.constant 1 : index
    %c0_67 = arith.constant 0 : index
    %51 = vector.load %arg9[%c1_65, %c1_66, %c0_67] : memref<18x18x4xf32, #tpu.memory_space<vmem>>, vector<16x16x4xf32>
    %52 = vector.shape_cast %51 : vector<16x16x4xf32> to vector<256x4xf32>
    %c1_68 = arith.constant 1 : index
    %c2_69 = arith.constant 2 : index
    %c0_70 = arith.constant 0 : index
    %53 = vector.load %arg9[%c1_68, %c2_69, %c0_70] : memref<18x18x4xf32, #tpu.memory_space<vmem>>, vector<16x16x4xf32>
    %54 = vector.shape_cast %53 : vector<16x16x4xf32> to vector<256x4xf32>
    %c2_71 = arith.constant 2 : index
    %c0_72 = arith.constant 0 : index
    %c0_73 = arith.constant 0 : index
    %55 = vector.load %arg9[%c2_71, %c0_72, %c0_73] : memref<18x18x4xf32, #tpu.memory_space<vmem>>, vector<16x16x4xf32>
    %56 = vector.shape_cast %55 : vector<16x16x4xf32> to vector<256x4xf32>
    %c2_74 = arith.constant 2 : index
    %c1_75 = arith.constant 1 : index
    %c0_76 = arith.constant 0 : index
    %57 = vector.load %arg9[%c2_74, %c1_75, %c0_76] : memref<18x18x4xf32, #tpu.memory_space<vmem>>, vector<16x16x4xf32>
    %58 = vector.shape_cast %57 : vector<16x16x4xf32> to vector<256x4xf32>
    %c2_77 = arith.constant 2 : index
    %c2_78 = arith.constant 2 : index
    %c0_79 = arith.constant 0 : index
    %59 = vector.load %arg9[%c2_77, %c2_78, %c0_79] : memref<18x18x4xf32, #tpu.memory_space<vmem>>, vector<16x16x4xf32>
    %60 = vector.shape_cast %59 : vector<16x16x4xf32> to vector<256x4xf32>
    %61 = tpu.concatenate %44, %46, %48, %50, %52, %54, %56, %58, %60 in 1 : vector<256x4xf32>, vector<256x4xf32>, vector<256x4xf32>, vector<256x4xf32>, vector<256x4xf32>, vector<256x4xf32>, vector<256x4xf32>, vector<256x4xf32>, vector<256x4xf32> -> vector<256x36xf32>
    %c0_80 = arith.constant 0 : index
    %c0_81 = arith.constant 0 : index
    %62 = vector.load %arg5[%c0_80, %c0_81] : memref<36x4xf32, #tpu.memory_space<vmem>>, vector<36x4xf32>
    %cst_82 = arith.constant dense<0.000000e+00> : vector<256x4xf32>
    %63 = tpu.matmul %61, %62, %cst_82 {dimension_numbers = #tpu.dot_dimension_numbers<[1], [0], [0], [1], [0, 0, 1, 1], [], []>} : vector<256x36xf32>, vector<36x4xf32>, vector<256x4xf32> -> vector<256x4xf32>
    %c0_83 = arith.constant 0 : index
    %c0_84 = arith.constant 0 : index
    %64 = vector.load %arg6[%c0_83, %c0_84] : memref<1x4xf32, #tpu.memory_space<vmem>>, vector<1x4xf32>
    %65 = vector.broadcast %64 : vector<1x4xf32> to vector<256x4xf32>
    %66 = arith.addf %63, %65 : vector<256x4xf32>
    %cst_85 = arith.constant 0.000000e+00 : f32
    %67 = vector.broadcast %cst_85 : f32 to vector<256x4xf32>
    %68 = arith.cmpf oge, %66, %67 : vector<256x4xf32>
    %cst_86 = arith.constant 1.250000e-01 : f32
    %69 = vector.broadcast %cst_86 : f32 to vector<256x4xf32>
    %70 = arith.mulf %69, %66 : vector<256x4xf32>
    %71 = arith.select %68, %66, %70 : vector<256x4xi1>, vector<256x4xf32>
    %72 = tpu.transpose %71, [1, 0] : vector<256x4xf32> -> vector<4x256xf32>
    %c0_87 = arith.constant 0 : index
    %c0_88 = arith.constant 0 : index
    %c0_89 = arith.constant 0 : index
    %73 = vector.load %arg7[%c0_87, %c0_88, %c0_89] : memref<1x4x256xf32, #tpu.memory_space<vmem>>, vector<1x4x256xf32>
    %74 = vector.shape_cast %73 : vector<1x4x256xf32> to vector<4x256xf32>
    %75 = vector.shape_cast %72 : vector<4x256xf32> to vector<1x4x256xf32>
    tpu.vector_store %arg7[%c0_87, %c0_88, %c0_89], %75 {strides = array<i32>} : memref<1x4x256xf32, #tpu.memory_space<vmem>>, vector<1x4x256xf32>,
    return
  }
  func.func @transform_0(%arg0: i32) -> (i32, i32, i32, i32) {
    %c0_i32 = arith.constant 0 : i32
    %c0_i32_0 = arith.constant 0 : i32
    %c0_i32_1 = arith.constant 0 : i32
    %c0_i32_2 = arith.constant 0 : i32
    return %arg0, %c0_i32, %c0_i32_0, %c0_i32_1 : i32, i32, i32, i32
  }
  func.func @transform_1(%arg0: i32) -> (i32, i32, i32) {
    %c0_i32 = arith.constant 0 : i32
    %c0_i32_0 = arith.constant 0 : i32
    %c0_i32_1 = arith.constant 0 : i32
    return %arg0, %c0_i32, %c0_i32_0 : i32, i32, i32
  }
  func.func @transform_2(%arg0: i32) -> (i32, i32) {
    %c0_i32 = arith.constant 0 : i32
    %c0_i32_0 = arith.constant 0 : i32
    %c0_i32_1 = arith.constant 0 : i32
    return %c0_i32, %c0_i32_0 : i32, i32
  }
  func.func @transform_3(%arg0: i32) -> (i32, i32) {
    %c0_i32 = arith.constant 0 : i32
    %c0_i32_0 = arith.constant 0 : i32
    %c0_i32_1 = arith.constant 0 : i32
    return %c0_i32, %c0_i32_0 : i32, i32
  }
  func.func @transform_4(%arg0: i32) -> (i32, i32) {
    %c0_i32 = arith.constant 0 : i32
    %c0_i32_0 = arith.constant 0 : i32
    %c0_i32_1 = arith.constant 0 : i32
    return %c0_i32, %c0_i32_0 : i32, i32
  }
  func.func @transform_5(%arg0: i32) -> (i32, i32) {
    %c0_i32 = arith.constant 0 : i32
    %c0_i32_0 = arith.constant 0 : i32
    %c0_i32_1 = arith.constant 0 : i32
    return %c0_i32, %c0_i32_0 : i32, i32
  }
  func.func @transform_6(%arg0: i32) -> (i32, i32, i32) {
    %c0_i32 = arith.constant 0 : i32
    %c0_i32_0 = arith.constant 0 : i32
    %c0_i32_1 = arith.constant 0 : i32
    return %arg0, %c0_i32, %c0_i32_0 : i32, i32, i32
  }
}

</mosaic_0001>

<llo_original>
// kernel: tile.8
$region0: #{tile.8}
  #allocation0 [shape = 's32[1]{0}', space=sflag, size = 0x4, scoped, tag = 'scoped memory for tile.8']
  %s0 = inlined_call_operand.vmem [shape: f32[4], index: 0, kind: input, shape index: {}]
  %s1 = inlined_call_operand.vmem [shape: f32[2,4], index: 1, kind: output, shape index: {}]
  // Predicated region
  $region2: #{tile.8} parent=0 // pred_check
    _
  $region3: #{tile.8} parent=0 // pred_check_branch
    %3 = sbr.rel (0) target = $region5
  $region4: #{tile.8} parent=0 // pred_region
    _
  $region5: #{tile.8} parent=0 // pred_fallthru
    _
  %v4 = vld [vmem:[%s0] ss:$0 sm:$0xff]
  %5 = vst [vmem:[%s1] sm:$0x3] %v4

// kernel: tile.9
$region0: #{tile.9}
  %s0 = inlined_call_operand.vmem [shape: f32[2,4], index: 0, kind: input, shape index: {}]
  %s1 = inlined_call_operand.vmem [shape: f32[1,8], index: 1, kind: output, shape index: {}]
  $region1: #{tile.9} parent=0
    #allocation0 [shape = 'u8[4096]{0}', space=vmem, size = 0x1000, scoped, tag = 'scoped mem for output reshape']
    #allocation1 [shape = 'u8[4096]{0}', space=vmem, size = 0x1000, scoped, tag = 'scoped mem for input reshape']
    %s3 = sshllo.u32 0, 2
    %v4 = vld [vmem:[%s0] sm:%s3]
    %5 = vst [vmem:[#allocation1] sm:%s3] %v4
    %v6 = vld [vmem:[#allocation1] sm:$0x1]
    %vm7 = vcmask 31744
    %8 = vst.msk [vmem:[#allocation0] sm:$0x1] %vm7, %v6
    %s9 = scalar_lea.vmem [#allocation1], 1
    %v10 = vld [vmem:[%s9] sm:$0x1]
    %11 = vrot.lane.b32.xlu0 %v10, 4
    %v12 = vpop.permute.xlu0 %11
    %vm13 = vcmask 64544
    %14 = vst.msk [vmem:[#allocation0] sm:$0x1] %vm13, %v12
    %s16 = sshllo.u32 0, 1
    %v18 = vld [vmem:[#allocation0] sm:%s16]
    %s19 = sshllo.u32 0, 1
    %20 = vst [vmem:[%s1] sm:%s19] %v18

// kernel: unet_up_origin_forward.2
$region0: #{unet_up_origin_forward.2}
  #allocation0 [shape = 'u32[]', space=smem, size = 0x4, offset = 0x4, fixed_abs, tag = 'smem constant byte address 0x4 - core index']
  #allocation1 [shape = 'u32[144,128]{1,0:T(1,128)}', space=vmem, size = 0x12000, scoped, tag = 'internal scratch']
  %s0 = inlined_call_operand.vmem [shape: f32[2,8,64], index: 0, kind: input, shape index: {}]
  %s1 = inlined_call_operand.vmem [shape: f32[2,8,8], index: 1, kind: input, shape index: {}]
  %s2 = inlined_call_operand.vmem [shape: f32[1,8], index: 2, kind: input, shape index: {}]
  %s3 = inlined_call_operand.vmem [shape: f32[16,2,8,8], index: 3, kind: output, shape index: {}]
  %s4 = sld [smem:[#allocation0]]
  $region45: #{unet_up_origin_forward.2} parent=0
    _
  %s6 = ssub.s32 1, %s4
  %s7 = scalar_select 0, %s6, %s4
  loop: start=0, step=1, limit=4
  $region2: #{unet_up_origin_forward.2} parent=0 // loop_pre_header
    _
  $region3: #{unet_up_origin_forward.2} parent=0 // loop_header
    %s9 = sphi 0, %s13
    %p10 = scmp.ge.s32.totalorder %s9, 4
    %s16 = sphi 0, %s28
    %s17 = sphi 0, %s24
    %s18 = sphi 0, %s16
    %s19 = sphi 0, %s17
    %s20 = sphi 0, %s18
    %s21 = sphi 0, %s19
    %s33 = sphi 0, %s35
    %s36 = sphi 0, %s33
    %s37 = sphi 0, %s36
    %s53 = sphi 0, %s37
    %s57 = sphi 0, %s57
    %s59 = sphi 0, %s57
    %s60 = sphi 0, %s59
    %s74 = sphi 0, %s60
    %s78 = sphi 0, %s78
    %s80 = sphi 0, %s78
    %s81 = sphi 0, %s80
    %s95 = sphi 0, %s81
    %s103 = sphi 0, %s105
    %s106 = sphi 0, %s103
    %s107 = sphi 0, %s106
    %s123 = sphi 0, %s107
  $region4: #{unet_up_origin_forward.2} parent=0 // loop_header_branch
    %12 = sbr.rel (%p10) target = $region8
  $region5: #{unet_up_origin_forward.2} parent=0 // loop_body
    %s14 = ssub.s32 %s9, 1
    %s15 = ssub.s32 %s9, 2
    %s22 = sadd.s32 1, %s17
    %p23 = scmp.ge.s32.totalorder %s22, 1
    %s24 = scalar_select %p23, 0, %s22
    %s25 = sadd.s32 1, %s16
    %s26 = scalar_select %p23, %s25, %s16
    %p27 = scmp.ge.s32.totalorder %s26, 2
    %s28 = scalar_select %p27, 0, %s26
    %s29 = ssub.s32 %s16, %s28
    %s30 = ssub.s32 %s17, %s24
    %s31 = sor.u32 %s29, %s30
    %p32 = scmp.eq.s32.totalorder %s31, 0
    %s34 = sadd.s32 %s33, 1
    %s35 = scalar_select %p32, %s33, %s34
    %p38 = pneg %p32
    %p39 = scmp.eq.s32.totalorder %s9, 1
    %p40 = por %p38, %p39
    %p41 = scmp.ne.s32.totalorder %s33, %s36
    %p42 = scmp.eq.s32.totalorder %s9, 0
    %p43 = por %p41, %p42
    %p44 = scmp.ne.s32.totalorder %s33, %s36
    %p45 = scmp.eq.s32.totalorder %s14, 1
    %p46 = por %p44, %p45
    %p47 = scmp.ne.s32.totalorder %s36, %s37
    %p48 = scmp.eq.s32.totalorder %s14, 0
    %p49 = por %p47, %p48
    %p50 = scmp.ne.s32.totalorder %s36, %s37
    %p51 = scmp.eq.s32.totalorder %s15, 1
    %p52 = por %p50, %p51
    %p54 = scmp.ne.s32.totalorder %s37, %s53
    %p55 = scmp.eq.s32.totalorder %s15, 0
    %p56 = por %p54, %p55
    %s58 = sadd.s32 %s57, 1
    %p61 = scmp.eq.s32.totalorder %s9, 1
    %p62 = scmp.ne.s32.totalorder %s57, %s59
    %p63 = scmp.eq.s32.totalorder %s9, 0
    %p64 = por %p62, %p63
    %p65 = scmp.ne.s32.totalorder %s57, %s59
    %p66 = scmp.eq.s32.totalorder %s14, 1
    %p67 = por %p65, %p66
    %p68 = scmp.ne.s32.totalorder %s59, %s60
    %p69 = scmp.eq.s32.totalorder %s14, 0
    %p70 = por %p68, %p69
    %p71 = scmp.ne.s32.totalorder %s59, %s60
    %p72 = scmp.eq.s32.totalorder %s15, 1
    %p73 = por %p71, %p72
    %p75 = scmp.ne.s32.totalorder %s60, %s74
    %p76 = scmp.eq.s32.totalorder %s15, 0
    %p77 = por %p75, %p76
    %s79 = sadd.s32 %s78, 1
    %p82 = scmp.eq.s32.totalorder %s9, 1
    %p83 = scmp.ne.s32.totalorder %s78, %s80
    %p84 = scmp.eq.s32.totalorder %s9, 0
    %p85 = por %p83, %p84
    %p86 = scmp.ne.s32.totalorder %s78, %s80
    %p87 = scmp.eq.s32.totalorder %s14, 1
    %p88 = por %p86, %p87
    %p89 = scmp.ne.s32.totalorder %s80, %s81
    %p90 = scmp.eq.s32.totalorder %s14, 0
    %p91 = por %p89, %p90
    %p92 = scmp.ne.s32.totalorder %s80, %s81
    %p93 = scmp.eq.s32.totalorder %s15, 1
    %p94 = por %p92, %p93
    %p96 = scmp.ne.s32.totalorder %s81, %s95
    %p97 = scmp.eq.s32.totalorder %s15, 0
    %p98 = por %p96, %p97
    %s99 = sadd.s32 %s16, %s17
    %s100 = sadd.s32 %s28, %s24
    %s101 = ssub.s32 %s99, %s100
    %p102 = scmp.eq.s32.totalorder %s101, 0
    %s104 = sadd.s32 %s103, 1
    %s105 = scalar_select %p102, %s103, %s104
    %p108 = pneg %p102
    %p109 = scmp.eq.s32.totalorder %s9, 1
    %p110 = por %p108, %p109
    %p111 = scmp.ne.s32.totalorder %s103, %s106
    %p112 = scmp.eq.s32.totalorder %s9, 0
    %p113 = por %p111, %p112
    %p114 = scmp.ne.s32.totalorder %s103, %s106
    %p115 = scmp.eq.s32.totalorder %s14, 1
    %p116 = por %p114, %p115
    %p117 = scmp.ne.s32.totalorder %s106, %s107
    %p118 = scmp.eq.s32.totalorder %s14, 0
    %p119 = por %p117, %p118
    %p120 = scmp.ne.s32.totalorder %s106, %s107
    %p121 = scmp.eq.s32.totalorder %s15, 1
    %p122 = por %p120, %p121
    %p124 = scmp.ne.s32.totalorder %s107, %s123
    %p125 = scmp.eq.s32.totalorder %s15, 0
    %p126 = por %p124, %p125
    %p127 = scmp.le.s32.totalorder 1, %s9
    %p128 = scmp.lt.s32.totalorder %s9, 3
    %p129 = pnand %p127, %p128
    %p130 = pneg %p129
    // Predicated region
    $region9: #{unet_up_origin_forward.2} parent=5 // pred_check
      _
    $region10: #{unet_up_origin_forward.2} parent=5 // pred_check_branch
      %132 = sbr.rel (%p129) target = $region12
    $region11: #{unet_up_origin_forward.2} parent=5 // pred_region
      %s133 = ssub.s32 %s9, 1
      // Predicated region
      $region13: #{unet_up_origin_forward.2} parent=11 // pred_check
        %p134 = pneg %p70
      $region14: #{unet_up_origin_forward.2} parent=11 // pred_check_branch
        %136 = sbr.rel (%p134) target = $region16
      $region15: #{unet_up_origin_forward.2} parent=11 // pred_region
        _
      $region16: #{unet_up_origin_forward.2} parent=11 // pred_fallthru
        _
      // Predicated region
      $region17: #{unet_up_origin_forward.2} parent=11 // pred_check
        %p137 = pneg %p91
      $region18: #{unet_up_origin_forward.2} parent=11 // pred_check_branch
        %139 = sbr.rel (%p137) target = $region20
      $region19: #{unet_up_origin_forward.2} parent=11 // pred_region
        _
      $region20: #{unet_up_origin_forward.2} parent=11 // pred_fallthru
        _
    $region12: #{unet_up_origin_forward.2} parent=5 // pred_fallthru
      _
    %p140 = scmp.lt.s32.totalorder %s9, 2
    // Predicated region
    $region21: #{unet_up_origin_forward.2} parent=5 // pred_check
      %p141 = pneg %p140
    $region22: #{unet_up_origin_forward.2} parent=5 // pred_check_branch
      %143 = sbr.rel (%p141) target = $region24
    $region23: #{unet_up_origin_forward.2} parent=5 // pred_region
      // Predicated region
      $region25: #{unet_up_origin_forward.2} parent=23 // pred_check
        %p144 = pneg %p43
      $region26: #{unet_up_origin_forward.2} parent=23 // pred_check_branch
        %146 = sbr.rel (%p144) target = $region28
      $region27: #{unet_up_origin_forward.2} parent=23 // pred_region
        %p147 = scmp.lt.s32.totalorder %s16, 1
        %s148 = scalar_select %p147, %s16, 1
        %p149 = scmp.lt.s32.totalorder %s17, 0
        %s150 = scalar_select %p149, %s17, 0
        %s151 = sadd.s32 %s150, %s148
        %s152 = smul.addr %s151, 8
        %s153 = scalar_lea.vmem %s0, %s152
      $region28: #{unet_up_origin_forward.2} parent=23 // pred_fallthru
        _
    $region24: #{unet_up_origin_forward.2} parent=5 // pred_fallthru
      _
    %p154 = scmp.le.s32.totalorder 1, %s9
    %p155 = scmp.lt.s32.totalorder %s9, 3
    %p156 = pnand %p154, %p155
    %p157 = pneg %p156
    // Predicated region
    $region29: #{unet_up_origin_forward.2} parent=5 // pred_check
      _
    $region30: #{unet_up_origin_forward.2} parent=5 // pred_check_branch
      %159 = sbr.rel (%p156) target = $region32
    $region31: #{unet_up_origin_forward.2} parent=5 // pred_region
      %s160 = ssub.s32 %s9, 1
      %p161 = scmp.lt.s32.totalorder %s18, 1
      %s162 = scalar_select %p161, %s18, 1
      %p163 = scmp.lt.s32.totalorder %s19, 0
      %s164 = scalar_select %p163, %s19, 0
      %s165 = sadd.s32 %s164, %s162
      %s166 = smul.addr %s165, 8
      %s167 = scalar_lea.vmem %s0, %s166
      %p168 = pneg %p49
      %p169 = pneg %p46
      %p170 = pneg %p70
      %p171 = pneg %p67
      %p172 = pneg %p91
      %p173 = pneg %p88
      %p174 = pneg %p119
      %p175 = pneg %p116
      %s176 = sadd.s32 %s18, %s19
      %s177 = smul.u32 8, %s176
      %p178 = scmp.lt.s32.totalorder %s177, 15
      %s179 = scalar_select %p178, %s177, 15
      %s180 = smul.addr %s179, 2
      %s181 = smul.addr %s180, 8
      %s182 = scalar_lea.vmem %s3, %s181
      %p183 = scmp.lt.s32.totalorder %s18, 1
      %s184 = scalar_select %p183, %s18, 1
      %p185 = scmp.lt.s32.totalorder %s19, 0
      %s186 = scalar_select %p185, %s19, 0
      %s187 = sadd.s32 %s186, %s184
      %s188 = smul.addr %s187, 8
      %s189 = scalar_lea.vmem %s0, %s188
      %s190 = sadd.s32 %s18, %s19
      %s191 = smul.u32 8, %s190
      %p192 = scmp.lt.s32.totalorder %s191, 15
      %s193 = scalar_select %p192, %s191, 15
      %s194 = smul.addr %s193, 2
      %s195 = smul.addr %s194, 8
      %s196 = scalar_lea.vmem %s3, %s195
      %s197 = sadd.s32 %s18, %s19
      %s198 = smul.u32 8, %s197
      %v199 = vld [vmem:[%s189] sm:$0xff]
      %200 = vxpose.xlu0.b32.start [1/16] %v199, 128
      %201 = vxpose.xlu0.b32.cont [2/16] 0.0, 128
      %202 = vxpose.xlu0.b32.cont [3/16] 0.0, 128
      %203 = vxpose.xlu0.b32.cont [4/16] 0.0, 128
      %204 = vxpose.xlu0.b32.cont [5/16] 0.0, 128
      %205 = vxpose.xlu0.b32.cont [6/16] 0.0, 128
      %206 = vxpose.xlu0.b32.cont [7/16] 0.0, 128
      %207 = vxpose.xlu0.b32.cont [8/16] 0.0, 128
      %208 = vxpose.xlu0.b32.cont [9/16] 0.0, 128
      %209 = vxpose.xlu0.b32.cont [10/16] 0.0, 128
      %210 = vxpose.xlu0.b32.cont [11/16] 0.0, 128
      %211 = vxpose.xlu0.b32.cont [12/16] 0.0, 128
      %212 = vxpose.xlu0.b32.cont [13/16] 0.0, 128
      %213 = vxpose.xlu0.b32.cont [14/16] 0.0, 128
      %214 = vxpose.xlu0.b32.cont [15/16] 0.0, 128
      %215 = vxpose.xlu0.b32.end [16/16] 0.0, 128
      %v216 = vpop.trf.xlu0
      %v217 = vpop.trf.xlu0
      %v218 = vpop.trf.xlu0
      %v219 = vpop.trf.xlu0
      %v220 = vpop.trf.xlu0
      %v221 = vpop.trf.xlu0
      %v222 = vpop.trf.xlu0
      %v223 = vpop.trf.xlu0
      %v224 = vpop.trf.xlu0
      %v225 = vpop.trf.xlu0
      %v226 = vpop.trf.xlu0
      %v227 = vpop.trf.xlu0
      %v228 = vpop.trf.xlu0
      %v229 = vpop.trf.xlu0
      %v230 = vpop.trf.xlu0
      %v231 = vpop.trf.xlu0
      %v232 = vld [vmem:[%s1] sm:$0xff]
      %v233 = vld [vmem:[%s2] sm:$0x1]
      %v235 = vlaneseq
      %v236 = vshrl.u32 %v235, 7
      %v237 = vsub.s32 0, %v236
      %v238 = vrot.slane %v233, %v237
      %vm240 = vcmask 64512
      %v242 = vsel %vm240, %v216, 0
      %v245 = vsel %vm240, %v217, 0
      %v248 = vsel %vm240, %v218, 0
      %v251 = vsel %vm240, %v219, 0
      %v254 = vsel %vm240, %v220, 0
      %v257 = vsel %vm240, %v221, 0
      %v260 = vsel %vm240, %v222, 0
      %v263 = vsel %vm240, %v223, 0
      %265 = vmatprep.subr.mxu0 0.0
      %266 = vmatpush1.msra.mxu0 %v232
      %267 = vmatprep.subr.mxu0 0.0
      %268 = vmatpush1.msra.mxu0 0.0
      %269 = vmatprep.subr.mxu0 0.0
      %270 = vmatpush1.msra.mxu0 0.0
      %271 = vmatprep.subr.mxu0 0.0
      %272 = vmatpush1.msra.mxu0 0.0
      %273 = vmatprep.subr.mxu0 0.0
      %274 = vmatpush1.msra.mxu0 0.0
      %275 = vmatprep.subr.mxu0 0.0
      %276 = vmatpush1.msra.mxu0 0.0
      %277 = vmatprep.subr.mxu0 0.0
      %278 = vmatpush1.msra.mxu0 0.0
      %279 = vmatprep.subr.mxu0 0.0
      %280 = vmatpush1.msra.mxu0 0.0
      %281 = vmatprep.subr.mxu0 0.0
      %282 = vmatpush1.msra.mxu0 0.0
      %283 = vmatprep.subr.mxu0 0.0
      %284 = vmatpush1.msra.mxu0 0.0
      %285 = vmatprep.subr.mxu0 0.0
      %286 = vmatpush1.msra.mxu0 0.0
      %287 = vmatprep.subr.mxu0 0.0
      %288 = vmatpush1.msra.mxu0 0.0
      %289 = vmatprep.subr.mxu0 0.0
      %290 = vmatpush1.msra.mxu0 0.0
      %291 = vmatprep.subr.mxu0 0.0
      %292 = vmatpush1.msra.mxu0 0.0
      %293 = vmatprep.subr.mxu0 0.0
      %294 = vmatpush1.msra.mxu0 0.0
      %295 = vmatprep.subr.mxu0 0.0
      %296 = vmatpush1.msra.mxu0 0.0
      %297 = vmatprep.subr.mxu0 0.0
      %298 = vmatpush1.msra.mxu0 0.0
      %299 = vmatprep.subr.mxu0 0.0
      %300 = vmatpush1.msra.mxu0 0.0
      %301 = vmatprep.subr.mxu0 0.0
      %302 = vmatpush1.msra.mxu0 0.0
      %303 = vmatprep.subr.mxu0 0.0
      %304 = vmatpush1.msra.mxu0 0.0
      %305 = vmatprep.subr.mxu0 0.0
      %306 = vmatpush1.msra.mxu0 0.0
      %307 = vmatprep.subr.mxu0 0.0
      %308 = vmatpush1.msra.mxu0 0.0
      %309 = vmatprep.subr.mxu0 0.0
      %310 = vmatpush1.msra.mxu0 0.0
      %311 = vmatprep.subr.mxu0 0.0
      %312 = vmatpush1.msra.mxu0 0.0
      %313 = vmatprep.subr.mxu0 0.0
      %314 = vmatpush1.msra.mxu0 0.0
      %315 = vmatprep.subr.mxu0 0.0
      %316 = vmatpush1.msra.mxu0 0.0
      %317 = vmatprep.subr.mxu0 0.0
      %318 = vmatpush1.msra.mxu0 0.0
      %319 = vmatprep.subr.mxu0 0.0
      %320 = vmatpush1.msra.mxu0 0.0
      %321 = vmatprep.subr.mxu0 0.0
      %322 = vmatpush1.msra.mxu0 0.0
      %323 = vmatprep.subr.mxu0 0.0
      %324 = vmatpush1.msra.mxu0 0.0
      %325 = vmatprep.subr.mxu0 0.0
      %326 = vmatpush1.msra.mxu0 0.0
      %327 = vmatprep.subr.mxu0 0.0
      %328 = vmatpush1.msra.mxu0 0.0
      %329 = vmatprep.mubr.f32.mxu0 0.0
      %330 = vmatmul.mubr.f32.gmra.mrb[0].mxu0 %v242
      %v331 = vpop.f32.mrb[0].mxu0
      %v332 = vadd.f32 %v238, %v331
      %v333 = vpop.f32.mrb[0].mxu0
      %334 = vmatprep.mubr.f32.mxu0 0.0
      %335 = vmatmul.mubr.f32.gmra.mrb[0].mxu0 %v245
      %v336 = vpop.f32.mrb[0].mxu0
      %v337 = vadd.f32 %v238, %v336
      %v338 = vpop.f32.mrb[0].mxu0
      %339 = vmatprep.mubr.f32.mxu0 0.0
      %340 = vmatmul.mubr.f32.gmra.mrb[0].mxu0 %v248
      %v341 = vpop.f32.mrb[0].mxu0
      %v342 = vadd.f32 %v238, %v341
      %v343 = vpop.f32.mrb[0].mxu0
      %344 = vmatprep.mubr.f32.mxu0 0.0
      %345 = vmatmul.mubr.f32.gmra.mrb[0].mxu0 %v251
      %v346 = vpop.f32.mrb[0].mxu0
      %v347 = vadd.f32 %v238, %v346
      %v348 = vpop.f32.mrb[0].mxu0
      %349 = vmatprep.mubr.f32.mxu0 0.0
      %350 = vmatmul.mubr.f32.gmra.mrb[0].mxu0 %v254
      %v351 = vpop.f32.mrb[0].mxu0
      %v352 = vadd.f32 %v238, %v351
      %v353 = vpop.f32.mrb[0].mxu0
      %354 = vmatprep.mubr.f32.mxu0 0.0
      %355 = vmatmul.mubr.f32.gmra.mrb[0].mxu0 %v257
      %v356 = vpop.f32.mrb[0].mxu0
      %v357 = vadd.f32 %v238, %v356
      %v358 = vpop.f32.mrb[0].mxu0
      %359 = vmatprep.mubr.f32.mxu0 0.0
      %360 = vmatmul.mubr.f32.gmra.mrb[0].mxu0 %v260
      %v361 = vpop.f32.mrb[0].mxu0
      %v362 = vadd.f32 %v238, %v361
      %v363 = vpop.f32.mrb[0].mxu0
      %364 = vmatprep.mubr.f32.mxu0 0.0
      %365 = vmatmul.mubr.f32.gmra.mrb[0].mxu0 %v263
      %v366 = vpop.f32.mrb[0].mxu0
      %v367 = vadd.f32 %v238, %v366
      %v368 = vpop.f32.mrb[0].mxu0
      %369 = vdwg.mxu0
      %s370 = scalar_lea.vmem %s1, 8
      %v371 = vld [vmem:[%s370] sm:$0xff]
      %372 = vmatprep.subr.mxu0 0.0
      %373 = vmatpush1.msra.mxu0 %v371
      %374 = vmatprep.subr.mxu0 0.0
      %375 = vmatpush1.msra.mxu0 0.0
      %376 = vmatprep.subr.mxu0 0.0
      %377 = vmatpush1.msra.mxu0 0.0
      %378 = vmatprep.subr.mxu0 0.0
      %379 = vmatpush1.msra.mxu0 0.0
      %380 = vmatprep.subr.mxu0 0.0
      %381 = vmatpush1.msra.mxu0 0.0
      %382 = vmatprep.subr.mxu0 0.0
      %383 = vmatpush1.msra.mxu0 0.0
      %384 = vmatprep.subr.mxu0 0.0
      %385 = vmatpush1.msra.mxu0 0.0
      %386 = vmatprep.subr.mxu0 0.0
      %387 = vmatpush1.msra.mxu0 0.0
      %388 = vmatprep.subr.mxu0 0.0
      %389 = vmatpush1.msra.mxu0 0.0
      %390 = vmatprep.subr.mxu0 0.0
      %391 = vmatpush1.msra.mxu0 0.0
      %392 = vmatprep.subr.mxu0 0.0
      %393 = vmatpush1.msra.mxu0 0.0
      %394 = vmatprep.subr.mxu0 0.0
      %395 = vmatpush1.msra.mxu0 0.0
      %396 = vmatprep.subr.mxu0 0.0
      %397 = vmatpush1.msra.mxu0 0.0
      %398 = vmatprep.subr.mxu0 0.0
      %399 = vmatpush1.msra.mxu0 0.0
      %400 = vmatprep.subr.mxu0 0.0
      %401 = vmatpush1.msra.mxu0 0.0
      %402 = vmatprep.subr.mxu0 0.0
      %403 = vmatpush1.msra.mxu0 0.0
      %404 = vmatprep.subr.mxu0 0.0
      %405 = vmatpush1.msra.mxu0 0.0
      %406 = vmatprep.subr.mxu0 0.0
      %407 = vmatpush1.msra.mxu0 0.0
      %408 = vmatprep.subr.mxu0 0.0
      %409 = vmatpush1.msra.mxu0 0.0
      %410 = vmatprep.subr.mxu0 0.0
      %411 = vmatpush1.msra.mxu0 0.0
      %412 = vmatprep.subr.mxu0 0.0
      %413 = vmatpush1.msra.mxu0 0.0
      %414 = vmatprep.subr.mxu0 0.0
      %415 = vmatpush1.msra.mxu0 0.0
      %416 = vmatprep.subr.mxu0 0.0
      %417 = vmatpush1.msra.mxu0 0.0
      %418 = vmatprep.subr.mxu0 0.0
      %419 = vmatpush1.msra.mxu0 0.0
      %420 = vmatprep.subr.mxu0 0.0
      %421 = vmatpush1.msra.mxu0 0.0
      %422 = vmatprep.subr.mxu0 0.0
      %423 = vmatpush1.msra.mxu0 0.0
      %424 = vmatprep.subr.mxu0 0.0
      %425 = vmatpush1.msra.mxu0 0.0
      %426 = vmatprep.subr.mxu0 0.0
      %427 = vmatpush1.msra.mxu0 0.0
      %428 = vmatprep.subr.mxu0 0.0
      %429 = vmatpush1.msra.mxu0 0.0
      %430 = vmatprep.subr.mxu0 0.0
      %431 = vmatpush1.msra.mxu0 0.0
      %432 = vmatprep.subr.mxu0 0.0
      %433 = vmatpush1.msra.mxu0 0.0
      %434 = vmatprep.subr.mxu0 0.0
      %435 = vmatpush1.msra.mxu0 0.0
      %436 = vmatprep.mubr.f32.mxu0 0.0
      %437 = vmatmul.mubr.f32.gmra.mrb[0].mxu0 %v242
      %v438 = vpop.f32.mrb[0].mxu0
      %v439 = vadd.f32 %v238, %v438
      %v440 = vpop.f32.mrb[0].mxu0
      %441 = vmatprep.mubr.f32.mxu0 0.0
      %442 = vmatmul.mubr.f32.gmra.mrb[0].mxu0 %v245
      %v443 = vpop.f32.mrb[0].mxu0
      %v444 = vadd.f32 %v238, %v443
      %v445 = vpop.f32.mrb[0].mxu0
      %446 = vmatprep.mubr.f32.mxu0 0.0
      %447 = vmatmul.mubr.f32.gmra.mrb[0].mxu0 %v248
      %v448 = vpop.f32.mrb[0].mxu0
      %v449 = vadd.f32 %v238, %v448
      %v450 = vpop.f32.mrb[0].mxu0
      %451 = vmatprep.mubr.f32.mxu0 0.0
      %452 = vmatmul.mubr.f32.gmra.mrb[0].mxu0 %v251
      %v453 = vpop.f32.mrb[0].mxu0
      %v454 = vadd.f32 %v238, %v453
      %v455 = vpop.f32.mrb[0].mxu0
      %456 = vmatprep.mubr.f32.mxu0 0.0
      %457 = vmatmul.mubr.f32.gmra.mrb[0].mxu0 %v254
      %v458 = vpop.f32.mrb[0].mxu0
      %v459 = vadd.f32 %v238, %v458
      %v460 = vpop.f32.mrb[0].mxu0
      %461 = vmatprep.mubr.f32.mxu0 0.0
      %462 = vmatmul.mubr.f32.gmra.mrb[0].mxu0 %v257
      %v463 = vpop.f32.mrb[0].mxu0
      %v464 = vadd.f32 %v238, %v463
      %v465 = vpop.f32.mrb[0].mxu0
      %466 = vmatprep.mubr.f32.mxu0 0.0
      %467 = vmatmul.mubr.f32.gmra.mrb[0].mxu0 %v260
      %v468 = vpop.f32.mrb[0].mxu0
      %v469 = vadd.f32 %v238, %v468
      %v470 = vpop.f32.mrb[0].mxu0
      %471 = vmatprep.mubr.f32.mxu0 0.0
      %472 = vmatmul.mubr.f32.gmra.mrb[0].mxu0 %v263
      %v473 = vpop.f32.mrb[0].mxu0
      %v474 = vadd.f32 %v238, %v473
      %v475 = vpop.f32.mrb[0].mxu0
      %476 = vdwg.mxu0
      %477 = vst.msk [vmem:[%s196] sm:$0xff] %vm240, %v332
      %478 = vst.msk [vmem:[%s196 + $0x10] sm:$0xff] %vm240, %v337
      %479 = vst.msk [vmem:[%s196 + $0x20] sm:$0xff] %vm240, %v342
      %480 = vst.msk [vmem:[%s196 + $0x30] sm:$0xff] %vm240, %v347
      %481 = vst.msk [vmem:[%s196 + $0x40] sm:$0xff] %vm240, %v352
      %482 = vst.msk [vmem:[%s196 + $0x50] sm:$0xff] %vm240, %v357
      %483 = vst.msk [vmem:[%s196 + $0x60] sm:$0xff] %vm240, %v362
      %484 = vst.msk [vmem:[%s196 + $0x70] sm:$0xff] %vm240, %v367
      %s485 = scalar_lea.vmem %s196, 8
      %486 = vst.msk [vmem:[%s485] sm:$0xff] %vm240, %v439
      %487 = vst.msk [vmem:[%s485 + $0x10] sm:$0xff] %vm240, %v444
      %488 = vst.msk [vmem:[%s485 + $0x20] sm:$0xff] %vm240, %v449
      %489 = vst.msk [vmem:[%s485 + $0x30] sm:$0xff] %vm240, %v454
      %490 = vst.msk [vmem:[%s485 + $0x40] sm:$0xff] %vm240, %v459
      %491 = vst.msk [vmem:[%s485 + $0x50] sm:$0xff] %vm240, %v464
      %492 = vst.msk [vmem:[%s485 + $0x60] sm:$0xff] %vm240, %v469
      %493 = vst.msk [vmem:[%s485 + $0x70] sm:$0xff] %vm240, %v474
      %s494 = sadd.s32 %s18, %s19
      %s495 = smul.u32 8, %s494
      %p496 = scmp.lt.s32.totalorder %s495, 15
      %s497 = scalar_select %p496, %s495, 15
      %s498 = smul.addr %s497, 2
      %s499 = smul.addr %s498, 8
      %s500 = scalar_lea.vmem %s3, %s499
      // Predicated region
      $region33: #{unet_up_origin_forward.2} parent=31 // pred_check
        %p501 = pneg %p116
      $region34: #{unet_up_origin_forward.2} parent=31 // pred_check_branch
        %503 = sbr.rel (%p501) target = $region36
      $region35: #{unet_up_origin_forward.2} parent=31 // pred_region
        %s504 = sadd.s32 %s18, %s19
        %s505 = smul.u32 8, %s504
      $region36: #{unet_up_origin_forward.2} parent=31 // pred_fallthru
        _
    $region32: #{unet_up_origin_forward.2} parent=5 // pred_fallthru
      _
    %p506 = scmp.le.s32.totalorder 2, %s9
    // Predicated region
    $region37: #{unet_up_origin_forward.2} parent=5 // pred_check
      %p507 = pneg %p506
    $region38: #{unet_up_origin_forward.2} parent=5 // pred_check_branch
      %509 = sbr.rel (%p507) target = $region40
    $region39: #{unet_up_origin_forward.2} parent=5 // pred_region
      %s510 = ssub.s32 %s9, 2
      // Predicated region
      $region41: #{unet_up_origin_forward.2} parent=39 // pred_check
        %p511 = pneg %p122
      $region42: #{unet_up_origin_forward.2} parent=39 // pred_check_branch
        %513 = sbr.rel (%p511) target = $region44
      $region43: #{unet_up_origin_forward.2} parent=39 // pred_region
        %s514 = sadd.s32 %s20, %s21
        %s515 = smul.u32 8, %s514
        %p516 = scmp.lt.s32.totalorder %s515, 15
        %s517 = scalar_select %p516, %s515, 15
        %s518 = smul.addr %s517, 2
        %s519 = smul.addr %s518, 8
        %s520 = scalar_lea.vmem %s3, %s519
      $region44: #{unet_up_origin_forward.2} parent=39 // pred_fallthru
        _
    $region40: #{unet_up_origin_forward.2} parent=5 // pred_fallthru
      _
  $region6: #{unet_up_origin_forward.2} parent=0 // loop_footer
    %s13 = sadd.s32 1, %s9
  $region7: #{unet_up_origin_forward.2} parent=0 // loop_footer_branch
    %8 = sbr.rel target = $region3
  $region8: #{unet_up_origin_forward.2} parent=0 // loop_exit
    _

// kernel: unet_up_origin_forward.3
$region0: #{unet_up_origin_forward.3}
  #allocation0 [shape = 'u32[]', space=smem, size = 0x4, offset = 0x4, fixed_abs, tag = 'smem constant byte address 0x4 - core index']
  #allocation1 [shape = 'u32[144,128]{1,0:T(1,128)}', space=vmem, size = 0x12000, scoped, tag = 'internal scratch']
  #allocation2 [shape = 'f32[18,18,8]{2,1,0:T(8,128)}', space=vmem, size = 0x36000, scoped, tag = 'scratch operand']
  #allocation3 [shape = 'f32[18,18,4]{2,1,0:T(8,128)}', space=vmem, size = 0x36000, scoped, tag = 'scratch operand']
  %s0 = inlined_call_operand.vmem [shape: f32[2,16,16,4], index: 0, kind: input, shape index: {}]
  %s1 = inlined_call_operand.vmem [shape: f32[2,4,256], index: 1, kind: input, shape index: {}]
  %s2 = inlined_call_operand.vmem [shape: f32[72,4], index: 2, kind: input, shape index: {}]
  %s3 = inlined_call_operand.vmem [shape: f32[1,4], index: 3, kind: input, shape index: {}]
  %s4 = inlined_call_operand.vmem [shape: f32[36,4], index: 4, kind: input, shape index: {}]
  %s5 = inlined_call_operand.vmem [shape: f32[1,4], index: 5, kind: input, shape index: {}]
  %s6 = inlined_call_operand.vmem [shape: f32[2,4,256], index: 6, kind: output, shape index: {}]
  %s7 = sld [smem:[#allocation0]]
  $region57: #{unet_up_origin_forward.3} parent=0
    _
  %s9 = ssub.s32 1, %s7
  %s10 = scalar_select 0, %s9, %s7
  loop: start=0, step=1, limit=4
  $region2: #{unet_up_origin_forward.3} parent=0 // loop_pre_header
    _
  $region3: #{unet_up_origin_forward.3} parent=0 // loop_header
    %s12 = sphi 0, %s16
    %p13 = scmp.ge.s32.totalorder %s12, 4
    %s22 = sphi 0, %s24
    %s25 = sphi 0, %s22
    %s26 = sphi 0, %s25
    %s42 = sphi 0, %s26
    %s48 = sphi 0, %s50
    %s51 = sphi 0, %s48
    %s52 = sphi 0, %s51
    %s68 = sphi 0, %s52
    %s72 = sphi 0, %s72
    %s74 = sphi 0, %s72
    %s75 = sphi 0, %s74
    %s89 = sphi 0, %s75
    %s93 = sphi 0, %s93
    %s95 = sphi 0, %s93
    %s96 = sphi 0, %s95
    %s110 = sphi 0, %s96
    %s114 = sphi 0, %s114
    %s116 = sphi 0, %s114
    %s117 = sphi 0, %s116
    %s131 = sphi 0, %s117
    %s135 = sphi 0, %s135
    %s137 = sphi 0, %s135
    %s138 = sphi 0, %s137
    %s152 = sphi 0, %s138
    %s158 = sphi 0, %s160
    %s161 = sphi 0, %s158
    %s162 = sphi 0, %s161
    %s178 = sphi 0, %s162
  $region4: #{unet_up_origin_forward.3} parent=0 // loop_header_branch
    %15 = sbr.rel (%p13) target = $region8
  $region5: #{unet_up_origin_forward.3} parent=0 // loop_body
    %s17 = ssub.s32 %s12, 1
    %s18 = ssub.s32 %s12, 2
    %s19 = sadd.s32 %s12, 1
    %s20 = ssub.s32 %s12, %s19
    %p21 = scmp.eq.s32.totalorder %s20, 0
    %s23 = sadd.s32 %s22, 1
    %s24 = scalar_select %p21, %s22, %s23
    %p27 = pneg %p21
    %p28 = scmp.eq.s32.totalorder %s12, 1
    %p29 = por %p27, %p28
    %p30 = scmp.ne.s32.totalorder %s22, %s25
    %p31 = scmp.eq.s32.totalorder %s12, 0
    %p32 = por %p30, %p31
    %p33 = scmp.ne.s32.totalorder %s22, %s25
    %p34 = scmp.eq.s32.totalorder %s17, 1
    %p35 = por %p33, %p34
    %p36 = scmp.ne.s32.totalorder %s25, %s26
    %p37 = scmp.eq.s32.totalorder %s17, 0
    %p38 = por %p36, %p37
    %p39 = scmp.ne.s32.totalorder %s25, %s26
    %p40 = scmp.eq.s32.totalorder %s18, 1
    %p41 = por %p39, %p40
    %p43 = scmp.ne.s32.totalorder %s26, %s42
    %p44 = scmp.eq.s32.totalorder %s18, 0
    %p45 = por %p43, %p44
    %s46 = ssub.s32 %s12, %s19
    %p47 = scmp.eq.s32.totalorder %s46, 0
    %s49 = sadd.s32 %s48, 1
    %s50 = scalar_select %p47, %s48, %s49
    %p53 = pneg %p47
    %p54 = scmp.eq.s32.totalorder %s12, 1
    %p55 = por %p53, %p54
    %p56 = scmp.ne.s32.totalorder %s48, %s51
    %p57 = scmp.eq.s32.totalorder %s12, 0
    %p58 = por %p56, %p57
    %p59 = scmp.ne.s32.totalorder %s48, %s51
    %p60 = scmp.eq.s32.totalorder %s17, 1
    %p61 = por %p59, %p60
    %p62 = scmp.ne.s32.totalorder %s51, %s52
    %p63 = scmp.eq.s32.totalorder %s17, 0
    %p64 = por %p62, %p63
    %p65 = scmp.ne.s32.totalorder %s51, %s52
    %p66 = scmp.eq.s32.totalorder %s18, 1
    %p67 = por %p65, %p66
    %p69 = scmp.ne.s32.totalorder %s52, %s68
    %p70 = scmp.eq.s32.totalorder %s18, 0
    %p71 = por %p69, %p70
    %s73 = sadd.s32 %s72, 1
    %p76 = scmp.eq.s32.totalorder %s12, 1
    %p77 = scmp.ne.s32.totalorder %s72, %s74
    %p78 = scmp.eq.s32.totalorder %s12, 0
    %p79 = por %p77, %p78
    %p80 = scmp.ne.s32.totalorder %s72, %s74
    %p81 = scmp.eq.s32.totalorder %s17, 1
    %p82 = por %p80, %p81
    %p83 = scmp.ne.s32.totalorder %s74, %s75
    %p84 = scmp.eq.s32.totalorder %s17, 0
    %p85 = por %p83, %p84
    %p86 = scmp.ne.s32.totalorder %s74, %s75
    %p87 = scmp.eq.s32.totalorder %s18, 1
    %p88 = por %p86, %p87
    %p90 = scmp.ne.s32.totalorder %s75, %s89
    %p91 = scmp.eq.s32.totalorder %s18, 0
    %p92 = por %p90, %p91
    %s94 = sadd.s32 %s93, 1
    %p97 = scmp.eq.s32.totalorder %s12, 1
    %p98 = scmp.ne.s32.totalorder %s93, %s95
    %p99 = scmp.eq.s32.totalorder %s12, 0
    %p100 = por %p98, %p99
    %p101 = scmp.ne.s32.totalorder %s93, %s95
    %p102 = scmp.eq.s32.totalorder %s17, 1
    %p103 = por %p101, %p102
    %p104 = scmp.ne.s32.totalorder %s95, %s96
    %p105 = scmp.eq.s32.totalorder %s17, 0
    %p106 = por %p104, %p105
    %p107 = scmp.ne.s32.totalorder %s95, %s96
    %p108 = scmp.eq.s32.totalorder %s18, 1
    %p109 = por %p107, %p108
    %p111 = scmp.ne.s32.totalorder %s96, %s110
    %p112 = scmp.eq.s32.totalorder %s18, 0
    %p113 = por %p111, %p112
    %s115 = sadd.s32 %s114, 1
    %p118 = scmp.eq.s32.totalorder %s12, 1
    %p119 = scmp.ne.s32.totalorder %s114, %s116
    %p120 = scmp.eq.s32.totalorder %s12, 0
    %p121 = por %p119, %p120
    %p122 = scmp.ne.s32.totalorder %s114, %s116
    %p123 = scmp.eq.s32.totalorder %s17, 1
    %p124 = por %p122, %p123
    %p125 = scmp.ne.s32.totalorder %s116, %s117
    %p126 = scmp.eq.s32.totalorder %s17, 0
    %p127 = por %p125, %p126
    %p128 = scmp.ne.s32.totalorder %s116, %s117
    %p129 = scmp.eq.s32.totalorder %s18, 1
    %p130 = por %p128, %p129
    %p132 = scmp.ne.s32.totalorder %s117, %s131
    %p133 = scmp.eq.s32.totalorder %s18, 0
    %p134 = por %p132, %p133
    %s136 = sadd.s32 %s135, 1
    %p139 = scmp.eq.s32.totalorder %s12, 1
    %p140 = scmp.ne.s32.totalorder %s135, %s137
    %p141 = scmp.eq.s32.totalorder %s12, 0
    %p142 = por %p140, %p141
    %p143 = scmp.ne.s32.totalorder %s135, %s137
    %p144 = scmp.eq.s32.totalorder %s17, 1
    %p145 = por %p143, %p144
    %p146 = scmp.ne.s32.totalorder %s137, %s138
    %p147 = scmp.eq.s32.totalorder %s17, 0
    %p148 = por %p146, %p147
    %p149 = scmp.ne.s32.totalorder %s137, %s138
    %p150 = scmp.eq.s32.totalorder %s18, 1
    %p151 = por %p149, %p150
    %p153 = scmp.ne.s32.totalorder %s138, %s152
    %p154 = scmp.eq.s32.totalorder %s18, 0
    %p155 = por %p153, %p154
    %s156 = ssub.s32 %s12, %s19
    %p157 = scmp.eq.s32.totalorder %s156, 0
    %s159 = sadd.s32 %s158, 1
    %s160 = scalar_select %p157, %s158, %s159
    %p163 = pneg %p157
    %p164 = scmp.eq.s32.totalorder %s12, 1
    %p165 = por %p163, %p164
    %p166 = scmp.ne.s32.totalorder %s158, %s161
    %p167 = scmp.eq.s32.totalorder %s12, 0
    %p168 = por %p166, %p167
    %p169 = scmp.ne.s32.totalorder %s158, %s161
    %p170 = scmp.eq.s32.totalorder %s17, 1
    %p171 = por %p169, %p170
    %p172 = scmp.ne.s32.totalorder %s161, %s162
    %p173 = scmp.eq.s32.totalorder %s17, 0
    %p174 = por %p172, %p173
    %p175 = scmp.ne.s32.totalorder %s161, %s162
    %p176 = scmp.eq.s32.totalorder %s18, 1
    %p177 = por %p175, %p176
    %p179 = scmp.ne.s32.totalorder %s162, %s178
    %p180 = scmp.eq.s32.totalorder %s18, 0
    %p181 = por %p179, %p180
    %p182 = scmp.le.s32.totalorder 1, %s12
    %p183 = scmp.lt.s32.totalorder %s12, 3
    %p184 = pnand %p182, %p183
    %p185 = pneg %p184
    // Predicated region
    $region9: #{unet_up_origin_forward.3} parent=5 // pred_check
      _
    $region10: #{unet_up_origin_forward.3} parent=5 // pred_check_branch
      %187 = sbr.rel (%p184) target = $region12
    $region11: #{unet_up_origin_forward.3} parent=5 // pred_region
      %s188 = ssub.s32 %s12, 1
      // Predicated region
      $region13: #{unet_up_origin_forward.3} parent=11 // pred_check
        %p189 = pneg %p85
      $region14: #{unet_up_origin_forward.3} parent=11 // pred_check_branch
        %191 = sbr.rel (%p189) target = $region16
      $region15: #{unet_up_origin_forward.3} parent=11 // pred_region
        _
      $region16: #{unet_up_origin_forward.3} parent=11 // pred_fallthru
        _
      // Predicated region
      $region17: #{unet_up_origin_forward.3} parent=11 // pred_check
        %p192 = pneg %p106
      $region18: #{unet_up_origin_forward.3} parent=11 // pred_check_branch
        %194 = sbr.rel (%p192) target = $region20
      $region19: #{unet_up_origin_forward.3} parent=11 // pred_region
        _
      $region20: #{unet_up_origin_forward.3} parent=11 // pred_fallthru
        _
      // Predicated region
      $region21: #{unet_up_origin_forward.3} parent=11 // pred_check
        %p195 = pneg %p127
      $region22: #{unet_up_origin_forward.3} parent=11 // pred_check_branch
        %197 = sbr.rel (%p195) target = $region24
      $region23: #{unet_up_origin_forward.3} parent=11 // pred_region
        _
      $region24: #{unet_up_origin_forward.3} parent=11 // pred_fallthru
        _
      // Predicated region
      $region25: #{unet_up_origin_forward.3} parent=11 // pred_check
        %p198 = pneg %p148
      $region26: #{unet_up_origin_forward.3} parent=11 // pred_check_branch
        %200 = sbr.rel (%p198) target = $region28
      $region27: #{unet_up_origin_forward.3} parent=11 // pred_region
        _
      $region28: #{unet_up_origin_forward.3} parent=11 // pred_fallthru
        _
    $region12: #{unet_up_origin_forward.3} parent=5 // pred_fallthru
      _
    %p201 = scmp.lt.s32.totalorder %s12, 2
    // Predicated region
    $region29: #{unet_up_origin_forward.3} parent=5 // pred_check
      %p202 = pneg %p201
    $region30: #{unet_up_origin_forward.3} parent=5 // pred_check_branch
      %204 = sbr.rel (%p202) target = $region32
    $region31: #{unet_up_origin_forward.3} parent=5 // pred_region
      // Predicated region
      $region33: #{unet_up_origin_forward.3} parent=31 // pred_check
        %p205 = pneg %p32
      $region34: #{unet_up_origin_forward.3} parent=31 // pred_check_branch
        %207 = sbr.rel (%p205) target = $region36
      $region35: #{unet_up_origin_forward.3} parent=31 // pred_region
        %p208 = scmp.lt.s32.totalorder %s12, 1
        %s209 = scalar_select %p208, %s12, 1
        %s210 = smul.addr %s209, 32
        %s211 = smul.addr %s210, 8
        %s212 = scalar_lea.vmem %s0, %s211
      $region36: #{unet_up_origin_forward.3} parent=31 // pred_fallthru
        _
      // Predicated region
      $region37: #{unet_up_origin_forward.3} parent=31 // pred_check
        %p213 = pneg %p58
      $region38: #{unet_up_origin_forward.3} parent=31 // pred_check_branch
        %215 = sbr.rel (%p213) target = $region40
      $region39: #{unet_up_origin_forward.3} parent=31 // pred_region
        %p216 = scmp.lt.s32.totalorder %s12, 1
        %s217 = scalar_select %p216, %s12, 1
        %s218 = smul.addr %s217, 2
        %s219 = smul.addr %s218, 4
        %s220 = scalar_lea.vmem %s1, %s219
      $region40: #{unet_up_origin_forward.3} parent=31 // pred_fallthru
        _
    $region32: #{unet_up_origin_forward.3} parent=5 // pred_fallthru
      _
    %p221 = scmp.le.s32.totalorder 1, %s12
    %p222 = scmp.lt.s32.totalorder %s12, 3
    %p223 = pnand %p221, %p222
    %p224 = pneg %p223
    // Predicated region
    $region41: #{unet_up_origin_forward.3} parent=5 // pred_check
      _
    $region42: #{unet_up_origin_forward.3} parent=5 // pred_check_branch
      %226 = sbr.rel (%p223) target = $region44
    $region43: #{unet_up_origin_forward.3} parent=5 // pred_region
      %s227 = ssub.s32 %s12, 1
      %p228 = scmp.lt.s32.totalorder %s17, 1
      %s229 = scalar_select %p228, %s17, 1
      %s230 = smul.addr %s229, 32
      %s231 = smul.addr %s230, 8
      %s232 = scalar_lea.vmem %s0, %s231
      %p233 = pneg %p38
      %p234 = pneg %p35
      %p235 = scmp.lt.s32.totalorder %s17, 1
      %s236 = scalar_select %p235, %s17, 1
      %s237 = smul.addr %s236, 2
      %s238 = smul.addr %s237, 4
      %s239 = scalar_lea.vmem %s1, %s238
      %p240 = pneg %p64
      %p241 = pneg %p61
      %p242 = pneg %p85
      %p243 = pneg %p82
      %p244 = pneg %p106
      %p245 = pneg %p103
      %p246 = pneg %p127
      %p247 = pneg %p124
      %p248 = pneg %p148
      %p249 = pneg %p145
      %p250 = pneg %p174
      %p251 = pneg %p171
      %p252 = scmp.lt.s32.totalorder %s17, 1
      %s253 = scalar_select %p252, %s17, 1
      %s254 = smul.addr %s253, 2
      %s255 = smul.addr %s254, 4
      %s256 = scalar_lea.vmem %s6, %s255
      %p257 = scmp.lt.s32.totalorder %s17, 1
      %s258 = scalar_select %p257, %s17, 1
      %s259 = smul.addr %s258, 32
      %s260 = smul.addr %s259, 8
      %s261 = scalar_lea.vmem %s0, %s260
      %p262 = scmp.lt.s32.totalorder %s17, 1
      %s263 = scalar_select %p262, %s17, 1
      %s264 = smul.addr %s263, 2
      %s265 = smul.addr %s264, 4
      %s266 = scalar_lea.vmem %s1, %s265
      %p267 = scmp.lt.s32.totalorder %s17, 1
      %s268 = scalar_select %p267, %s17, 1
      %s269 = smul.addr %s268, 2
      %s270 = smul.addr %s269, 4
      %s271 = scalar_lea.vmem %s6, %s270
      %vm272 = vcmask 64512
      %273 = vst.msk [vmem:[#allocation2] sm:$0xff] %vm272, 0.0
      %274 = vst.msk [vmem:[#allocation2 + $0x8] sm:$0xff] %vm272, 0.0
      %vm275 = vcmask 58368
      %276 = vst.msk [vmem:[#allocation2 + $0x10] sm:$0x3] %vm275, 0.0
      %277 = vst.msk [vmem:[#allocation2 + $0x18] sm:$0xff] %vm272, 0.0
      %278 = vst.msk [vmem:[#allocation2 + $0x20] sm:$0xff] %vm272, 0.0
      %279 = vst.msk [vmem:[#allocation2 + $0x28] sm:$0x3] %vm275, 0.0
      %280 = vst.msk [vmem:[#allocation2 + $0x30] sm:$0xff] %vm272, 0.0
      %281 = vst.msk [vmem:[#allocation2 + $0x38] sm:$0xff] %vm272, 0.0
      %282 = vst.msk [vmem:[#allocation2 + $0x40] sm:$0x3] %vm275, 0.0
      %283 = vst.msk [vmem:[#allocation2 + $0x48] sm:$0xff] %vm272, 0.0
      %284 = vst.msk [vmem:[#allocation2 + $0x50] sm:$0xff] %vm272, 0.0
      %285 = vst.msk [vmem:[#allocation2 + $0x58] sm:$0x3] %vm275, 0.0
      %286 = vst.msk [vmem:[#allocation2 + $0x60] sm:$0xff] %vm272, 0.0
      %287 = vst.msk [vmem:[#allocation2 + $0x68] sm:$0xff] %vm272, 0.0
      %288 = vst.msk [vmem:[#allocation2 + $0x70] sm:$0x3] %vm275, 0.0
      %289 = vst.msk [vmem:[#allocation2 + $0x78] sm:$0xff] %vm272, 0.0
      %290 = vst.msk [vmem:[#allocation2 + $0x80] sm:$0xff] %vm272, 0.0
      %291 = vst.msk [vmem:[#allocation2 + $0x88] sm:$0x3] %vm275, 0.0
      %292 = vst.msk [vmem:[#allocation2 + $0x90] sm:$0xff] %vm272, 0.0
      %293 = vst.msk [vmem:[#allocation2 + $0x98] sm:$0xff] %vm272, 0.0
      %294 = vst.msk [vmem:[#allocation2 + $0xa0] sm:$0x3] %vm275, 0.0
      %295 = vst.msk [vmem:[#allocation2 + $0xa8] sm:$0xff] %vm272, 0.0
      %296 = vst.msk [vmem:[#allocation2 + $0xb0] sm:$0xff] %vm272, 0.0
      %297 = vst.msk [vmem:[#allocation2 + $0xb8] sm:$0x3] %vm275, 0.0
      %298 = vst.msk [vmem:[#allocation2 + $0xc0] sm:$0xff] %vm272, 0.0
      %299 = vst.msk [vmem:[#allocation2 + $0xc8] sm:$0xff] %vm272, 0.0
      %300 = vst.msk [vmem:[#allocation2 + $0xd0] sm:$0x3] %vm275, 0.0
      %301 = vst.msk [vmem:[#allocation2 + $0xd8] sm:$0xff] %vm272, 0.0
      %302 = vst.msk [vmem:[#allocation2 + $0xe0] sm:$0xff] %vm272, 0.0
      %303 = vst.msk [vmem:[#allocation2 + $0xe8] sm:$0x3] %vm275, 0.0
      %304 = vst.msk [vmem:[#allocation2 + $0xf0] sm:$0xff] %vm272, 0.0
      %305 = vst.msk [vmem:[#allocation2 + $0xf8] sm:$0xff] %vm272, 0.0
      %306 = vst.msk [vmem:[#allocation2 + $0x100] sm:$0x3] %vm275, 0.0
      %307 = vst.msk [vmem:[#allocation2 + $0x108] sm:$0xff] %vm272, 0.0
      %308 = vst.msk [vmem:[#allocation2 + $0x110] sm:$0xff] %vm272, 0.0
      %309 = vst.msk [vmem:[#allocation2 + $0x118] sm:$0x3] %vm275, 0.0
      %310 = vst.msk [vmem:[#allocation2 + $0x120] sm:$0xff] %vm272, 0.0
      %311 = vst.msk [vmem:[#allocation2 + $0x128] sm:$0xff] %vm272, 0.0
      %312 = vst.msk [vmem:[#allocation2 + $0x130] sm:$0x3] %vm275, 0.0
      %313 = vst.msk [vmem:[#allocation2 + $0x138] sm:$0xff] %vm272, 0.0
      %314 = vst.msk [vmem:[#allocation2 + $0x140] sm:$0xff] %vm272, 0.0
      %315 = vst.msk [vmem:[#allocation2 + $0x148] sm:$0x3] %vm275, 0.0
      %316 = vst.msk [vmem:[#allocation2 + $0x150] sm:$0xff] %vm272, 0.0
      %317 = vst.msk [vmem:[#allocation2 + $0x158] sm:$0xff] %vm272, 0.0
      %318 = vst.msk [vmem:[#allocation2 + $0x160] sm:$0x3] %vm275, 0.0
      %319 = vst.msk [vmem:[#allocation2 + $0x168] sm:$0xff] %vm272, 0.0
      %320 = vst.msk [vmem:[#allocation2 + $0x170] sm:$0xff] %vm272, 0.0
      %321 = vst.msk [vmem:[#allocation2 + $0x178] sm:$0x3] %vm275, 0.0
      %322 = vst.msk [vmem:[#allocation2 + $0x180] sm:$0xff] %vm272, 0.0
      %323 = vst.msk [vmem:[#allocation2 + $0x188] sm:$0xff] %vm272, 0.0
      %324 = vst.msk [vmem:[#allocation2 + $0x190] sm:$0x3] %vm275, 0.0
      %325 = vst.msk [vmem:[#allocation2 + $0x198] sm:$0xff] %vm272, 0.0
      %326 = vst.msk [vmem:[#allocation2 + $0x1a0] sm:$0xff] %vm272, 0.0
      %327 = vst.msk [vmem:[#allocation2 + $0x1a8] sm:$0x3] %vm275, 0.0
      %v328 = vld [vmem:[%s261] sm:$0xff]
      %v329 = vld [vmem:[%s261 + $0x8] sm:$0xff]
      %v330 = vld [vmem:[%s261 + $0x10] sm:$0xff]
      %v331 = vld [vmem:[%s261 + $0x18] sm:$0xff]
      %v332 = vld [vmem:[%s261 + $0x20] sm:$0xff]
      %v333 = vld [vmem:[%s261 + $0x28] sm:$0xff]
      %v334 = vld [vmem:[%s261 + $0x30] sm:$0xff]
      %v335 = vld [vmem:[%s261 + $0x38] sm:$0xff]
      %v336 = vld [vmem:[%s261 + $0x40] sm:$0xff]
      %v337 = vld [vmem:[%s261 + $0x48] sm:$0xff]
      %v338 = vld [vmem:[%s261 + $0x50] sm:$0xff]
      %v339 = vld [vmem:[%s261 + $0x58] sm:$0xff]
      %v340 = vld [vmem:[%s261 + $0x60] sm:$0xff]
      %v341 = vld [vmem:[%s261 + $0x68] sm:$0xff]
      %v342 = vld [vmem:[%s261 + $0x70] sm:$0xff]
      %v343 = vld [vmem:[%s261 + $0x78] sm:$0xff]
      %v344 = vld [vmem:[%s261 + $0x80] sm:$0xff]
      %v345 = vld [vmem:[%s261 + $0x88] sm:$0xff]
      %v346 = vld [vmem:[%s261 + $0x90] sm:$0xff]
      %v347 = vld [vmem:[%s261 + $0x98] sm:$0xff]
      %v348 = vld [vmem:[%s261 + $0xa0] sm:$0xff]
      %v349 = vld [vmem:[%s261 + $0xa8] sm:$0xff]
      %v350 = vld [vmem:[%s261 + $0xb0] sm:$0xff]
      %v351 = vld [vmem:[%s261 + $0xb8] sm:$0xff]
      %v352 = vld [vmem:[%s261 + $0xc0] sm:$0xff]
      %v353 = vld [vmem:[%s261 + $0xc8] sm:$0xff]
      %v354 = vld [vmem:[%s261 + $0xd0] sm:$0xff]
      %v355 = vld [vmem:[%s261 + $0xd8] sm:$0xff]
      %v356 = vld [vmem:[%s261 + $0xe0] sm:$0xff]
      %v357 = vld [vmem:[%s261 + $0xe8] sm:$0xff]
      %v358 = vld [vmem:[%s261 + $0xf0] sm:$0xff]
      %v359 = vld [vmem:[%s261 + $0xf8] sm:$0xff]
      %s360 = scalar_lea.vmem [#allocation2], 24
      %vm361 = vcmask 31744
      %362 = vst.msk [vmem:[%s360 + $0x1] sm:$0xff] %vm361, %v328
      %363 = vst.msk [vmem:[%s360 + $0x9] sm:$0xff] %vm361, %v329
      %364 = vst.msk [vmem:[%s360 + $0x19] sm:$0xff] %vm361, %v330
      %365 = vst.msk [vmem:[%s360 + $0x21] sm:$0xff] %vm361, %v331
      %366 = vst.msk [vmem:[%s360 + $0x31] sm:$0xff] %vm361, %v332
      %367 = vst.msk [vmem:[%s360 + $0x39] sm:$0xff] %vm361, %v333
      %368 = vst.msk [vmem:[%s360 + $0x49] sm:$0xff] %vm361, %v334
      %369 = vst.msk [vmem:[%s360 + $0x51] sm:$0xff] %vm361, %v335
      %370 = vst.msk [vmem:[%s360 + $0x61] sm:$0xff] %vm361, %v336
      %371 = vst.msk [vmem:[%s360 + $0x69] sm:$0xff] %vm361, %v337
      %372 = vst.msk [vmem:[%s360 + $0x79] sm:$0xff] %vm361, %v338
      %373 = vst.msk [vmem:[%s360 + $0x81] sm:$0xff] %vm361, %v339
      %374 = vst.msk [vmem:[%s360 + $0x91] sm:$0xff] %vm361, %v340
      %375 = vst.msk [vmem:[%s360 + $0x99] sm:$0xff] %vm361, %v341
      %376 = vst.msk [vmem:[%s360 + $0xa9] sm:$0xff] %vm361, %v342
      %377 = vst.msk [vmem:[%s360 + $0xb1] sm:$0xff] %vm361, %v343
      %378 = vst.msk [vmem:[%s360 + $0xc1] sm:$0xff] %vm361, %v344
      %379 = vst.msk [vmem:[%s360 + $0xc9] sm:$0xff] %vm361, %v345
      %380 = vst.msk [vmem:[%s360 + $0xd9] sm:$0xff] %vm361, %v346
      %381 = vst.msk [vmem:[%s360 + $0xe1] sm:$0xff] %vm361, %v347
      %382 = vst.msk [vmem:[%s360 + $0xf1] sm:$0xff] %vm361, %v348
      %383 = vst.msk [vmem:[%s360 + $0xf9] sm:$0xff] %vm361, %v349
      %384 = vst.msk [vmem:[%s360 + $0x109] sm:$0xff] %vm361, %v350
      %385 = vst.msk [vmem:[%s360 + $0x111] sm:$0xff] %vm361, %v351
      %386 = vst.msk [vmem:[%s360 + $0x121] sm:$0xff] %vm361, %v352
      %387 = vst.msk [vmem:[%s360 + $0x129] sm:$0xff] %vm361, %v353
      %388 = vst.msk [vmem:[%s360 + $0x139] sm:$0xff] %vm361, %v354
      %389 = vst.msk [vmem:[%s360 + $0x141] sm:$0xff] %vm361, %v355
      %390 = vst.msk [vmem:[%s360 + $0x151] sm:$0xff] %vm361, %v356
      %391 = vst.msk [vmem:[%s360 + $0x159] sm:$0xff] %vm361, %v357
      %392 = vst.msk [vmem:[%s360 + $0x169] sm:$0xff] %vm361, %v358
      %393 = vst.msk [vmem:[%s360 + $0x171] sm:$0xff] %vm361, %v359
      %v394 = vld [vmem:[%s266] sm:$0xff]
      %v396 = vcombine.high %v394, %v394
      %398 = vxpose.xlu0.b32.start [1/16] %v394, 128
      %399 = vxpose.xlu0.b32.cont [2/16] 0.0, 128
      %400 = vxpose.xlu0.b32.cont [3/16] 0.0, 128
      %401 = vxpose.xlu0.b32.cont [4/16] 0.0, 128
      %402 = vxpose.xlu0.b32.cont [5/16] 0.0, 128
      %403 = vxpose.xlu0.b32.cont [6/16] 0.0, 128
      %404 = vxpose.xlu0.b32.cont [7/16] 0.0, 128
      %405 = vxpose.xlu0.b32.cont [8/16] 0.0, 128
      %406 = vxpose.xlu0.b32.cont [9/16] 0.0, 128
      %407 = vxpose.xlu0.b32.cont [10/16] 0.0, 128
      %408 = vxpose.xlu0.b32.cont [11/16] 0.0, 128
      %409 = vxpose.xlu0.b32.cont [12/16] 0.0, 128
      %410 = vxpose.xlu0.b32.cont [13/16] 0.0, 128
      %411 = vxpose.xlu0.b32.cont [14/16] 0.0, 128
      %412 = vxpose.xlu0.b32.cont [15/16] 0.0, 128
      %413 = vxpose.xlu0.b32.end [16/16] 0.0, 128
      %v414 = vpop.trf.xlu0
      %v415 = vpop.trf.xlu0
      %v416 = vpop.trf.xlu0
      %v417 = vpop.trf.xlu0
      %v418 = vpop.trf.xlu0
      %v419 = vpop.trf.xlu0
      %v420 = vpop.trf.xlu0
      %v421 = vpop.trf.xlu0
      %v422 = vpop.trf.xlu0
      %v423 = vpop.trf.xlu0
      %v424 = vpop.trf.xlu0
      %v425 = vpop.trf.xlu0
      %v426 = vpop.trf.xlu0
      %v427 = vpop.trf.xlu0
      %v428 = vpop.trf.xlu0
      %v429 = vpop.trf.xlu0
      %430 = vxpose.xlu0.b32.start [1/16] %v396, 128
      %431 = vxpose.xlu0.b32.cont [2/16] 0.0, 128
      %432 = vxpose.xlu0.b32.cont [3/16] 0.0, 128
      %433 = vxpose.xlu0.b32.cont [4/16] 0.0, 128
      %434 = vxpose.xlu0.b32.cont [5/16] 0.0, 128
      %435 = vxpose.xlu0.b32.cont [6/16] 0.0, 128
      %436 = vxpose.xlu0.b32.cont [7/16] 0.0, 128
      %437 = vxpose.xlu0.b32.cont [8/16] 0.0, 128
      %438 = vxpose.xlu0.b32.cont [9/16] 0.0, 128
      %439 = vxpose.xlu0.b32.cont [10/16] 0.0, 128
      %440 = vxpose.xlu0.b32.cont [11/16] 0.0, 128
      %441 = vxpose.xlu0.b32.cont [12/16] 0.0, 128
      %442 = vxpose.xlu0.b32.cont [13/16] 0.0, 128
      %443 = vxpose.xlu0.b32.cont [14/16] 0.0, 128
      %444 = vxpose.xlu0.b32.cont [15/16] 0.0, 128
      %445 = vxpose.xlu0.b32.end [16/16] 0.0, 128
      %v446 = vpop.trf.xlu0
      %v447 = vpop.trf.xlu0
      %v448 = vpop.trf.xlu0
      %v449 = vpop.trf.xlu0
      %v450 = vpop.trf.xlu0
      %v451 = vpop.trf.xlu0
      %v452 = vpop.trf.xlu0
      %v453 = vpop.trf.xlu0
      %v454 = vpop.trf.xlu0
      %v455 = vpop.trf.xlu0
      %v456 = vpop.trf.xlu0
      %v457 = vpop.trf.xlu0
      %v458 = vpop.trf.xlu0
      %v459 = vpop.trf.xlu0
      %v460 = vpop.trf.xlu0
      %v461 = vpop.trf.xlu0
      %494 = vrot.lane.b32.xlu0 %v414, 4
      %v495 = vpop.permute.xlu0 %494
      %496 = vrot.lane.b32.xlu0 %v415, 4
      %v497 = vpop.permute.xlu0 %496
      %498 = vrot.lane.b32.xlu0 %v416, 4
      %v499 = vpop.permute.xlu0 %498
      %500 = vrot.lane.b32.xlu0 %v417, 4
      %v501 = vpop.permute.xlu0 %500
      %502 = vrot.lane.b32.xlu0 %v418, 4
      %v503 = vpop.permute.xlu0 %502
      %504 = vrot.lane.b32.xlu0 %v419, 4
      %v505 = vpop.permute.xlu0 %504
      %506 = vrot.lane.b32.xlu0 %v420, 4
      %v507 = vpop.permute.xlu0 %506
      %508 = vrot.lane.b32.xlu0 %v421, 4
      %v509 = vpop.permute.xlu0 %508
      %510 = vrot.lane.b32.xlu0 %v422, 4
      %v511 = vpop.permute.xlu0 %510
      %512 = vrot.lane.b32.xlu0 %v423, 4
      %v513 = vpop.permute.xlu0 %512
      %514 = vrot.lane.b32.xlu0 %v424, 4
      %v515 = vpop.permute.xlu0 %514
      %516 = vrot.lane.b32.xlu0 %v425, 4
      %v517 = vpop.permute.xlu0 %516
      %518 = vrot.lane.b32.xlu0 %v426, 4
      %v519 = vpop.permute.xlu0 %518
      %520 = vrot.lane.b32.xlu0 %v427, 4
      %v521 = vpop.permute.xlu0 %520
      %522 = vrot.lane.b32.xlu0 %v428, 4
      %v523 = vpop.permute.xlu0 %522
      %524 = vrot.lane.b32.xlu0 %v429, 4
      %v525 = vpop.permute.xlu0 %524
      %526 = vrot.lane.b32.xlu0 %v446, 4
      %v527 = vpop.permute.xlu0 %526
      %528 = vrot.lane.b32.xlu0 %v447, 4
      %v529 = vpop.permute.xlu0 %528
      %530 = vrot.lane.b32.xlu0 %v448, 4
      %v531 = vpop.permute.xlu0 %530
      %532 = vrot.lane.b32.xlu0 %v449, 4
      %v533 = vpop.permute.xlu0 %532
      %534 = vrot.lane.b32.xlu0 %v450, 4
      %v535 = vpop.permute.xlu0 %534
      %536 = vrot.lane.b32.xlu0 %v451, 4
      %v537 = vpop.permute.xlu0 %536
      %538 = vrot.lane.b32.xlu0 %v452, 4
      %v539 = vpop.permute.xlu0 %538
      %540 = vrot.lane.b32.xlu0 %v453, 4
      %v541 = vpop.permute.xlu0 %540
      %542 = vrot.lane.b32.xlu0 %v454, 4
      %v543 = vpop.permute.xlu0 %542
      %544 = vrot.lane.b32.xlu0 %v455, 4
      %v545 = vpop.permute.xlu0 %544
      %546 = vrot.lane.b32.xlu0 %v456, 4
      %v547 = vpop.permute.xlu0 %546
      %548 = vrot.lane.b32.xlu0 %v457, 4
      %v549 = vpop.permute.xlu0 %548
      %550 = vrot.lane.b32.xlu0 %v458, 4
      %v551 = vpop.permute.xlu0 %550
      %552 = vrot.lane.b32.xlu0 %v459, 4
      %v553 = vpop.permute.xlu0 %552
      %554 = vrot.lane.b32.xlu0 %v460, 4
      %v555 = vpop.permute.xlu0 %554
      %556 = vrot.lane.b32.xlu0 %v461, 4
      %v557 = vpop.permute.xlu0 %556
      %vm590 = vcmask 64544
      %591 = vst.msk [vmem:[%s360 + $0x1] sm:$0xff] %vm590, %v495
      %592 = vst.msk [vmem:[%s360 + $0x9] sm:$0xff] %vm590, %v497
      %593 = vst.msk [vmem:[%s360 + $0x19] sm:$0xff] %vm590, %v499
      %594 = vst.msk [vmem:[%s360 + $0x21] sm:$0xff] %vm590, %v501
      %595 = vst.msk [vmem:[%s360 + $0x31] sm:$0xff] %vm590, %v503
      %596 = vst.msk [vmem:[%s360 + $0x39] sm:$0xff] %vm590, %v505
      %597 = vst.msk [vmem:[%s360 + $0x49] sm:$0xff] %vm590, %v507
      %598 = vst.msk [vmem:[%s360 + $0x51] sm:$0xff] %vm590, %v509
      %599 = vst.msk [vmem:[%s360 + $0x61] sm:$0xff] %vm590, %v511
      %600 = vst.msk [vmem:[%s360 + $0x69] sm:$0xff] %vm590, %v513
      %601 = vst.msk [vmem:[%s360 + $0x79] sm:$0xff] %vm590, %v515
      %602 = vst.msk [vmem:[%s360 + $0x81] sm:$0xff] %vm590, %v517
      %603 = vst.msk [vmem:[%s360 + $0x91] sm:$0xff] %vm590, %v519
      %604 = vst.msk [vmem:[%s360 + $0x99] sm:$0xff] %vm590, %v521
      %605 = vst.msk [vmem:[%s360 + $0xa9] sm:$0xff] %vm590, %v523
      %606 = vst.msk [vmem:[%s360 + $0xb1] sm:$0xff] %vm590, %v525
      %607 = vst.msk [vmem:[%s360 + $0xc1] sm:$0xff] %vm590, %v527
      %608 = vst.msk [vmem:[%s360 + $0xc9] sm:$0xff] %vm590, %v529
      %609 = vst.msk [vmem:[%s360 + $0xd9] sm:$0xff] %vm590, %v531
      %610 = vst.msk [vmem:[%s360 + $0xe1] sm:$0xff] %vm590, %v533
      %611 = vst.msk [vmem:[%s360 + $0xf1] sm:$0xff] %vm590, %v535
      %612 = vst.msk [vmem:[%s360 + $0xf9] sm:$0xff] %vm590, %v537
      %613 = vst.msk [vmem:[%s360 + $0x109] sm:$0xff] %vm590, %v539
      %614 = vst.msk [vmem:[%s360 + $0x111] sm:$0xff] %vm590, %v541
      %615 = vst.msk [vmem:[%s360 + $0x121] sm:$0xff] %vm590, %v543
      %616 = vst.msk [vmem:[%s360 + $0x129] sm:$0xff] %vm590, %v545
      %617 = vst.msk [vmem:[%s360 + $0x139] sm:$0xff] %vm590, %v547
      %618 = vst.msk [vmem:[%s360 + $0x141] sm:$0xff] %vm590, %v549
      %619 = vst.msk [vmem:[%s360 + $0x151] sm:$0xff] %vm590, %v551
      %620 = vst.msk [vmem:[%s360 + $0x159] sm:$0xff] %vm590, %v553
      %621 = vst.msk [vmem:[%s360 + $0x169] sm:$0xff] %vm590, %v555
      %622 = vst.msk [vmem:[%s360 + $0x171] sm:$0xff] %vm590, %v557
      %v623 = vld [vmem:[#allocation2] sm:$0xff]
      %v624 = vld [vmem:[#allocation2 + $0x8] sm:$0xff]
      %v625 = vld [vmem:[#allocation2 + $0x18] sm:$0xff]
      %v626 = vld [vmem:[#allocation2 + $0x20] sm:$0xff]
      %v627 = vld [vmem:[#allocation2 + $0x30] sm:$0xff]
      %v628 = vld [vmem:[#allocation2 + $0x38] sm:$0xff]
      %v629 = vld [vmem:[#allocation2 + $0x48] sm:$0xff]
      %v630 = vld [vmem:[#allocation2 + $0x50] sm:$0xff]
      %v631 = vld [vmem:[#allocation2 + $0x60] sm:$0xff]
      %v632 = vld [vmem:[#allocation2 + $0x68] sm:$0xff]
      %v633 = vld [vmem:[#allocation2 + $0x78] sm:$0xff]
      %v634 = vld [vmem:[#allocation2 + $0x80] sm:$0xff]
      %v635 = vld [vmem:[#allocation2 + $0x90] sm:$0xff]
      %v636 = vld [vmem:[#allocation2 + $0x98] sm:$0xff]
      %v637 = vld [vmem:[#allocation2 + $0xa8] sm:$0xff]
      %v638 = vld [vmem:[#allocation2 + $0xb0] sm:$0xff]
      %v639 = vld [vmem:[#allocation2 + $0xc0] sm:$0xff]
      %v640 = vld [vmem:[#allocation2 + $0xc8] sm:$0xff]
      %v641 = vld [vmem:[#allocation2 + $0xd8] sm:$0xff]
      %v642 = vld [vmem:[#allocation2 + $0xe0] sm:$0xff]
      %v643 = vld [vmem:[#allocation2 + $0xf0] sm:$0xff]
      %v644 = vld [vmem:[#allocation2 + $0xf8] sm:$0xff]
      %v645 = vld [vmem:[#allocation2 + $0x108] sm:$0xff]
      %v646 = vld [vmem:[#allocation2 + $0x110] sm:$0xff]
      %v647 = vld [vmem:[#allocation2 + $0x120] sm:$0xff]
      %v648 = vld [vmem:[#allocation2 + $0x128] sm:$0xff]
      %v649 = vld [vmem:[#allocation2 + $0x138] sm:$0xff]
      %v650 = vld [vmem:[#allocation2 + $0x140] sm:$0xff]
      %v651 = vld [vmem:[#allocation2 + $0x150] sm:$0xff]
      %v652 = vld [vmem:[#allocation2 + $0x158] sm:$0xff]
      %v653 = vld [vmem:[#allocation2 + $0x168] sm:$0xff]
      %v654 = vld [vmem:[#allocation2 + $0x170] sm:$0xff]
      %v655 = vld [vmem:[#allocation2 + $0x1] sm:$0xff]
      %v656 = vld [vmem:[#allocation2 + $0x9] sm:$0xff]
      %v657 = vld [vmem:[#allocation2 + $0x19] sm:$0xff]
      %v658 = vld [vmem:[#allocation2 + $0x21] sm:$0xff]
      %v659 = vld [vmem:[#allocation2 + $0x31] sm:$0xff]
      %v660 = vld [vmem:[#allocation2 + $0x39] sm:$0xff]
      %v661 = vld [vmem:[#allocation2 + $0x49] sm:$0xff]
      %v662 = vld [vmem:[#allocation2 + $0x51] sm:$0xff]
      %v663 = vld [vmem:[#allocation2 + $0x61] sm:$0xff]
      %v664 = vld [vmem:[#allocation2 + $0x69] sm:$0xff]
      %v665 = vld [vmem:[#allocation2 + $0x79] sm:$0xff]
      %v666 = vld [vmem:[#allocation2 + $0x81] sm:$0xff]
      %v667 = vld [vmem:[#allocation2 + $0x91] sm:$0xff]
      %v668 = vld [vmem:[#allocation2 + $0x99] sm:$0xff]
      %v669 = vld [vmem:[#allocation2 + $0xa9] sm:$0xff]
      %v670 = vld [vmem:[#allocation2 + $0xb1] sm:$0xff]
      %v671 = vld [vmem:[#allocation2 + $0xc1] sm:$0xff]
      %v672 = vld [vmem:[#allocation2 + $0xc9] sm:$0xff]
      %v673 = vld [vmem:[#allocation2 + $0xd9] sm:$0xff]
      %v674 = vld [vmem:[#allocation2 + $0xe1] sm:$0xff]
      %v675 = vld [vmem:[#allocation2 + $0xf1] sm:$0xff]
      %v676 = vld [vmem:[#allocation2 + $0xf9] sm:$0xff]
      %v677 = vld [vmem:[#allocation2 + $0x109] sm:$0xff]
      %v678 = vld [vmem:[#allocation2 + $0x111] sm:$0xff]
      %v679 = vld [vmem:[#allocation2 + $0x121] sm:$0xff]
      %v680 = vld [vmem:[#allocation2 + $0x129] sm:$0xff]
      %v681 = vld [vmem:[#allocation2 + $0x139] sm:$0xff]
      %v682 = vld [vmem:[#allocation2 + $0x141] sm:$0xff]
      %v683 = vld [vmem:[#allocation2 + $0x151] sm:$0xff]
      %v684 = vld [vmem:[#allocation2 + $0x159] sm:$0xff]
      %v685 = vld [vmem:[#allocation2 + $0x169] sm:$0xff]
      %v686 = vld [vmem:[#allocation2 + $0x171] sm:$0xff]
      %v687 = vld [vmem:[#allocation2 + $0x2] sm:$0xff]
      %v688 = vld [vmem:[#allocation2 + $0xa] sm:$0xff]
      %v689 = vld [vmem:[#allocation2 + $0x1a] sm:$0xff]
      %v690 = vld [vmem:[#allocation2 + $0x22] sm:$0xff]
      %v691 = vld [vmem:[#allocation2 + $0x32] sm:$0xff]
      %v692 = vld [vmem:[#allocation2 + $0x3a] sm:$0xff]
      %v693 = vld [vmem:[#allocation2 + $0x4a] sm:$0xff]
      %v694 = vld [vmem:[#allocation2 + $0x52] sm:$0xff]
      %v695 = vld [vmem:[#allocation2 + $0x62] sm:$0xff]
      %v696 = vld [vmem:[#allocation2 + $0x6a] sm:$0xff]
      %v697 = vld [vmem:[#allocation2 + $0x7a] sm:$0xff]
      %v698 = vld [vmem:[#allocation2 + $0x82] sm:$0xff]
      %v699 = vld [vmem:[#allocation2 + $0x92] sm:$0xff]
      %v700 = vld [vmem:[#allocation2 + $0x9a] sm:$0xff]
      %v701 = vld [vmem:[#allocation2 + $0xaa] sm:$0xff]
      %v702 = vld [vmem:[#allocation2 + $0xb2] sm:$0xff]
      %v703 = vld [vmem:[#allocation2 + $0xc2] sm:$0xff]
      %v704 = vld [vmem:[#allocation2 + $0xca] sm:$0xff]
      %v705 = vld [vmem:[#allocation2 + $0xda] sm:$0xff]
      %v706 = vld [vmem:[#allocation2 + $0xe2] sm:$0xff]
      %v707 = vld [vmem:[#allocation2 + $0xf2] sm:$0xff]
      %v708 = vld [vmem:[#allocation2 + $0xfa] sm:$0xff]
      %v709 = vld [vmem:[#allocation2 + $0x10a] sm:$0xff]
      %v710 = vld [vmem:[#allocation2 + $0x112] sm:$0xff]
      %v711 = vld [vmem:[#allocation2 + $0x122] sm:$0xff]
      %v712 = vld [vmem:[#allocation2 + $0x12a] sm:$0xff]
      %v713 = vld [vmem:[#allocation2 + $0x13a] sm:$0xff]
      %v714 = vld [vmem:[#allocation2 + $0x142] sm:$0xff]
      %v715 = vld [vmem:[#allocation2 + $0x152] sm:$0xff]
      %v716 = vld [vmem:[#allocation2 + $0x15a] sm:$0xff]
      %v717 = vld [vmem:[#allocation2 + $0x16a] sm:$0xff]
      %v718 = vld [vmem:[#allocation2 + $0x172] sm:$0xff]
      %v719 = vld [vmem:[%s360] sm:$0xff]
      %v720 = vld [vmem:[%s360 + $0x8] sm:$0xff]
      %v721 = vld [vmem:[%s360 + $0x18] sm:$0xff]
      %v722 = vld [vmem:[%s360 + $0x20] sm:$0xff]
      %v723 = vld [vmem:[%s360 + $0x30] sm:$0xff]
      %v724 = vld [vmem:[%s360 + $0x38] sm:$0xff]
      %v725 = vld [vmem:[%s360 + $0x48] sm:$0xff]
      %v726 = vld [vmem:[%s360 + $0x50] sm:$0xff]
      %v727 = vld [vmem:[%s360 + $0x60] sm:$0xff]
      %v728 = vld [vmem:[%s360 + $0x68] sm:$0xff]
      %v729 = vld [vmem:[%s360 + $0x78] sm:$0xff]
      %v730 = vld [vmem:[%s360 + $0x80] sm:$0xff]
      %v731 = vld [vmem:[%s360 + $0x90] sm:$0xff]
      %v732 = vld [vmem:[%s360 + $0x98] sm:$0xff]
      %v733 = vld [vmem:[%s360 + $0xa8] sm:$0xff]
      %v734 = vld [vmem:[%s360 + $0xb0] sm:$0xff]
      %v735 = vld [vmem:[%s360 + $0xc0] sm:$0xff]
      %v736 = vld [vmem:[%s360 + $0xc8] sm:$0xff]
      %v737 = vld [vmem:[%s360 + $0xd8] sm:$0xff]
      %v738 = vld [vmem:[%s360 + $0xe0] sm:$0xff]
      %v739 = vld [vmem:[%s360 + $0xf0] sm:$0xff]
      %v740 = vld [vmem:[%s360 + $0xf8] sm:$0xff]
      %v741 = vld [vmem:[%s360 + $0x108] sm:$0xff]
      %v742 = vld [vmem:[%s360 + $0x110] sm:$0xff]
      %v743 = vld [vmem:[%s360 + $0x120] sm:$0xff]
      %v744 = vld [vmem:[%s360 + $0x128] sm:$0xff]
      %v745 = vld [vmem:[%s360 + $0x138] sm:$0xff]
      %v746 = vld [vmem:[%s360 + $0x140] sm:$0xff]
      %v747 = vld [vmem:[%s360 + $0x150] sm:$0xff]
      %v748 = vld [vmem:[%s360 + $0x158] sm:$0xff]
      %v749 = vld [vmem:[%s360 + $0x168] sm:$0xff]
      %v750 = vld [vmem:[%s360 + $0x170] sm:$0xff]
      %v751 = vld [vmem:[%s360 + $0x1] sm:$0xff]
      %v752 = vld [vmem:[%s360 + $0x9] sm:$0xff]
      %v753 = vld [vmem:[%s360 + $0x19] sm:$0xff]
      %v754 = vld [vmem:[%s360 + $0x21] sm:$0xff]
      %v755 = vld [vmem:[%s360 + $0x31] sm:$0xff]
      %v756 = vld [vmem:[%s360 + $0x39] sm:$0xff]
      %v757 = vld [vmem:[%s360 + $0x49] sm:$0xff]
      %v758 = vld [vmem:[%s360 + $0x51] sm:$0xff]
      %v759 = vld [vmem:[%s360 + $0x61] sm:$0xff]
      %v760 = vld [vmem:[%s360 + $0x69] sm:$0xff]
      %v761 = vld [vmem:[%s360 + $0x79] sm:$0xff]
      %v762 = vld [vmem:[%s360 + $0x81] sm:$0xff]
      %v763 = vld [vmem:[%s360 + $0x91] sm:$0xff]
      %v764 = vld [vmem:[%s360 + $0x99] sm:$0xff]
      %v765 = vld [vmem:[%s360 + $0xa9] sm:$0xff]
      %v766 = vld [vmem:[%s360 + $0xb1] sm:$0xff]
      %v767 = vld [vmem:[%s360 + $0xc1] sm:$0xff]
      %v768 = vld [vmem:[%s360 + $0xc9] sm:$0xff]
      %v769 = vld [vmem:[%s360 + $0xd9] sm:$0xff]
      %v770 = vld [vmem:[%s360 + $0xe1] sm:$0xff]
      %v771 = vld [vmem:[%s360 + $0xf1] sm:$0xff]
      %v772 = vld [vmem:[%s360 + $0xf9] sm:$0xff]
      %v773 = vld [vmem:[%s360 + $0x109] sm:$0xff]
      %v774 = vld [vmem:[%s360 + $0x111] sm:$0xff]
      %v775 = vld [vmem:[%s360 + $0x121] sm:$0xff]
      %v776 = vld [vmem:[%s360 + $0x129] sm:$0xff]
      %v777 = vld [vmem:[%s360 + $0x139] sm:$0xff]
      %v778 = vld [vmem:[%s360 + $0x141] sm:$0xff]
      %v779 = vld [vmem:[%s360 + $0x151] sm:$0xff]
      %v780 = vld [vmem:[%s360 + $0x159] sm:$0xff]
      %v781 = vld [vmem:[%s360 + $0x169] sm:$0xff]
      %v782 = vld [vmem:[%s360 + $0x171] sm:$0xff]
      %v783 = vld [vmem:[%s360 + $0x2] sm:$0xff]
      %v784 = vld [vmem:[%s360 + $0xa] sm:$0xff]
      %v785 = vld [vmem:[%s360 + $0x1a] sm:$0xff]
      %v786 = vld [vmem:[%s360 + $0x22] sm:$0xff]
      %v787 = vld [vmem:[%s360 + $0x32] sm:$0xff]
      %v788 = vld [vmem:[%s360 + $0x3a] sm:$0xff]
      %v789 = vld [vmem:[%s360 + $0x4a] sm:$0xff]
      %v790 = vld [vmem:[%s360 + $0x52] sm:$0xff]
      %v791 = vld [vmem:[%s360 + $0x62] sm:$0xff]
      %v792 = vld [vmem:[%s360 + $0x6a] sm:$0xff]
      %v793 = vld [vmem:[%s360 + $0x7a] sm:$0xff]
      %v794 = vld [vmem:[%s360 + $0x82] sm:$0xff]
      %v795 = vld [vmem:[%s360 + $0x92] sm:$0xff]
      %v796 = vld [vmem:[%s360 + $0x9a] sm:$0xff]
      %v797 = vld [vmem:[%s360 + $0xaa] sm:$0xff]
      %v798 = vld [vmem:[%s360 + $0xb2] sm:$0xff]
      %v799 = vld [vmem:[%s360 + $0xc2] sm:$0xff]
      %v800 = vld [vmem:[%s360 + $0xca] sm:$0xff]
      %v801 = vld [vmem:[%s360 + $0xda] sm:$0xff]
      %v802 = vld [vmem:[%s360 + $0xe2] sm:$0xff]
      %v803 = vld [vmem:[%s360 + $0xf2] sm:$0xff]
      %v804 = vld [vmem:[%s360 + $0xfa] sm:$0xff]
      %v805 = vld [vmem:[%s360 + $0x10a] sm:$0xff]
      %v806 = vld [vmem:[%s360 + $0x112] sm:$0xff]
      %v807 = vld [vmem:[%s360 + $0x122] sm:$0xff]
      %v808 = vld [vmem:[%s360 + $0x12a] sm:$0xff]
      %v809 = vld [vmem:[%s360 + $0x13a] sm:$0xff]
      %v810 = vld [vmem:[%s360 + $0x142] sm:$0xff]
      %v811 = vld [vmem:[%s360 + $0x152] sm:$0xff]
      %v812 = vld [vmem:[%s360 + $0x15a] sm:$0xff]
      %v813 = vld [vmem:[%s360 + $0x16a] sm:$0xff]
      %v814 = vld [vmem:[%s360 + $0x172] sm:$0xff]
      %s815 = scalar_lea.vmem [#allocation2], 48
      %v816 = vld [vmem:[%s815] sm:$0xff]
      %v817 = vld [vmem:[%s815 + $0x8] sm:$0xff]
      %v818 = vld [vmem:[%s815 + $0x18] sm:$0xff]
      %v819 = vld [vmem:[%s815 + $0x20] sm:$0xff]
      %v820 = vld [vmem:[%s815 + $0x30] sm:$0xff]
      %v821 = vld [vmem:[%s815 + $0x38] sm:$0xff]
      %v822 = vld [vmem:[%s815 + $0x48] sm:$0xff]
      %v823 = vld [vmem:[%s815 + $0x50] sm:$0xff]
      %v824 = vld [vmem:[%s815 + $0x60] sm:$0xff]
      %v825 = vld [vmem:[%s815 + $0x68] sm:$0xff]
      %v826 = vld [vmem:[%s815 + $0x78] sm:$0xff]
      %v827 = vld [vmem:[%s815 + $0x80] sm:$0xff]
      %v828 = vld [vmem:[%s815 + $0x90] sm:$0xff]
      %v829 = vld [vmem:[%s815 + $0x98] sm:$0xff]
      %v830 = vld [vmem:[%s815 + $0xa8] sm:$0xff]
      %v831 = vld [vmem:[%s815 + $0xb0] sm:$0xff]
      %v832 = vld [vmem:[%s815 + $0xc0] sm:$0xff]
      %v833 = vld [vmem:[%s815 + $0xc8] sm:$0xff]
      %v834 = vld [vmem:[%s815 + $0xd8] sm:$0xff]
      %v835 = vld [vmem:[%s815 + $0xe0] sm:$0xff]
      %v836 = vld [vmem:[%s815 + $0xf0] sm:$0xff]
      %v837 = vld [vmem:[%s815 + $0xf8] sm:$0xff]
      %v838 = vld [vmem:[%s815 + $0x108] sm:$0xff]
      %v839 = vld [vmem:[%s815 + $0x110] sm:$0xff]
      %v840 = vld [vmem:[%s815 + $0x120] sm:$0xff]
      %v841 = vld [vmem:[%s815 + $0x128] sm:$0xff]
      %v842 = vld [vmem:[%s815 + $0x138] sm:$0xff]
      %v843 = vld [vmem:[%s815 + $0x140] sm:$0xff]
      %v844 = vld [vmem:[%s815 + $0x150] sm:$0xff]
      %v845 = vld [vmem:[%s815 + $0x158] sm:$0xff]
      %v846 = vld [vmem:[%s815 + $0x168] sm:$0xff]
      %v847 = vld [vmem:[%s815 + $0x170] sm:$0xff]
      %v848 = vld [vmem:[%s815 + $0x1] sm:$0xff]
      %v849 = vld [vmem:[%s815 + $0x9] sm:$0xff]
      %v850 = vld [vmem:[%s815 + $0x19] sm:$0xff]
      %v851 = vld [vmem:[%s815 + $0x21] sm:$0xff]
      %v852 = vld [vmem:[%s815 + $0x31] sm:$0xff]
      %v853 = vld [vmem:[%s815 + $0x39] sm:$0xff]
      %v854 = vld [vmem:[%s815 + $0x49] sm:$0xff]
      %v855 = vld [vmem:[%s815 + $0x51] sm:$0xff]
      %v856 = vld [vmem:[%s815 + $0x61] sm:$0xff]
      %v857 = vld [vmem:[%s815 + $0x69] sm:$0xff]
      %v858 = vld [vmem:[%s815 + $0x79] sm:$0xff]
      %v859 = vld [vmem:[%s815 + $0x81] sm:$0xff]
      %v860 = vld [vmem:[%s815 + $0x91] sm:$0xff]
      %v861 = vld [vmem:[%s815 + $0x99] sm:$0xff]
      %v862 = vld [vmem:[%s815 + $0xa9] sm:$0xff]
      %v863 = vld [vmem:[%s815 + $0xb1] sm:$0xff]
      %v864 = vld [vmem:[%s815 + $0xc1] sm:$0xff]
      %v865 = vld [vmem:[%s815 + $0xc9] sm:$0xff]
      %v866 = vld [vmem:[%s815 + $0xd9] sm:$0xff]
      %v867 = vld [vmem:[%s815 + $0xe1] sm:$0xff]
      %v868 = vld [vmem:[%s815 + $0xf1] sm:$0xff]
      %v869 = vld [vmem:[%s815 + $0xf9] sm:$0xff]
      %v870 = vld [vmem:[%s815 + $0x109] sm:$0xff]
      %v871 = vld [vmem:[%s815 + $0x111] sm:$0xff]
      %v872 = vld [vmem:[%s815 + $0x121] sm:$0xff]
      %v873 = vld [vmem:[%s815 + $0x129] sm:$0xff]
      %v874 = vld [vmem:[%s815 + $0x139] sm:$0xff]
      %v875 = vld [vmem:[%s815 + $0x141] sm:$0xff]
      %v876 = vld [vmem:[%s815 + $0x151] sm:$0xff]
      %v877 = vld [vmem:[%s815 + $0x159] sm:$0xff]
      %v878 = vld [vmem:[%s815 + $0x169] sm:$0xff]
      %v879 = vld [vmem:[%s815 + $0x171] sm:$0xff]
      %v880 = vld [vmem:[%s815 + $0x2] sm:$0xff]
      %v881 = vld [vmem:[%s815 + $0xa] sm:$0xff]
      %v882 = vld [vmem:[%s815 + $0x1a] sm:$0xff]
      %v883 = vld [vmem:[%s815 + $0x22] sm:$0xff]
      %v884 = vld [vmem:[%s815 + $0x32] sm:$0xff]
      %v885 = vld [vmem:[%s815 + $0x3a] sm:$0xff]
      %v886 = vld [vmem:[%s815 + $0x4a] sm:$0xff]
      %v887 = vld [vmem:[%s815 + $0x52] sm:$0xff]
      %v888 = vld [vmem:[%s815 + $0x62] sm:$0xff]
      %v889 = vld [vmem:[%s815 + $0x6a] sm:$0xff]
      %v890 = vld [vmem:[%s815 + $0x7a] sm:$0xff]
      %v891 = vld [vmem:[%s815 + $0x82] sm:$0xff]
      %v892 = vld [vmem:[%s815 + $0x92] sm:$0xff]
      %v893 = vld [vmem:[%s815 + $0x9a] sm:$0xff]
      %v894 = vld [vmem:[%s815 + $0xaa] sm:$0xff]
      %v895 = vld [vmem:[%s815 + $0xb2] sm:$0xff]
      %v896 = vld [vmem:[%s815 + $0xc2] sm:$0xff]
      %v897 = vld [vmem:[%s815 + $0xca] sm:$0xff]
      %v898 = vld [vmem:[%s815 + $0xda] sm:$0xff]
      %v899 = vld [vmem:[%s815 + $0xe2] sm:$0xff]
      %v900 = vld [vmem:[%s815 + $0xf2] sm:$0xff]
      %v901 = vld [vmem:[%s815 + $0xfa] sm:$0xff]
      %v902 = vld [vmem:[%s815 + $0x10a] sm:$0xff]
      %v903 = vld [vmem:[%s815 + $0x112] sm:$0xff]
      %v904 = vld [vmem:[%s815 + $0x122] sm:$0xff]
      %v905 = vld [vmem:[%s815 + $0x12a] sm:$0xff]
      %v906 = vld [vmem:[%s815 + $0x13a] sm:$0xff]
      %v907 = vld [vmem:[%s815 + $0x142] sm:$0xff]
      %v908 = vld [vmem:[%s815 + $0x152] sm:$0xff]
      %v909 = vld [vmem:[%s815 + $0x15a] sm:$0xff]
      %v910 = vld [vmem:[%s815 + $0x16a] sm:$0xff]
      %v911 = vld [vmem:[%s815 + $0x172] sm:$0xff]
      %944 = vrot.lane.b32.xlu0 %v655, 8
      %v945 = vpop.permute.xlu0 %944
      %946 = vrot.lane.b32.xlu0 %v656, 8
      %v947 = vpop.permute.xlu0 %946
      %948 = vrot.lane.b32.xlu0 %v657, 8
      %v949 = vpop.permute.xlu0 %948
      %950 = vrot.lane.b32.xlu0 %v658, 8
      %v951 = vpop.permute.xlu0 %950
      %952 = vrot.lane.b32.xlu0 %v659, 8
      %v953 = vpop.permute.xlu0 %952
      %954 = vrot.lane.b32.xlu0 %v660, 8
      %v955 = vpop.permute.xlu0 %954
      %956 = vrot.lane.b32.xlu0 %v661, 8
      %v957 = vpop.permute.xlu0 %956
      %958 = vrot.lane.b32.xlu0 %v662, 8
      %v959 = vpop.permute.xlu0 %958
      %960 = vrot.lane.b32.xlu0 %v663, 8
      %v961 = vpop.permute.xlu0 %960
      %962 = vrot.lane.b32.xlu0 %v664, 8
      %v963 = vpop.permute.xlu0 %962
      %964 = vrot.lane.b32.xlu0 %v665, 8
      %v965 = vpop.permute.xlu0 %964
      %966 = vrot.lane.b32.xlu0 %v666, 8
      %v967 = vpop.permute.xlu0 %966
      %968 = vrot.lane.b32.xlu0 %v667, 8
      %v969 = vpop.permute.xlu0 %968
      %970 = vrot.lane.b32.xlu0 %v668, 8
      %v971 = vpop.permute.xlu0 %970
      %972 = vrot.lane.b32.xlu0 %v669, 8
      %v973 = vpop.permute.xlu0 %972
      %974 = vrot.lane.b32.xlu0 %v670, 8
      %v975 = vpop.permute.xlu0 %974
      %976 = vrot.lane.b32.xlu0 %v671, 8
      %v977 = vpop.permute.xlu0 %976
      %978 = vrot.lane.b32.xlu0 %v672, 8
      %v979 = vpop.permute.xlu0 %978
      %980 = vrot.lane.b32.xlu0 %v673, 8
      %v981 = vpop.permute.xlu0 %980
      %982 = vrot.lane.b32.xlu0 %v674, 8
      %v983 = vpop.permute.xlu0 %982
      %984 = vrot.lane.b32.xlu0 %v675, 8
      %v985 = vpop.permute.xlu0 %984
      %986 = vrot.lane.b32.xlu0 %v676, 8
      %v987 = vpop.permute.xlu0 %986
      %988 = vrot.lane.b32.xlu0 %v677, 8
      %v989 = vpop.permute.xlu0 %988
      %990 = vrot.lane.b32.xlu0 %v678, 8
      %v991 = vpop.permute.xlu0 %990
      %992 = vrot.lane.b32.xlu0 %v679, 8
      %v993 = vpop.permute.xlu0 %992
      %994 = vrot.lane.b32.xlu0 %v680, 8
      %v995 = vpop.permute.xlu0 %994
      %996 = vrot.lane.b32.xlu0 %v681, 8
      %v997 = vpop.permute.xlu0 %996
      %998 = vrot.lane.b32.xlu0 %v682, 8
      %v999 = vpop.permute.xlu0 %998
      %1000 = vrot.lane.b32.xlu0 %v683, 8
      %v1001 = vpop.permute.xlu0 %1000
      %1002 = vrot.lane.b32.xlu0 %v684, 8
      %v1003 = vpop.permute.xlu0 %1002
      %1004 = vrot.lane.b32.xlu0 %v685, 8
      %v1005 = vpop.permute.xlu0 %1004
      %1006 = vrot.lane.b32.xlu0 %v686, 8
      %v1007 = vpop.permute.xlu0 %1006
      %1072 = vrot.lane.b32.xlu0 %v687, 16
      %v1073 = vpop.permute.xlu0 %1072
      %1074 = vrot.lane.b32.xlu0 %v688, 16
      %v1075 = vpop.permute.xlu0 %1074
      %1076 = vrot.lane.b32.xlu0 %v689, 16
      %v1077 = vpop.permute.xlu0 %1076
      %1078 = vrot.lane.b32.xlu0 %v690, 16
      %v1079 = vpop.permute.xlu0 %1078
      %1080 = vrot.lane.b32.xlu0 %v691, 16
      %v1081 = vpop.permute.xlu0 %1080
      %1082 = vrot.lane.b32.xlu0 %v692, 16
      %v1083 = vpop.permute.xlu0 %1082
      %1084 = vrot.lane.b32.xlu0 %v693, 16
      %v1085 = vpop.permute.xlu0 %1084
      %1086 = vrot.lane.b32.xlu0 %v694, 16
      %v1087 = vpop.permute.xlu0 %1086
      %1088 = vrot.lane.b32.xlu0 %v695, 16
      %v1089 = vpop.permute.xlu0 %1088
      %1090 = vrot.lane.b32.xlu0 %v696, 16
      %v1091 = vpop.permute.xlu0 %1090
      %1092 = vrot.lane.b32.xlu0 %v697, 16
      %v1093 = vpop.permute.xlu0 %1092
      %1094 = vrot.lane.b32.xlu0 %v698, 16
      %v1095 = vpop.permute.xlu0 %1094
      %1096 = vrot.lane.b32.xlu0 %v699, 16
      %v1097 = vpop.permute.xlu0 %1096
      %1098 = vrot.lane.b32.xlu0 %v700, 16
      %v1099 = vpop.permute.xlu0 %1098
      %1100 = vrot.lane.b32.xlu0 %v701, 16
      %v1101 = vpop.permute.xlu0 %1100
      %1102 = vrot.lane.b32.xlu0 %v702, 16
      %v1103 = vpop.permute.xlu0 %1102
      %1104 = vrot.lane.b32.xlu0 %v703, 16
      %v1105 = vpop.permute.xlu0 %1104
      %1106 = vrot.lane.b32.xlu0 %v704, 16
      %v1107 = vpop.permute.xlu0 %1106
      %1108 = vrot.lane.b32.xlu0 %v705, 16
      %v1109 = vpop.permute.xlu0 %1108
      %1110 = vrot.lane.b32.xlu0 %v706, 16
      %v1111 = vpop.permute.xlu0 %1110
      %1112 = vrot.lane.b32.xlu0 %v707, 16
      %v1113 = vpop.permute.xlu0 %1112
      %1114 = vrot.lane.b32.xlu0 %v708, 16
      %v1115 = vpop.permute.xlu0 %1114
      %1116 = vrot.lane.b32.xlu0 %v709, 16
      %v1117 = vpop.permute.xlu0 %1116
      %1118 = vrot.lane.b32.xlu0 %v710, 16
      %v1119 = vpop.permute.xlu0 %1118
      %1120 = vrot.lane.b32.xlu0 %v711, 16
      %v1121 = vpop.permute.xlu0 %1120
      %1122 = vrot.lane.b32.xlu0 %v712, 16
      %v1123 = vpop.permute.xlu0 %1122
      %1124 = vrot.lane.b32.xlu0 %v713, 16
      %v1125 = vpop.permute.xlu0 %1124
      %1126 = vrot.lane.b32.xlu0 %v714, 16
      %v1127 = vpop.permute.xlu0 %1126
      %1128 = vrot.lane.b32.xlu0 %v715, 16
      %v1129 = vpop.permute.xlu0 %1128
      %1130 = vrot.lane.b32.xlu0 %v716, 16
      %v1131 = vpop.permute.xlu0 %1130
      %1132 = vrot.lane.b32.xlu0 %v717, 16
      %v1133 = vpop.permute.xlu0 %1132
      %1134 = vrot.lane.b32.xlu0 %v718, 16
      %v1135 = vpop.permute.xlu0 %1134
      %1200 = vrot.lane.b32.xlu0 %v719, 24
      %v1201 = vpop.permute.xlu0 %1200
      %1202 = vrot.lane.b32.xlu0 %v720, 24
      %v1203 = vpop.permute.xlu0 %1202
      %1204 = vrot.lane.b32.xlu0 %v721, 24
      %v1205 = vpop.permute.xlu0 %1204
      %1206 = vrot.lane.b32.xlu0 %v722, 24
      %v1207 = vpop.permute.xlu0 %1206
      %1208 = vrot.lane.b32.xlu0 %v723, 24
      %v1209 = vpop.permute.xlu0 %1208
      %1210 = vrot.lane.b32.xlu0 %v724, 24
      %v1211 = vpop.permute.xlu0 %1210
      %1212 = vrot.lane.b32.xlu0 %v725, 24
      %v1213 = vpop.permute.xlu0 %1212
      %1214 = vrot.lane.b32.xlu0 %v726, 24
      %v1215 = vpop.permute.xlu0 %1214
      %1216 = vrot.lane.b32.xlu0 %v727, 24
      %v1217 = vpop.permute.xlu0 %1216
      %1218 = vrot.lane.b32.xlu0 %v728, 24
      %v1219 = vpop.permute.xlu0 %1218
      %1220 = vrot.lane.b32.xlu0 %v729, 24
      %v1221 = vpop.permute.xlu0 %1220
      %1222 = vrot.lane.b32.xlu0 %v730, 24
      %v1223 = vpop.permute.xlu0 %1222
      %1224 = vrot.lane.b32.xlu0 %v731, 24
      %v1225 = vpop.permute.xlu0 %1224
      %1226 = vrot.lane.b32.xlu0 %v732, 24
      %v1227 = vpop.permute.xlu0 %1226
      %1228 = vrot.lane.b32.xlu0 %v733, 24
      %v1229 = vpop.permute.xlu0 %1228
      %1230 = vrot.lane.b32.xlu0 %v734, 24
      %v1231 = vpop.permute.xlu0 %1230
      %1232 = vrot.lane.b32.xlu0 %v735, 24
      %v1233 = vpop.permute.xlu0 %1232
      %1234 = vrot.lane.b32.xlu0 %v736, 24
      %v1235 = vpop.permute.xlu0 %1234
      %1236 = vrot.lane.b32.xlu0 %v737, 24
      %v1237 = vpop.permute.xlu0 %1236
      %1238 = vrot.lane.b32.xlu0 %v738, 24
      %v1239 = vpop.permute.xlu0 %1238
      %1240 = vrot.lane.b32.xlu0 %v739, 24
      %v1241 = vpop.permute.xlu0 %1240
      %1242 = vrot.lane.b32.xlu0 %v740, 24
      %v1243 = vpop.permute.xlu0 %1242
      %1244 = vrot.lane.b32.xlu0 %v741, 24
      %v1245 = vpop.permute.xlu0 %1244
      %1246 = vrot.lane.b32.xlu0 %v742, 24
      %v1247 = vpop.permute.xlu0 %1246
      %1248 = vrot.lane.b32.xlu0 %v743, 24
      %v1249 = vpop.permute.xlu0 %1248
      %1250 = vrot.lane.b32.xlu0 %v744, 24
      %v1251 = vpop.permute.xlu0 %1250
      %1252 = vrot.lane.b32.xlu0 %v745, 24
      %v1253 = vpop.permute.xlu0 %1252
      %1254 = vrot.lane.b32.xlu0 %v746, 24
      %v1255 = vpop.permute.xlu0 %1254
      %1256 = vrot.lane.b32.xlu0 %v747, 24
      %v1257 = vpop.permute.xlu0 %1256
      %1258 = vrot.lane.b32.xlu0 %v748, 24
      %v1259 = vpop.permute.xlu0 %1258
      %1260 = vrot.lane.b32.xlu0 %v749, 24
      %v1261 = vpop.permute.xlu0 %1260
      %1262 = vrot.lane.b32.xlu0 %v750, 24
      %v1263 = vpop.permute.xlu0 %1262
      %1328 = vrot.lane.b32.xlu0 %v751, 32
      %v1329 = vpop.permute.xlu0 %1328
      %1330 = vrot.lane.b32.xlu0 %v752, 32
      %v1331 = vpop.permute.xlu0 %1330
      %1332 = vrot.lane.b32.xlu0 %v753, 32
      %v1333 = vpop.permute.xlu0 %1332
      %1334 = vrot.lane.b32.xlu0 %v754, 32
      %v1335 = vpop.permute.xlu0 %1334
      %1336 = vrot.lane.b32.xlu0 %v755, 32
      %v1337 = vpop.permute.xlu0 %1336
      %1338 = vrot.lane.b32.xlu0 %v756, 32
      %v1339 = vpop.permute.xlu0 %1338
      %1340 = vrot.lane.b32.xlu0 %v757, 32
      %v1341 = vpop.permute.xlu0 %1340
      %1342 = vrot.lane.b32.xlu0 %v758, 32
      %v1343 = vpop.permute.xlu0 %1342
      %1344 = vrot.lane.b32.xlu0 %v759, 32
      %v1345 = vpop.permute.xlu0 %1344
      %1346 = vrot.lane.b32.xlu0 %v760, 32
      %v1347 = vpop.permute.xlu0 %1346
      %1348 = vrot.lane.b32.xlu0 %v761, 32
      %v1349 = vpop.permute.xlu0 %1348
      %1350 = vrot.lane.b32.xlu0 %v762, 32
      %v1351 = vpop.permute.xlu0 %1350
      %1352 = vrot.lane.b32.xlu0 %v763, 32
      %v1353 = vpop.permute.xlu0 %1352
      %1354 = vrot.lane.b32.xlu0 %v764, 32
      %v1355 = vpop.permute.xlu0 %1354
      %1356 = vrot.lane.b32.xlu0 %v765, 32
      %v1357 = vpop.permute.xlu0 %1356
      %1358 = vrot.lane.b32.xlu0 %v766, 32
      %v1359 = vpop.permute.xlu0 %1358
      %1360 = vrot.lane.b32.xlu0 %v767, 32
      %v1361 = vpop.permute.xlu0 %1360
      %1362 = vrot.lane.b32.xlu0 %v768, 32
      %v1363 = vpop.permute.xlu0 %1362
      %1364 = vrot.lane.b32.xlu0 %v769, 32
      %v1365 = vpop.permute.xlu0 %1364
      %1366 = vrot.lane.b32.xlu0 %v770, 32
      %v1367 = vpop.permute.xlu0 %1366
      %1368 = vrot.lane.b32.xlu0 %v771, 32
      %v1369 = vpop.permute.xlu0 %1368
      %1370 = vrot.lane.b32.xlu0 %v772, 32
      %v1371 = vpop.permute.xlu0 %1370
      %1372 = vrot.lane.b32.xlu0 %v773, 32
      %v1373 = vpop.permute.xlu0 %1372
      %1374 = vrot.lane.b32.xlu0 %v774, 32
      %v1375 = vpop.permute.xlu0 %1374
      %1376 = vrot.lane.b32.xlu0 %v775, 32
      %v1377 = vpop.permute.xlu0 %1376
      %1378 = vrot.lane.b32.xlu0 %v776, 32
      %v1379 = vpop.permute.xlu0 %1378
      %1380 = vrot.lane.b32.xlu0 %v777, 32
      %v1381 = vpop.permute.xlu0 %1380
      %1382 = vrot.lane.b32.xlu0 %v778, 32
      %v1383 = vpop.permute.xlu0 %1382
      %1384 = vrot.lane.b32.xlu0 %v779, 32
      %v1385 = vpop.permute.xlu0 %1384
      %1386 = vrot.lane.b32.xlu0 %v780, 32
      %v1387 = vpop.permute.xlu0 %1386
      %1388 = vrot.lane.b32.xlu0 %v781, 32
      %v1389 = vpop.permute.xlu0 %1388
      %1390 = vrot.lane.b32.xlu0 %v782, 32
      %v1391 = vpop.permute.xlu0 %1390
      %1456 = vrot.lane.b32.xlu0 %v783, 40
      %v1457 = vpop.permute.xlu0 %1456
      %1458 = vrot.lane.b32.xlu0 %v784, 40
      %v1459 = vpop.permute.xlu0 %1458
      %1460 = vrot.lane.b32.xlu0 %v785, 40
      %v1461 = vpop.permute.xlu0 %1460
      %1462 = vrot.lane.b32.xlu0 %v786, 40
      %v1463 = vpop.permute.xlu0 %1462
      %1464 = vrot.lane.b32.xlu0 %v787, 40
      %v1465 = vpop.permute.xlu0 %1464
      %1466 = vrot.lane.b32.xlu0 %v788, 40
      %v1467 = vpop.permute.xlu0 %1466
      %1468 = vrot.lane.b32.xlu0 %v789, 40
      %v1469 = vpop.permute.xlu0 %1468
      %1470 = vrot.lane.b32.xlu0 %v790, 40
      %v1471 = vpop.permute.xlu0 %1470
      %1472 = vrot.lane.b32.xlu0 %v791, 40
      %v1473 = vpop.permute.xlu0 %1472
      %1474 = vrot.lane.b32.xlu0 %v792, 40
      %v1475 = vpop.permute.xlu0 %1474
      %1476 = vrot.lane.b32.xlu0 %v793, 40
      %v1477 = vpop.permute.xlu0 %1476
      %1478 = vrot.lane.b32.xlu0 %v794, 40
      %v1479 = vpop.permute.xlu0 %1478
      %1480 = vrot.lane.b32.xlu0 %v795, 40
      %v1481 = vpop.permute.xlu0 %1480
      %1482 = vrot.lane.b32.xlu0 %v796, 40
      %v1483 = vpop.permute.xlu0 %1482
      %1484 = vrot.lane.b32.xlu0 %v797, 40
      %v1485 = vpop.permute.xlu0 %1484
      %1486 = vrot.lane.b32.xlu0 %v798, 40
      %v1487 = vpop.permute.xlu0 %1486
      %1488 = vrot.lane.b32.xlu0 %v799, 40
      %v1489 = vpop.permute.xlu0 %1488
      %1490 = vrot.lane.b32.xlu0 %v800, 40
      %v1491 = vpop.permute.xlu0 %1490
      %1492 = vrot.lane.b32.xlu0 %v801, 40
      %v1493 = vpop.permute.xlu0 %1492
      %1494 = vrot.lane.b32.xlu0 %v802, 40
      %v1495 = vpop.permute.xlu0 %1494
      %1496 = vrot.lane.b32.xlu0 %v803, 40
      %v1497 = vpop.permute.xlu0 %1496
      %1498 = vrot.lane.b32.xlu0 %v804, 40
      %v1499 = vpop.permute.xlu0 %1498
      %1500 = vrot.lane.b32.xlu0 %v805, 40
      %v1501 = vpop.permute.xlu0 %1500
      %1502 = vrot.lane.b32.xlu0 %v806, 40
      %v1503 = vpop.permute.xlu0 %1502
      %1504 = vrot.lane.b32.xlu0 %v807, 40
      %v1505 = vpop.permute.xlu0 %1504
      %1506 = vrot.lane.b32.xlu0 %v808, 40
      %v1507 = vpop.permute.xlu0 %1506
      %1508 = vrot.lane.b32.xlu0 %v809, 40
      %v1509 = vpop.permute.xlu0 %1508
      %1510 = vrot.lane.b32.xlu0 %v810, 40
      %v1511 = vpop.permute.xlu0 %1510
      %1512 = vrot.lane.b32.xlu0 %v811, 40
      %v1513 = vpop.permute.xlu0 %1512
      %1514 = vrot.lane.b32.xlu0 %v812, 40
      %v1515 = vpop.permute.xlu0 %1514
      %1516 = vrot.lane.b32.xlu0 %v813, 40
      %v1517 = vpop.permute.xlu0 %1516
      %1518 = vrot.lane.b32.xlu0 %v814, 40
      %v1519 = vpop.permute.xlu0 %1518
      %1584 = vrot.lane.b32.xlu0 %v816, 48
      %v1585 = vpop.permute.xlu0 %1584
      %1586 = vrot.lane.b32.xlu0 %v817, 48
      %v1587 = vpop.permute.xlu0 %1586
      %1588 = vrot.lane.b32.xlu0 %v818, 48
      %v1589 = vpop.permute.xlu0 %1588
      %1590 = vrot.lane.b32.xlu0 %v819, 48
      %v1591 = vpop.permute.xlu0 %1590
      %1592 = vrot.lane.b32.xlu0 %v820, 48
      %v1593 = vpop.permute.xlu0 %1592
      %1594 = vrot.lane.b32.xlu0 %v821, 48
      %v1595 = vpop.permute.xlu0 %1594
      %1596 = vrot.lane.b32.xlu0 %v822, 48
      %v1597 = vpop.permute.xlu0 %1596
      %1598 = vrot.lane.b32.xlu0 %v823, 48
      %v1599 = vpop.permute.xlu0 %1598
      %1600 = vrot.lane.b32.xlu0 %v824, 48
      %v1601 = vpop.permute.xlu0 %1600
      %1602 = vrot.lane.b32.xlu0 %v825, 48
      %v1603 = vpop.permute.xlu0 %1602
      %1604 = vrot.lane.b32.xlu0 %v826, 48
      %v1605 = vpop.permute.xlu0 %1604
      %1606 = vrot.lane.b32.xlu0 %v827, 48
      %v1607 = vpop.permute.xlu0 %1606
      %1608 = vrot.lane.b32.xlu0 %v828, 48
      %v1609 = vpop.permute.xlu0 %1608
      %1610 = vrot.lane.b32.xlu0 %v829, 48
      %v1611 = vpop.permute.xlu0 %1610
      %1612 = vrot.lane.b32.xlu0 %v830, 48
      %v1613 = vpop.permute.xlu0 %1612
      %1614 = vrot.lane.b32.xlu0 %v831, 48
      %v1615 = vpop.permute.xlu0 %1614
      %1616 = vrot.lane.b32.xlu0 %v832, 48
      %v1617 = vpop.permute.xlu0 %1616
      %1618 = vrot.lane.b32.xlu0 %v833, 48
      %v1619 = vpop.permute.xlu0 %1618
      %1620 = vrot.lane.b32.xlu0 %v834, 48
      %v1621 = vpop.permute.xlu0 %1620
      %1622 = vrot.lane.b32.xlu0 %v835, 48
      %v1623 = vpop.permute.xlu0 %1622
      %1624 = vrot.lane.b32.xlu0 %v836, 48
      %v1625 = vpop.permute.xlu0 %1624
      %1626 = vrot.lane.b32.xlu0 %v837, 48
      %v1627 = vpop.permute.xlu0 %1626
      %1628 = vrot.lane.b32.xlu0 %v838, 48
      %v1629 = vpop.permute.xlu0 %1628
      %1630 = vrot.lane.b32.xlu0 %v839, 48
      %v1631 = vpop.permute.xlu0 %1630
      %1632 = vrot.lane.b32.xlu0 %v840, 48
      %v1633 = vpop.permute.xlu0 %1632
      %1634 = vrot.lane.b32.xlu0 %v841, 48
      %v1635 = vpop.permute.xlu0 %1634
      %1636 = vrot.lane.b32.xlu0 %v842, 48
      %v1637 = vpop.permute.xlu0 %1636
      %1638 = vrot.lane.b32.xlu0 %v843, 48
      %v1639 = vpop.permute.xlu0 %1638
      %1640 = vrot.lane.b32.xlu0 %v844, 48
      %v1641 = vpop.permute.xlu0 %1640
      %1642 = vrot.lane.b32.xlu0 %v845, 48
      %v1643 = vpop.permute.xlu0 %1642
      %1644 = vrot.lane.b32.xlu0 %v846, 48
      %v1645 = vpop.permute.xlu0 %1644
      %1646 = vrot.lane.b32.xlu0 %v847, 48
      %v1647 = vpop.permute.xlu0 %1646
      %1712 = vrot.lane.b32.xlu0 %v848, 56
      %v1713 = vpop.permute.xlu0 %1712
      %1714 = vrot.lane.b32.xlu0 %v849, 56
      %v1715 = vpop.permute.xlu0 %1714
      %1716 = vrot.lane.b32.xlu0 %v850, 56
      %v1717 = vpop.permute.xlu0 %1716
      %1718 = vrot.lane.b32.xlu0 %v851, 56
      %v1719 = vpop.permute.xlu0 %1718
      %1720 = vrot.lane.b32.xlu0 %v852, 56
      %v1721 = vpop.permute.xlu0 %1720
      %1722 = vrot.lane.b32.xlu0 %v853, 56
      %v1723 = vpop.permute.xlu0 %1722
      %1724 = vrot.lane.b32.xlu0 %v854, 56
      %v1725 = vpop.permute.xlu0 %1724
      %1726 = vrot.lane.b32.xlu0 %v855, 56
      %v1727 = vpop.permute.xlu0 %1726
      %1728 = vrot.lane.b32.xlu0 %v856, 56
      %v1729 = vpop.permute.xlu0 %1728
      %1730 = vrot.lane.b32.xlu0 %v857, 56
      %v1731 = vpop.permute.xlu0 %1730
      %1732 = vrot.lane.b32.xlu0 %v858, 56
      %v1733 = vpop.permute.xlu0 %1732
      %1734 = vrot.lane.b32.xlu0 %v859, 56
      %v1735 = vpop.permute.xlu0 %1734
      %1736 = vrot.lane.b32.xlu0 %v860, 56
      %v1737 = vpop.permute.xlu0 %1736
      %1738 = vrot.lane.b32.xlu0 %v861, 56
      %v1739 = vpop.permute.xlu0 %1738
      %1740 = vrot.lane.b32.xlu0 %v862, 56
      %v1741 = vpop.permute.xlu0 %1740
      %1742 = vrot.lane.b32.xlu0 %v863, 56
      %v1743 = vpop.permute.xlu0 %1742
      %1744 = vrot.lane.b32.xlu0 %v864, 56
      %v1745 = vpop.permute.xlu0 %1744
      %1746 = vrot.lane.b32.xlu0 %v865, 56
      %v1747 = vpop.permute.xlu0 %1746
      %1748 = vrot.lane.b32.xlu0 %v866, 56
      %v1749 = vpop.permute.xlu0 %1748
      %1750 = vrot.lane.b32.xlu0 %v867, 56
      %v1751 = vpop.permute.xlu0 %1750
      %1752 = vrot.lane.b32.xlu0 %v868, 56
      %v1753 = vpop.permute.xlu0 %1752
      %1754 = vrot.lane.b32.xlu0 %v869, 56
      %v1755 = vpop.permute.xlu0 %1754
      %1756 = vrot.lane.b32.xlu0 %v870, 56
      %v1757 = vpop.permute.xlu0 %1756
      %1758 = vrot.lane.b32.xlu0 %v871, 56
      %v1759 = vpop.permute.xlu0 %1758
      %1760 = vrot.lane.b32.xlu0 %v872, 56
      %v1761 = vpop.permute.xlu0 %1760
      %1762 = vrot.lane.b32.xlu0 %v873, 56
      %v1763 = vpop.permute.xlu0 %1762
      %1764 = vrot.lane.b32.xlu0 %v874, 56
      %v1765 = vpop.permute.xlu0 %1764
      %1766 = vrot.lane.b32.xlu0 %v875, 56
      %v1767 = vpop.permute.xlu0 %1766
      %1768 = vrot.lane.b32.xlu0 %v876, 56
      %v1769 = vpop.permute.xlu0 %1768
      %1770 = vrot.lane.b32.xlu0 %v877, 56
      %v1771 = vpop.permute.xlu0 %1770
      %1772 = vrot.lane.b32.xlu0 %v878, 56
      %v1773 = vpop.permute.xlu0 %1772
      %1774 = vrot.lane.b32.xlu0 %v879, 56
      %v1775 = vpop.permute.xlu0 %1774
      %1840 = vrot.lane.b32.xlu0 %v880, 64
      %v1841 = vpop.permute.xlu0 %1840
      %1842 = vrot.lane.b32.xlu0 %v881, 64
      %v1843 = vpop.permute.xlu0 %1842
      %1844 = vrot.lane.b32.xlu0 %v882, 64
      %v1845 = vpop.permute.xlu0 %1844
      %1846 = vrot.lane.b32.xlu0 %v883, 64
      %v1847 = vpop.permute.xlu0 %1846
      %1848 = vrot.lane.b32.xlu0 %v884, 64
      %v1849 = vpop.permute.xlu0 %1848
      %1850 = vrot.lane.b32.xlu0 %v885, 64
      %v1851 = vpop.permute.xlu0 %1850
      %1852 = vrot.lane.b32.xlu0 %v886, 64
      %v1853 = vpop.permute.xlu0 %1852
      %1854 = vrot.lane.b32.xlu0 %v887, 64
      %v1855 = vpop.permute.xlu0 %1854
      %1856 = vrot.lane.b32.xlu0 %v888, 64
      %v1857 = vpop.permute.xlu0 %1856
      %1858 = vrot.lane.b32.xlu0 %v889, 64
      %v1859 = vpop.permute.xlu0 %1858
      %1860 = vrot.lane.b32.xlu0 %v890, 64
      %v1861 = vpop.permute.xlu0 %1860
      %1862 = vrot.lane.b32.xlu0 %v891, 64
      %v1863 = vpop.permute.xlu0 %1862
      %1864 = vrot.lane.b32.xlu0 %v892, 64
      %v1865 = vpop.permute.xlu0 %1864
      %1866 = vrot.lane.b32.xlu0 %v893, 64
      %v1867 = vpop.permute.xlu0 %1866
      %1868 = vrot.lane.b32.xlu0 %v894, 64
      %v1869 = vpop.permute.xlu0 %1868
      %1870 = vrot.lane.b32.xlu0 %v895, 64
      %v1871 = vpop.permute.xlu0 %1870
      %1872 = vrot.lane.b32.xlu0 %v896, 64
      %v1873 = vpop.permute.xlu0 %1872
      %1874 = vrot.lane.b32.xlu0 %v897, 64
      %v1875 = vpop.permute.xlu0 %1874
      %1876 = vrot.lane.b32.xlu0 %v898, 64
      %v1877 = vpop.permute.xlu0 %1876
      %1878 = vrot.lane.b32.xlu0 %v899, 64
      %v1879 = vpop.permute.xlu0 %1878
      %1880 = vrot.lane.b32.xlu0 %v900, 64
      %v1881 = vpop.permute.xlu0 %1880
      %1882 = vrot.lane.b32.xlu0 %v901, 64
      %v1883 = vpop.permute.xlu0 %1882
      %1884 = vrot.lane.b32.xlu0 %v902, 64
      %v1885 = vpop.permute.xlu0 %1884
      %1886 = vrot.lane.b32.xlu0 %v903, 64
      %v1887 = vpop.permute.xlu0 %1886
      %1888 = vrot.lane.b32.xlu0 %v904, 64
      %v1889 = vpop.permute.xlu0 %1888
      %1890 = vrot.lane.b32.xlu0 %v905, 64
      %v1891 = vpop.permute.xlu0 %1890
      %1892 = vrot.lane.b32.xlu0 %v906, 64
      %v1893 = vpop.permute.xlu0 %1892
      %1894 = vrot.lane.b32.xlu0 %v907, 64
      %v1895 = vpop.permute.xlu0 %1894
      %1896 = vrot.lane.b32.xlu0 %v908, 64
      %v1897 = vpop.permute.xlu0 %1896
      %1898 = vrot.lane.b32.xlu0 %v909, 64
      %v1899 = vpop.permute.xlu0 %1898
      %1900 = vrot.lane.b32.xlu0 %v910, 64
      %v1901 = vpop.permute.xlu0 %1900
      %1902 = vrot.lane.b32.xlu0 %v911, 64
      %v1903 = vpop.permute.xlu0 %1902
      %v1936 = vsel %vm272, %v623, %v945
      %v1937 = vsel %vm272, %v624, %v947
      %v1938 = vsel %vm272, %v625, %v949
      %v1939 = vsel %vm272, %v626, %v951
      %v1940 = vsel %vm272, %v627, %v953
      %v1941 = vsel %vm272, %v628, %v955
      %v1942 = vsel %vm272, %v629, %v957
      %v1943 = vsel %vm272, %v630, %v959
      %v1944 = vsel %vm272, %v631, %v961
      %v1945 = vsel %vm272, %v632, %v963
      %v1946 = vsel %vm272, %v633, %v965
      %v1947 = vsel %vm272, %v634, %v967
      %v1948 = vsel %vm272, %v635, %v969
      %v1949 = vsel %vm272, %v636, %v971
      %v1950 = vsel %vm272, %v637, %v973
      %v1951 = vsel %vm272, %v638, %v975
      %v1952 = vsel %vm272, %v639, %v977
      %v1953 = vsel %vm272, %v640, %v979
      %v1954 = vsel %vm272, %v641, %v981
      %v1955 = vsel %vm272, %v642, %v983
      %v1956 = vsel %vm272, %v643, %v985
      %v1957 = vsel %vm272, %v644, %v987
      %v1958 = vsel %vm272, %v645, %v989
      %v1959 = vsel %vm272, %v646, %v991
      %v1960 = vsel %vm272, %v647, %v993
      %v1961 = vsel %vm272, %v648, %v995
      %v1962 = vsel %vm272, %v649, %v997
      %v1963 = vsel %vm272, %v650, %v999
      %v1964 = vsel %vm272, %v651, %v1001
      %v1965 = vsel %vm272, %v652, %v1003
      %v1966 = vsel %vm272, %v653, %v1005
      %v1967 = vsel %vm272, %v654, %v1007
      %vm1968 = vcmask 130048
      %v1969 = vsel %vm1968, %v1936, %v1073
      %v1970 = vsel %vm1968, %v1937, %v1075
      %v1971 = vsel %vm1968, %v1938, %v1077
      %v1972 = vsel %vm1968, %v1939, %v1079
      %v1973 = vsel %vm1968, %v1940, %v1081
      %v1974 = vsel %vm1968, %v1941, %v1083
      %v1975 = vsel %vm1968, %v1942, %v1085
      %v1976 = vsel %vm1968, %v1943, %v1087
      %v1977 = vsel %vm1968, %v1944, %v1089
      %v1978 = vsel %vm1968, %v1945, %v1091
      %v1979 = vsel %vm1968, %v1946, %v1093
      %v1980 = vsel %vm1968, %v1947, %v1095
      %v1981 = vsel %vm1968, %v1948, %v1097
      %v1982 = vsel %vm1968, %v1949, %v1099
      %v1983 = vsel %vm1968, %v1950, %v1101
      %v1984 = vsel %vm1968, %v1951, %v1103
      %v1985 = vsel %vm1968, %v1952, %v1105
      %v1986 = vsel %vm1968, %v1953, %v1107
      %v1987 = vsel %vm1968, %v1954, %v1109
      %v1988 = vsel %vm1968, %v1955, %v1111
      %v1989 = vsel %vm1968, %v1956, %v1113
      %v1990 = vsel %vm1968, %v1957, %v1115
      %v1991 = vsel %vm1968, %v1958, %v1117
      %v1992 = vsel %vm1968, %v1959, %v1119
      %v1993 = vsel %vm1968, %v1960, %v1121
      %v1994 = vsel %vm1968, %v1961, %v1123
      %v1995 = vsel %vm1968, %v1962, %v1125
      %v1996 = vsel %vm1968, %v1963, %v1127
      %v1997 = vsel %vm1968, %v1964, %v1129
      %v1998 = vsel %vm1968, %v1965, %v1131
      %v1999 = vsel %vm1968, %v1966, %v1133
      %v2000 = vsel %vm1968, %v1967, %v1135
      %vm2001 = vcmask 195584
      %v2002 = vsel %vm2001, %v1969, %v1201
      %v2003 = vsel %vm2001, %v1970, %v1203
      %v2004 = vsel %vm2001, %v1971, %v1205
      %v2005 = vsel %vm2001, %v1972, %v1207
      %v2006 = vsel %vm2001, %v1973, %v1209
      %v2007 = vsel %vm2001, %v1974, %v1211
      %v2008 = vsel %vm2001, %v1975, %v1213
      %v2009 = vsel %vm2001, %v1976, %v1215
      %v2010 = vsel %vm2001, %v1977, %v1217
      %v2011 = vsel %vm2001, %v1978, %v1219
      %v2012 = vsel %vm2001, %v1979, %v1221
      %v2013 = vsel %vm2001, %v1980, %v1223
      %v2014 = vsel %vm2001, %v1981, %v1225
      %v2015 = vsel %vm2001, %v1982, %v1227
      %v2016 = vsel %vm2001, %v1983, %v1229
      %v2017 = vsel %vm2001, %v1984, %v1231
      %v2018 = vsel %vm2001, %v1985, %v1233
      %v2019 = vsel %vm2001, %v1986, %v1235
      %v2020 = vsel %vm2001, %v1987, %v1237
      %v2021 = vsel %vm2001, %v1988, %v1239
      %v2022 = vsel %vm2001, %v1989, %v1241
      %v2023 = vsel %vm2001, %v1990, %v1243
      %v2024 = vsel %vm2001, %v1991, %v1245
      %v2025 = vsel %vm2001, %v1992, %v1247
      %v2026 = vsel %vm2001, %v1993, %v1249
      %v2027 = vsel %vm2001, %v1994, %v1251
      %v2028 = vsel %vm2001, %v1995, %v1253
      %v2029 = vsel %vm2001, %v1996, %v1255
      %v2030 = vsel %vm2001, %v1997, %v1257
      %v2031 = vsel %vm2001, %v1998, %v1259
      %v2032 = vsel %vm2001, %v1999, %v1261
      %v2033 = vsel %vm2001, %v2000, %v1263
      %vm2034 = vcmask 261120
      %v2035 = vsel %vm2034, %v2002, %v1329
      %v2036 = vsel %vm2034, %v2003, %v1331
      %v2037 = vsel %vm2034, %v2004, %v1333
      %v2038 = vsel %vm2034, %v2005, %v1335
      %v2039 = vsel %vm2034, %v2006, %v1337
      %v2040 = vsel %vm2034, %v2007, %v1339
      %v2041 = vsel %vm2034, %v2008, %v1341
      %v2042 = vsel %vm2034, %v2009, %v1343
      %v2043 = vsel %vm2034, %v2010, %v1345
      %v2044 = vsel %vm2034, %v2011, %v1347
      %v2045 = vsel %vm2034, %v2012, %v1349
      %v2046 = vsel %vm2034, %v2013, %v1351
      %v2047 = vsel %vm2034, %v2014, %v1353
      %v2048 = vsel %vm2034, %v2015, %v1355
      %v2049 = vsel %vm2034, %v2016, %v1357
      %v2050 = vsel %vm2034, %v2017, %v1359
      %v2051 = vsel %vm2034, %v2018, %v1361
      %v2052 = vsel %vm2034, %v2019, %v1363
      %v2053 = vsel %vm2034, %v2020, %v1365
      %v2054 = vsel %vm2034, %v2021, %v1367
      %v2055 = vsel %vm2034, %v2022, %v1369
      %v2056 = vsel %vm2034, %v2023, %v1371
      %v2057 = vsel %vm2034, %v2024, %v1373
      %v2058 = vsel %vm2034, %v2025, %v1375
      %v2059 = vsel %vm2034, %v2026, %v1377
      %v2060 = vsel %vm2034, %v2027, %v1379
      %v2061 = vsel %vm2034, %v2028, %v1381
      %v2062 = vsel %vm2034, %v2029, %v1383
      %v2063 = vsel %vm2034, %v2030, %v1385
      %v2064 = vsel %vm2034, %v2031, %v1387
      %v2065 = vsel %vm2034, %v2032, %v1389
      %v2066 = vsel %vm2034, %v2033, %v1391
      %vm2067 = vcmask 326656
      %v2068 = vsel %vm2067, %v2035, %v1457
      %v2069 = vsel %vm2067, %v2036, %v1459
      %v2070 = vsel %vm2067, %v2037, %v1461
      %v2071 = vsel %vm2067, %v2038, %v1463
      %v2072 = vsel %vm2067, %v2039, %v1465
      %v2073 = vsel %vm2067, %v2040, %v1467
      %v2074 = vsel %vm2067, %v2041, %v1469
      %v2075 = vsel %vm2067, %v2042, %v1471
      %v2076 = vsel %vm2067, %v2043, %v1473
      %v2077 = vsel %vm2067, %v2044, %v1475
      %v2078 = vsel %vm2067, %v2045, %v1477
      %v2079 = vsel %vm2067, %v2046, %v1479
      %v2080 = vsel %vm2067, %v2047, %v1481
      %v2081 = vsel %vm2067, %v2048, %v1483
      %v2082 = vsel %vm2067, %v2049, %v1485
      %v2083 = vsel %vm2067, %v2050, %v1487
      %v2084 = vsel %vm2067, %v2051, %v1489
      %v2085 = vsel %vm2067, %v2052, %v1491
      %v2086 = vsel %vm2067, %v2053, %v1493
      %v2087 = vsel %vm2067, %v2054, %v1495
      %v2088 = vsel %vm2067, %v2055, %v1497
      %v2089 = vsel %vm2067, %v2056, %v1499
      %v2090 = vsel %vm2067, %v2057, %v1501
      %v2091 = vsel %vm2067, %v2058, %v1503
      %v2092 = vsel %vm2067, %v2059, %v1505
      %v2093 = vsel %vm2067, %v2060, %v1507
      %v2094 = vsel %vm2067, %v2061, %v1509
      %v2095 = vsel %vm2067, %v2062, %v1511
      %v2096 = vsel %vm2067, %v2063, %v1513
      %v2097 = vsel %vm2067, %v2064, %v1515
      %v2098 = vsel %vm2067, %v2065, %v1517
      %v2099 = vsel %vm2067, %v2066, %v1519
      %vm2100 = vcmask 392192
      %v2101 = vsel %vm2100, %v2068, %v1585
      %v2102 = vsel %vm2100, %v2069, %v1587
      %v2103 = vsel %vm2100, %v2070, %v1589
      %v2104 = vsel %vm2100, %v2071, %v1591
      %v2105 = vsel %vm2100, %v2072, %v1593
      %v2106 = vsel %vm2100, %v2073, %v1595
      %v2107 = vsel %vm2100, %v2074, %v1597
      %v2108 = vsel %vm2100, %v2075, %v1599
      %v2109 = vsel %vm2100, %v2076, %v1601
      %v2110 = vsel %vm2100, %v2077, %v1603
      %v2111 = vsel %vm2100, %v2078, %v1605
      %v2112 = vsel %vm2100, %v2079, %v1607
      %v2113 = vsel %vm2100, %v2080, %v1609
      %v2114 = vsel %vm2100, %v2081, %v1611
      %v2115 = vsel %vm2100, %v2082, %v1613
      %v2116 = vsel %vm2100, %v2083, %v1615
      %v2117 = vsel %vm2100, %v2084, %v1617
      %v2118 = vsel %vm2100, %v2085, %v1619
      %v2119 = vsel %vm2100, %v2086, %v1621
      %v2120 = vsel %vm2100, %v2087, %v1623
      %v2121 = vsel %vm2100, %v2088, %v1625
      %v2122 = vsel %vm2100, %v2089, %v1627
      %v2123 = vsel %vm2100, %v2090, %v1629
      %v2124 = vsel %vm2100, %v2091, %v1631
      %v2125 = vsel %vm2100, %v2092, %v1633
      %v2126 = vsel %vm2100, %v2093, %v1635
      %v2127 = vsel %vm2100, %v2094, %v1637
      %v2128 = vsel %vm2100, %v2095, %v1639
      %v2129 = vsel %vm2100, %v2096, %v1641
      %v2130 = vsel %vm2100, %v2097, %v1643
      %v2131 = vsel %vm2100, %v2098, %v1645
      %v2132 = vsel %vm2100, %v2099, %v1647
      %vm2133 = vcmask 457728
      %v2134 = vsel %vm2133, %v2101, %v1713
      %v2135 = vsel %vm2133, %v2102, %v1715
      %v2136 = vsel %vm2133, %v2103, %v1717
      %v2137 = vsel %vm2133, %v2104, %v1719
      %v2138 = vsel %vm2133, %v2105, %v1721
      %v2139 = vsel %vm2133, %v2106, %v1723
      %v2140 = vsel %vm2133, %v2107, %v1725
      %v2141 = vsel %vm2133, %v2108, %v1727
      %v2142 = vsel %vm2133, %v2109, %v1729
      %v2143 = vsel %vm2133, %v2110, %v1731
      %v2144 = vsel %vm2133, %v2111, %v1733
      %v2145 = vsel %vm2133, %v2112, %v1735
      %v2146 = vsel %vm2133, %v2113, %v1737
      %v2147 = vsel %vm2133, %v2114, %v1739
      %v2148 = vsel %vm2133, %v2115, %v1741
      %v2149 = vsel %vm2133, %v2116, %v1743
      %v2150 = vsel %vm2133, %v2117, %v1745
      %v2151 = vsel %vm2133, %v2118, %v1747
      %v2152 = vsel %vm2133, %v2119, %v1749
      %v2153 = vsel %vm2133, %v2120, %v1751
      %v2154 = vsel %vm2133, %v2121, %v1753
      %v2155 = vsel %vm2133, %v2122, %v1755
      %v2156 = vsel %vm2133, %v2123, %v1757
      %v2157 = vsel %vm2133, %v2124, %v1759
      %v2158 = vsel %vm2133, %v2125, %v1761
      %v2159 = vsel %vm2133, %v2126, %v1763
      %v2160 = vsel %vm2133, %v2127, %v1765
      %v2161 = vsel %vm2133, %v2128, %v1767
      %v2162 = vsel %vm2133, %v2129, %v1769
      %v2163 = vsel %vm2133, %v2130, %v1771
      %v2164 = vsel %vm2133, %v2131, %v1773
      %v2165 = vsel %vm2133, %v2132, %v1775
      %vm2166 = vcmask 523264
      %v2167 = vsel %vm2166, %v2134, %v1841
      %v2168 = vsel %vm2166, %v2135, %v1843
      %v2169 = vsel %vm2166, %v2136, %v1845
      %v2170 = vsel %vm2166, %v2137, %v1847
      %v2171 = vsel %vm2166, %v2138, %v1849
      %v2172 = vsel %vm2166, %v2139, %v1851
      %v2173 = vsel %vm2166, %v2140, %v1853
      %v2174 = vsel %vm2166, %v2141, %v1855
      %v2175 = vsel %vm2166, %v2142, %v1857
      %v2176 = vsel %vm2166, %v2143, %v1859
      %v2177 = vsel %vm2166, %v2144, %v1861
      %v2178 = vsel %vm2166, %v2145, %v1863
      %v2179 = vsel %vm2166, %v2146, %v1865
      %v2180 = vsel %vm2166, %v2147, %v1867
      %v2181 = vsel %vm2166, %v2148, %v1869
      %v2182 = vsel %vm2166, %v2149, %v1871
      %v2183 = vsel %vm2166, %v2150, %v1873
      %v2184 = vsel %vm2166, %v2151, %v1875
      %v2185 = vsel %vm2166, %v2152, %v1877
      %v2186 = vsel %vm2166, %v2153, %v1879
      %v2187 = vsel %vm2166, %v2154, %v1881
      %v2188 = vsel %vm2166, %v2155, %v1883
      %v2189 = vsel %vm2166, %v2156, %v1885
      %v2190 = vsel %vm2166, %v2157, %v1887
      %v2191 = vsel %vm2166, %v2158, %v1889
      %v2192 = vsel %vm2166, %v2159, %v1891
      %v2193 = vsel %vm2166, %v2160, %v1893
      %v2194 = vsel %vm2166, %v2161, %v1895
      %v2195 = vsel %vm2166, %v2162, %v1897
      %v2196 = vsel %vm2166, %v2163, %v1899
      %v2197 = vsel %vm2166, %v2164, %v1901
      %v2198 = vsel %vm2166, %v2165, %v1903
      %v2199 = vld [vmem:[%s2] sm:$0xff]
      %v2200 = vld [vmem:[%s2 + $0x8] sm:$0xff]
      %v2201 = vld [vmem:[%s2 + $0x10] sm:$0xff]
      %v2202 = vld [vmem:[%s2 + $0x18] sm:$0xff]
      %v2203 = vld [vmem:[%s2 + $0x20] sm:$0xff]
      %v2204 = vld [vmem:[%s2 + $0x28] sm:$0xff]
      %v2205 = vld [vmem:[%s2 + $0x30] sm:$0xff]
      %v2206 = vld [vmem:[%s2 + $0x38] sm:$0xff]
      %v2207 = vld [vmem:[%s2 + $0x40] sm:$0xff]
      %v2208 = vld [vmem:[%s3] sm:$0x1]
      %v2210 = vlaneseq
      %v2211 = vshrl.u32 %v2210, 7
      %v2212 = vsub.s32 0, %v2211
      %v2213 = vrot.slane %v2208, %v2212
      %vm2215 = vcmask 588800
      %v2217 = vsel %vm2215, %v2167, 0
      %v2220 = vsel %vm2215, %v2168, 0
      %v2223 = vsel %vm2215, %v2169, 0
      %v2226 = vsel %vm2215, %v2170, 0
      %v2229 = vsel %vm2215, %v2171, 0
      %v2232 = vsel %vm2215, %v2172, 0
      %v2235 = vsel %vm2215, %v2173, 0
      %v2238 = vsel %vm2215, %v2174, 0
      %v2241 = vsel %vm2215, %v2175, 0
      %v2244 = vsel %vm2215, %v2176, 0
      %v2247 = vsel %vm2215, %v2177, 0
      %v2250 = vsel %vm2215, %v2178, 0
      %v2253 = vsel %vm2215, %v2179, 0
      %v2256 = vsel %vm2215, %v2180, 0
      %v2259 = vsel %vm2215, %v2181, 0
      %v2262 = vsel %vm2215, %v2182, 0
      %v2265 = vsel %vm2215, %v2183, 0
      %v2268 = vsel %vm2215, %v2184, 0
      %v2271 = vsel %vm2215, %v2185, 0
      %v2274 = vsel %vm2215, %v2186, 0
      %v2277 = vsel %vm2215, %v2187, 0
      %v2280 = vsel %vm2215, %v2188, 0
      %v2283 = vsel %vm2215, %v2189, 0
      %v2286 = vsel %vm2215, %v2190, 0
      %v2289 = vsel %vm2215, %v2191, 0
      %v2292 = vsel %vm2215, %v2192, 0
      %v2295 = vsel %vm2215, %v2193, 0
      %v2298 = vsel %vm2215, %v2194, 0
      %v2301 = vsel %vm2215, %v2195, 0
      %v2304 = vsel %vm2215, %v2196, 0
      %v2307 = vsel %vm2215, %v2197, 0
      %v2310 = vsel %vm2215, %v2198, 0
      %2312 = vmatprep.subr.mxu0 0.0
      %2313 = vmatpush1.msra.mxu0 %v2199
      %2314 = vmatprep.subr.mxu0 0.0
      %2315 = vmatpush1.msra.mxu0 %v2200
      %2316 = vmatprep.subr.mxu0 0.0
      %2317 = vmatpush1.msra.mxu0 %v2201
      %2318 = vmatprep.subr.mxu0 0.0
      %2319 = vmatpush1.msra.mxu0 %v2202
      %2320 = vmatprep.subr.mxu0 0.0
      %2321 = vmatpush1.msra.mxu0 %v2203
      %2322 = vmatprep.subr.mxu0 0.0
      %2323 = vmatpush1.msra.mxu0 %v2204
      %2324 = vmatprep.subr.mxu0 0.0
      %2325 = vmatpush1.msra.mxu0 %v2205
      %2326 = vmatprep.subr.mxu0 0.0
      %2327 = vmatpush1.msra.mxu0 %v2206
      %2328 = vmatprep.subr.mxu0 0.0
      %2329 = vmatpush1.msra.mxu0 %v2207
      %2330 = vmatprep.subr.mxu0 0.0
      %2331 = vmatpush1.msra.mxu0 0.0
      %2332 = vmatprep.subr.mxu0 0.0
      %2333 = vmatpush1.msra.mxu0 0.0
      %2334 = vmatprep.subr.mxu0 0.0
      %2335 = vmatpush1.msra.mxu0 0.0
      %2336 = vmatprep.subr.mxu0 0.0
      %2337 = vmatpush1.msra.mxu0 0.0
      %2338 = vmatprep.subr.mxu0 0.0
      %2339 = vmatpush1.msra.mxu0 0.0
      %2340 = vmatprep.subr.mxu0 0.0
      %2341 = vmatpush1.msra.mxu0 0.0
      %2342 = vmatprep.subr.mxu0 0.0
      %2343 = vmatpush1.msra.mxu0 0.0
      %2344 = vmatprep.subr.mxu0 0.0
      %2345 = vmatpush1.msra.mxu0 0.0
      %2346 = vmatprep.subr.mxu0 0.0
      %2347 = vmatpush1.msra.mxu0 0.0
      %2348 = vmatprep.subr.mxu0 0.0
      %2349 = vmatpush1.msra.mxu0 0.0
      %2350 = vmatprep.subr.mxu0 0.0
      %2351 = vmatpush1.msra.mxu0 0.0
      %2352 = vmatprep.subr.mxu0 0.0
      %2353 = vmatpush1.msra.mxu0 0.0
      %2354 = vmatprep.subr.mxu0 0.0
      %2355 = vmatpush1.msra.mxu0 0.0
      %2356 = vmatprep.subr.mxu0 0.0
      %2357 = vmatpush1.msra.mxu0 0.0
      %2358 = vmatprep.subr.mxu0 0.0
      %2359 = vmatpush1.msra.mxu0 0.0
      %2360 = vmatprep.subr.mxu0 0.0
      %2361 = vmatpush1.msra.mxu0 0.0
      %2362 = vmatprep.subr.mxu0 0.0
      %2363 = vmatpush1.msra.mxu0 0.0
      %2364 = vmatprep.subr.mxu0 0.0
      %2365 = vmatpush1.msra.mxu0 0.0
      %2366 = vmatprep.subr.mxu0 0.0
      %2367 = vmatpush1.msra.mxu0 0.0
      %2368 = vmatprep.subr.mxu0 0.0
      %2369 = vmatpush1.msra.mxu0 0.0
      %2370 = vmatprep.subr.mxu0 0.0
      %2371 = vmatpush1.msra.mxu0 0.0
      %2372 = vmatprep.subr.mxu0 0.0
      %2373 = vmatpush1.msra.mxu0 0.0
      %2374 = vmatprep.subr.mxu0 0.0
      %2375 = vmatpush1.msra.mxu0 0.0
      %2376 = vmatprep.mubr.f32.mxu0 0.0
      %2377 = vmatmul.mubr.f32.gmra.mrb[0].mxu0 %v2217
      %v2378 = vpop.f32.mrb[0].mxu0
      %v2379 = vadd.f32 %v2213, %v2378
      %v2380 = vpop.f32.mrb[0].mxu0
      %2381 = vmatprep.mubr.f32.mxu0 0.0
      %2382 = vmatmul.mubr.f32.gmra.mrb[0].mxu0 %v2220
      %v2383 = vpop.f32.mrb[0].mxu0
      %v2384 = vadd.f32 %v2213, %v2383
      %v2385 = vpop.f32.mrb[0].mxu0
      %2386 = vmatprep.mubr.f32.mxu0 0.0
      %2387 = vmatmul.mubr.f32.gmra.mrb[0].mxu0 %v2223
      %v2388 = vpop.f32.mrb[0].mxu0
      %v2389 = vadd.f32 %v2213, %v2388
      %v2390 = vpop.f32.mrb[0].mxu0
      %2391 = vmatprep.mubr.f32.mxu0 0.0
      %2392 = vmatmul.mubr.f32.gmra.mrb[0].mxu0 %v2226
      %v2393 = vpop.f32.mrb[0].mxu0
      %v2394 = vadd.f32 %v2213, %v2393
      %v2395 = vpop.f32.mrb[0].mxu0
      %2396 = vmatprep.mubr.f32.mxu0 0.0
      %2397 = vmatmul.mubr.f32.gmra.mrb[0].mxu0 %v2229
      %v2398 = vpop.f32.mrb[0].mxu0
      %v2399 = vadd.f32 %v2213, %v2398
      %v2400 = vpop.f32.mrb[0].mxu0
      %2401 = vmatprep.mubr.f32.mxu0 0.0
      %2402 = vmatmul.mubr.f32.gmra.mrb[0].mxu0 %v2232
      %v2403 = vpop.f32.mrb[0].mxu0
      %v2404 = vadd.f32 %v2213, %v2403
      %v2405 = vpop.f32.mrb[0].mxu0
      %2406 = vmatprep.mubr.f32.mxu0 0.0
      %2407 = vmatmul.mubr.f32.gmra.mrb[0].mxu0 %v2235
      %v2408 = vpop.f32.mrb[0].mxu0
      %v2409 = vadd.f32 %v2213, %v2408
      %v2410 = vpop.f32.mrb[0].mxu0
      %2411 = vmatprep.mubr.f32.mxu0 0.0
      %2412 = vmatmul.mubr.f32.gmra.mrb[0].mxu0 %v2238
      %v2413 = vpop.f32.mrb[0].mxu0
      %v2414 = vadd.f32 %v2213, %v2413
      %v2415 = vpop.f32.mrb[0].mxu0
      %2416 = vmatprep.mubr.f32.mxu0 0.0
      %2417 = vmatmul.mubr.f32.gmra.mrb[0].mxu0 %v2241
      %v2418 = vpop.f32.mrb[0].mxu0
      %v2419 = vadd.f32 %v2213, %v2418
      %v2420 = vpop.f32.mrb[0].mxu0
      %2421 = vmatprep.mubr.f32.mxu0 0.0
      %2422 = vmatmul.mubr.f32.gmra.mrb[0].mxu0 %v2244
      %v2423 = vpop.f32.mrb[0].mxu0
      %v2424 = vadd.f32 %v2213, %v2423
      %v2425 = vpop.f32.mrb[0].mxu0
      %2426 = vmatprep.mubr.f32.mxu0 0.0
      %2427 = vmatmul.mubr.f32.gmra.mrb[0].mxu0 %v2247
      %v2428 = vpop.f32.mrb[0].mxu0
      %v2429 = vadd.f32 %v2213, %v2428
      %v2430 = vpop.f32.mrb[0].mxu0
      %2431 = vmatprep.mubr.f32.mxu0 0.0
      %2432 = vmatmul.mubr.f32.gmra.mrb[0].mxu0 %v2250
      %v2433 = vpop.f32.mrb[0].mxu0
      %v2434 = vadd.f32 %v2213, %v2433
      %v2435 = vpop.f32.mrb[0].mxu0
      %2436 = vmatprep.mubr.f32.mxu0 0.0
      %2437 = vmatmul.mubr.f32.gmra.mrb[0].mxu0 %v2253
      %v2438 = vpop.f32.mrb[0].mxu0
      %v2439 = vadd.f32 %v2213, %v2438
      %v2440 = vpop.f32.mrb[0].mxu0
      %2441 = vmatprep.mubr.f32.mxu0 0.0
      %2442 = vmatmul.mubr.f32.gmra.mrb[0].mxu0 %v2256
      %v2443 = vpop.f32.mrb[0].mxu0
      %v2444 = vadd.f32 %v2213, %v2443
      %v2445 = vpop.f32.mrb[0].mxu0
      %2446 = vmatprep.mubr.f32.mxu0 0.0
      %2447 = vmatmul.mubr.f32.gmra.mrb[0].mxu0 %v2259
      %v2448 = vpop.f32.mrb[0].mxu0
      %v2449 = vadd.f32 %v2213, %v2448
      %v2450 = vpop.f32.mrb[0].mxu0
      %2451 = vmatprep.mubr.f32.mxu0 0.0
      %2452 = vmatmul.mubr.f32.gmra.mrb[0].mxu0 %v2262
      %v2453 = vpop.f32.mrb[0].mxu0
      %v2454 = vadd.f32 %v2213, %v2453
      %v2455 = vpop.f32.mrb[0].mxu0
      %2456 = vmatprep.mubr.f32.mxu0 0.0
      %2457 = vmatmul.mubr.f32.gmra.mrb[0].mxu0 %v2265
      %v2458 = vpop.f32.mrb[0].mxu0
      %v2459 = vadd.f32 %v2213, %v2458
      %v2460 = vpop.f32.mrb[0].mxu0
      %2461 = vmatprep.mubr.f32.mxu0 0.0
      %2462 = vmatmul.mubr.f32.gmra.mrb[0].mxu0 %v2268
      %v2463 = vpop.f32.mrb[0].mxu0
      %v2464 = vadd.f32 %v2213, %v2463
      %v2465 = vpop.f32.mrb[0].mxu0
      %2466 = vmatprep.mubr.f32.mxu0 0.0
      %2467 = vmatmul.mubr.f32.gmra.mrb[0].mxu0 %v2271
      %v2468 = vpop.f32.mrb[0].mxu0
      %v2469 = vadd.f32 %v2213, %v2468
      %v2470 = vpop.f32.mrb[0].mxu0
      %2471 = vmatprep.mubr.f32.mxu0 0.0
      %2472 = vmatmul.mubr.f32.gmra.mrb[0].mxu0 %v2274
      %v2473 = vpop.f32.mrb[0].mxu0
      %v2474 = vadd.f32 %v2213, %v2473
      %v2475 = vpop.f32.mrb[0].mxu0
      %2476 = vmatprep.mubr.f32.mxu0 0.0
      %2477 = vmatmul.mubr.f32.gmra.mrb[0].mxu0 %v2277
      %v2478 = vpop.f32.mrb[0].mxu0
      %v2479 = vadd.f32 %v2213, %v2478
      %v2480 = vpop.f32.mrb[0].mxu0
      %2481 = vmatprep.mubr.f32.mxu0 0.0
      %2482 = vmatmul.mubr.f32.gmra.mrb[0].mxu0 %v2280
      %v2483 = vpop.f32.mrb[0].mxu0
      %v2484 = vadd.f32 %v2213, %v2483
      %v2485 = vpop.f32.mrb[0].mxu0
      %2486 = vmatprep.mubr.f32.mxu0 0.0
      %2487 = vmatmul.mubr.f32.gmra.mrb[0].mxu0 %v2283
      %v2488 = vpop.f32.mrb[0].mxu0
      %v2489 = vadd.f32 %v2213, %v2488
      %v2490 = vpop.f32.mrb[0].mxu0
      %2491 = vmatprep.mubr.f32.mxu0 0.0
      %2492 = vmatmul.mubr.f32.gmra.mrb[0].mxu0 %v2286
      %v2493 = vpop.f32.mrb[0].mxu0
      %v2494 = vadd.f32 %v2213, %v2493
      %v2495 = vpop.f32.mrb[0].mxu0
      %2496 = vmatprep.mubr.f32.mxu0 0.0
      %2497 = vmatmul.mubr.f32.gmra.mrb[0].mxu0 %v2289
      %v2498 = vpop.f32.mrb[0].mxu0
      %v2499 = vadd.f32 %v2213, %v2498
      %v2500 = vpop.f32.mrb[0].mxu0
      %2501 = vmatprep.mubr.f32.mxu0 0.0
      %2502 = vmatmul.mubr.f32.gmra.mrb[0].mxu0 %v2292
      %v2503 = vpop.f32.mrb[0].mxu0
      %v2504 = vadd.f32 %v2213, %v2503
      %v2505 = vpop.f32.mrb[0].mxu0
      %2506 = vmatprep.mubr.f32.mxu0 0.0
      %2507 = vmatmul.mubr.f32.gmra.mrb[0].mxu0 %v2295
      %v2508 = vpop.f32.mrb[0].mxu0
      %v2509 = vadd.f32 %v2213, %v2508
      %v2510 = vpop.f32.mrb[0].mxu0
      %2511 = vmatprep.mubr.f32.mxu0 0.0
      %2512 = vmatmul.mubr.f32.gmra.mrb[0].mxu0 %v2298
      %v2513 = vpop.f32.mrb[0].mxu0
      %v2514 = vadd.f32 %v2213, %v2513
      %v2515 = vpop.f32.mrb[0].mxu0
      %2516 = vmatprep.mubr.f32.mxu0 0.0
      %2517 = vmatmul.mubr.f32.gmra.mrb[0].mxu0 %v2301
      %v2518 = vpop.f32.mrb[0].mxu0
      %v2519 = vadd.f32 %v2213, %v2518
      %v2520 = vpop.f32.mrb[0].mxu0
      %2521 = vmatprep.mubr.f32.mxu0 0.0
      %2522 = vmatmul.mubr.f32.gmra.mrb[0].mxu0 %v2304
      %v2523 = vpop.f32.mrb[0].mxu0
      %v2524 = vadd.f32 %v2213, %v2523
      %v2525 = vpop.f32.mrb[0].mxu0
      %2526 = vmatprep.mubr.f32.mxu0 0.0
      %2527 = vmatmul.mubr.f32.gmra.mrb[0].mxu0 %v2307
      %v2528 = vpop.f32.mrb[0].mxu0
      %v2529 = vadd.f32 %v2213, %v2528
      %v2530 = vpop.f32.mrb[0].mxu0
      %2531 = vmatprep.mubr.f32.mxu0 0.0
      %2532 = vmatmul.mubr.f32.gmra.mrb[0].mxu0 %v2310
      %v2533 = vpop.f32.mrb[0].mxu0
      %v2534 = vadd.f32 %v2213, %v2533
      %v2535 = vpop.f32.mrb[0].mxu0
      %2536 = vdwg.mxu0
      %vm2537 = vcmp.ge.f32.partialorder %v2379, 0.0
      %vm2538 = vcmp.ge.f32.partialorder %v2384, 0.0
      %vm2539 = vcmp.ge.f32.partialorder %v2389, 0.0
      %vm2540 = vcmp.ge.f32.partialorder %v2394, 0.0
      %vm2541 = vcmp.ge.f32.partialorder %v2399, 0.0
      %vm2542 = vcmp.ge.f32.partialorder %v2404, 0.0
      %vm2543 = vcmp.ge.f32.partialorder %v2409, 0.0
      %vm2544 = vcmp.ge.f32.partialorder %v2414, 0.0
      %vm2545 = vcmp.ge.f32.partialorder %v2419, 0.0
      %vm2546 = vcmp.ge.f32.partialorder %v2424, 0.0
      %vm2547 = vcmp.ge.f32.partialorder %v2429, 0.0
      %vm2548 = vcmp.ge.f32.partialorder %v2434, 0.0
      %vm2549 = vcmp.ge.f32.partialorder %v2439, 0.0
      %vm2550 = vcmp.ge.f32.partialorder %v2444, 0.0
      %vm2551 = vcmp.ge.f32.partialorder %v2449, 0.0
      %vm2552 = vcmp.ge.f32.partialorder %v2454, 0.0
      %vm2553 = vcmp.ge.f32.partialorder %v2459, 0.0
      %vm2554 = vcmp.ge.f32.partialorder %v2464, 0.0
      %vm2555 = vcmp.ge.f32.partialorder %v2469, 0.0
      %vm2556 = vcmp.ge.f32.partialorder %v2474, 0.0
      %vm2557 = vcmp.ge.f32.partialorder %v2479, 0.0
      %vm2558 = vcmp.ge.f32.partialorder %v2484, 0.0
      %vm2559 = vcmp.ge.f32.partialorder %v2489, 0.0
      %vm2560 = vcmp.ge.f32.partialorder %v2494, 0.0
      %vm2561 = vcmp.ge.f32.partialorder %v2499, 0.0
      %vm2562 = vcmp.ge.f32.partialorder %v2504, 0.0
      %vm2563 = vcmp.ge.f32.partialorder %v2509, 0.0
      %vm2564 = vcmp.ge.f32.partialorder %v2514, 0.0
      %vm2565 = vcmp.ge.f32.partialorder %v2519, 0.0
      %vm2566 = vcmp.ge.f32.partialorder %v2524, 0.0
      %vm2567 = vcmp.ge.f32.partialorder %v2529, 0.0
      %vm2568 = vcmp.ge.f32.partialorder %v2534, 0.0
      %v2569 = vmul.f32 %v2379, 0.125
      %v2570 = vmul.f32 %v2384, 0.125
      %v2571 = vmul.f32 %v2389, 0.125
      %v2572 = vmul.f32 %v2394, 0.125
      %v2573 = vmul.f32 %v2399, 0.125
      %v2574 = vmul.f32 %v2404, 0.125
      %v2575 = vmul.f32 %v2409, 0.125
      %v2576 = vmul.f32 %v2414, 0.125
      %v2577 = vmul.f32 %v2419, 0.125
      %v2578 = vmul.f32 %v2424, 0.125
      %v2579 = vmul.f32 %v2429, 0.125
      %v2580 = vmul.f32 %v2434, 0.125
      %v2581 = vmul.f32 %v2439, 0.125
      %v2582 = vmul.f32 %v2444, 0.125
      %v2583 = vmul.f32 %v2449, 0.125
      %v2584 = vmul.f32 %v2454, 0.125
      %v2585 = vmul.f32 %v2459, 0.125
      %v2586 = vmul.f32 %v2464, 0.125
      %v2587 = vmul.f32 %v2469, 0.125
      %v2588 = vmul.f32 %v2474, 0.125
      %v2589 = vmul.f32 %v2479, 0.125
      %v2590 = vmul.f32 %v2484, 0.125
      %v2591 = vmul.f32 %v2489, 0.125
      %v2592 = vmul.f32 %v2494, 0.125
      %v2593 = vmul.f32 %v2499, 0.125
      %v2594 = vmul.f32 %v2504, 0.125
      %v2595 = vmul.f32 %v2509, 0.125
      %v2596 = vmul.f32 %v2514, 0.125
      %v2597 = vmul.f32 %v2519, 0.125
      %v2598 = vmul.f32 %v2524, 0.125
      %v2599 = vmul.f32 %v2529, 0.125
      %v2600 = vmul.f32 %v2534, 0.125
      %v2601 = vsel %vm2537, %v2379, %v2569
      %v2602 = vsel %vm2538, %v2384, %v2570
      %v2603 = vsel %vm2539, %v2389, %v2571
      %v2604 = vsel %vm2540, %v2394, %v2572
      %v2605 = vsel %vm2541, %v2399, %v2573
      %v2606 = vsel %vm2542, %v2404, %v2574
      %v2607 = vsel %vm2543, %v2409, %v2575
      %v2608 = vsel %vm2544, %v2414, %v2576
      %v2609 = vsel %vm2545, %v2419, %v2577
      %v2610 = vsel %vm2546, %v2424, %v2578
      %v2611 = vsel %vm2547, %v2429, %v2579
      %v2612 = vsel %vm2548, %v2434, %v2580
      %v2613 = vsel %vm2549, %v2439, %v2581
      %v2614 = vsel %vm2550, %v2444, %v2582
      %v2615 = vsel %vm2551, %v2449, %v2583
      %v2616 = vsel %vm2552, %v2454, %v2584
      %v2617 = vsel %vm2553, %v2459, %v2585
      %v2618 = vsel %vm2554, %v2464, %v2586
      %v2619 = vsel %vm2555, %v2469, %v2587
      %v2620 = vsel %vm2556, %v2474, %v2588
      %v2621 = vsel %vm2557, %v2479, %v2589
      %v2622 = vsel %vm2558, %v2484, %v2590
      %v2623 = vsel %vm2559, %v2489, %v2591
      %v2624 = vsel %vm2560, %v2494, %v2592
      %v2625 = vsel %vm2561, %v2499, %v2593
      %v2626 = vsel %vm2562, %v2504, %v2594
      %v2627 = vsel %vm2563, %v2509, %v2595
      %v2628 = vsel %vm2564, %v2514, %v2596
      %v2629 = vsel %vm2565, %v2519, %v2597
      %v2630 = vsel %vm2566, %v2524, %v2598
      %v2631 = vsel %vm2567, %v2529, %v2599
      %v2632 = vsel %vm2568, %v2534, %v2600
      %2633 = vst.msk [vmem:[#allocation3] sm:$0xff] %vm361, 0.0
      %2634 = vst.msk [vmem:[#allocation3 + $0x8] sm:$0xff] %vm361, 0.0
      %vm2635 = vcmask 25600
      %2636 = vst.msk [vmem:[#allocation3 + $0x10] sm:$0x3] %vm2635, 0.0
      %2637 = vst.msk [vmem:[#allocation3 + $0x18] sm:$0xff] %vm361, 0.0
      %2638 = vst.msk [vmem:[#allocation3 + $0x20] sm:$0xff] %vm361, 0.0
      %2639 = vst.msk [vmem:[#allocation3 + $0x28] sm:$0x3] %vm2635, 0.0
      %2640 = vst.msk [vmem:[#allocation3 + $0x30] sm:$0xff] %vm361, 0.0
      %2641 = vst.msk [vmem:[#allocation3 + $0x38] sm:$0xff] %vm361, 0.0
      %2642 = vst.msk [vmem:[#allocation3 + $0x40] sm:$0x3] %vm2635, 0.0
      %2643 = vst.msk [vmem:[#allocation3 + $0x48] sm:$0xff] %vm361, 0.0
      %2644 = vst.msk [vmem:[#allocation3 + $0x50] sm:$0xff] %vm361, 0.0
      %2645 = vst.msk [vmem:[#allocation3 + $0x58] sm:$0x3] %vm2635, 0.0
      %2646 = vst.msk [vmem:[#allocation3 + $0x60] sm:$0xff] %vm361, 0.0
      %2647 = vst.msk [vmem:[#allocation3 + $0x68] sm:$0xff] %vm361, 0.0
      %2648 = vst.msk [vmem:[#allocation3 + $0x70] sm:$0x3] %vm2635, 0.0
      %2649 = vst.msk [vmem:[#allocation3 + $0x78] sm:$0xff] %vm361, 0.0
      %2650 = vst.msk [vmem:[#allocation3 + $0x80] sm:$0xff] %vm361, 0.0
      %2651 = vst.msk [vmem:[#allocation3 + $0x88] sm:$0x3] %vm2635, 0.0
      %2652 = vst.msk [vmem:[#allocation3 + $0x90] sm:$0xff] %vm361, 0.0
      %2653 = vst.msk [vmem:[#allocation3 + $0x98] sm:$0xff] %vm361, 0.0
      %2654 = vst.msk [vmem:[#allocation3 + $0xa0] sm:$0x3] %vm2635, 0.0
      %2655 = vst.msk [vmem:[#allocation3 + $0xa8] sm:$0xff] %vm361, 0.0
      %2656 = vst.msk [vmem:[#allocation3 + $0xb0] sm:$0xff] %vm361, 0.0
      %2657 = vst.msk [vmem:[#allocation3 + $0xb8] sm:$0x3] %vm2635, 0.0
      %2658 = vst.msk [vmem:[#allocation3 + $0xc0] sm:$0xff] %vm361, 0.0
      %2659 = vst.msk [vmem:[#allocation3 + $0xc8] sm:$0xff] %vm361, 0.0
      %2660 = vst.msk [vmem:[#allocation3 + $0xd0] sm:$0x3] %vm2635, 0.0
      %2661 = vst.msk [vmem:[#allocation3 + $0xd8] sm:$0xff] %vm361, 0.0
      %2662 = vst.msk [vmem:[#allocation3 + $0xe0] sm:$0xff] %vm361, 0.0
      %2663 = vst.msk [vmem:[#allocation3 + $0xe8] sm:$0x3] %vm2635, 0.0
      %2664 = vst.msk [vmem:[#allocation3 + $0xf0] sm:$0xff] %vm361, 0.0
      %2665 = vst.msk [vmem:[#allocation3 + $0xf8] sm:$0xff] %vm361, 0.0
      %2666 = vst.msk [vmem:[#allocation3 + $0x100] sm:$0x3] %vm2635, 0.0
      %2667 = vst.msk [vmem:[#allocation3 + $0x108] sm:$0xff] %vm361, 0.0
      %2668 = vst.msk [vmem:[#allocation3 + $0x110] sm:$0xff] %vm361, 0.0
      %2669 = vst.msk [vmem:[#allocation3 + $0x118] sm:$0x3] %vm2635, 0.0
      %2670 = vst.msk [vmem:[#allocation3 + $0x120] sm:$0xff] %vm361, 0.0
      %2671 = vst.msk [vmem:[#allocation3 + $0x128] sm:$0xff] %vm361, 0.0
      %2672 = vst.msk [vmem:[#allocation3 + $0x130] sm:$0x3] %vm2635, 0.0
      %2673 = vst.msk [vmem:[#allocation3 + $0x138] sm:$0xff] %vm361, 0.0
      %2674 = vst.msk [vmem:[#allocation3 + $0x140] sm:$0xff] %vm361, 0.0
      %2675 = vst.msk [vmem:[#allocation3 + $0x148] sm:$0x3] %vm2635, 0.0
      %2676 = vst.msk [vmem:[#allocation3 + $0x150] sm:$0xff] %vm361, 0.0
      %2677 = vst.msk [vmem:[#allocation3 + $0x158] sm:$0xff] %vm361, 0.0
      %2678 = vst.msk [vmem:[#allocation3 + $0x160] sm:$0x3] %vm2635, 0.0
      %2679 = vst.msk [vmem:[#allocation3 + $0x168] sm:$0xff] %vm361, 0.0
      %2680 = vst.msk [vmem:[#allocation3 + $0x170] sm:$0xff] %vm361, 0.0
      %2681 = vst.msk [vmem:[#allocation3 + $0x178] sm:$0x3] %vm2635, 0.0
      %2682 = vst.msk [vmem:[#allocation3 + $0x180] sm:$0xff] %vm361, 0.0
      %2683 = vst.msk [vmem:[#allocation3 + $0x188] sm:$0xff] %vm361, 0.0
      %2684 = vst.msk [vmem:[#allocation3 + $0x190] sm:$0x3] %vm2635, 0.0
      %2685 = vst.msk [vmem:[#allocation3 + $0x198] sm:$0xff] %vm361, 0.0
      %2686 = vst.msk [vmem:[#allocation3 + $0x1a0] sm:$0xff] %vm361, 0.0
      %2687 = vst.msk [vmem:[#allocation3 + $0x1a8] sm:$0x3] %vm2635, 0.0
      %s2688 = scalar_lea.vmem [#allocation3], 24
      %2689 = vst.msk [vmem:[%s2688 + $0x1] sm:$0xff] %vm361, %v2601
      %2690 = vst.msk [vmem:[%s2688 + $0x9] sm:$0xff] %vm361, %v2602
      %2691 = vst.msk [vmem:[%s2688 + $0x19] sm:$0xff] %vm361, %v2603
      %2692 = vst.msk [vmem:[%s2688 + $0x21] sm:$0xff] %vm361, %v2604
      %2693 = vst.msk [vmem:[%s2688 + $0x31] sm:$0xff] %vm361, %v2605
      %2694 = vst.msk [vmem:[%s2688 + $0x39] sm:$0xff] %vm361, %v2606
      %2695 = vst.msk [vmem:[%s2688 + $0x49] sm:$0xff] %vm361, %v2607
      %2696 = vst.msk [vmem:[%s2688 + $0x51] sm:$0xff] %vm361, %v2608
      %2697 = vst.msk [vmem:[%s2688 + $0x61] sm:$0xff] %vm361, %v2609
      %2698 = vst.msk [vmem:[%s2688 + $0x69] sm:$0xff] %vm361, %v2610
      %2699 = vst.msk [vmem:[%s2688 + $0x79] sm:$0xff] %vm361, %v2611
      %2700 = vst.msk [vmem:[%s2688 + $0x81] sm:$0xff] %vm361, %v2612
      %2701 = vst.msk [vmem:[%s2688 + $0x91] sm:$0xff] %vm361, %v2613
      %2702 = vst.msk [vmem:[%s2688 + $0x99] sm:$0xff] %vm361, %v2614
      %2703 = vst.msk [vmem:[%s2688 + $0xa9] sm:$0xff] %vm361, %v2615
      %2704 = vst.msk [vmem:[%s2688 + $0xb1] sm:$0xff] %vm361, %v2616
      %2705 = vst.msk [vmem:[%s2688 + $0xc1] sm:$0xff] %vm361, %v2617
      %2706 = vst.msk [vmem:[%s2688 + $0xc9] sm:$0xff] %vm361, %v2618
      %2707 = vst.msk [vmem:[%s2688 + $0xd9] sm:$0xff] %vm361, %v2619
      %2708 = vst.msk [vmem:[%s2688 + $0xe1] sm:$0xff] %vm361, %v2620
      %2709 = vst.msk [vmem:[%s2688 + $0xf1] sm:$0xff] %vm361, %v2621
      %2710 = vst.msk [vmem:[%s2688 + $0xf9] sm:$0xff] %vm361, %v2622
      %2711 = vst.msk [vmem:[%s2688 + $0x109] sm:$0xff] %vm361, %v2623
      %2712 = vst.msk [vmem:[%s2688 + $0x111] sm:$0xff] %vm361, %v2624
      %2713 = vst.msk [vmem:[%s2688 + $0x121] sm:$0xff] %vm361, %v2625
      %2714 = vst.msk [vmem:[%s2688 + $0x129] sm:$0xff] %vm361, %v2626
      %2715 = vst.msk [vmem:[%s2688 + $0x139] sm:$0xff] %vm361, %v2627
      %2716 = vst.msk [vmem:[%s2688 + $0x141] sm:$0xff] %vm361, %v2628
      %2717 = vst.msk [vmem:[%s2688 + $0x151] sm:$0xff] %vm361, %v2629
      %2718 = vst.msk [vmem:[%s2688 + $0x159] sm:$0xff] %vm361, %v2630
      %2719 = vst.msk [vmem:[%s2688 + $0x169] sm:$0xff] %vm361, %v2631
      %2720 = vst.msk [vmem:[%s2688 + $0x171] sm:$0xff] %vm361, %v2632
      %v2721 = vld [vmem:[#allocation3] sm:$0xff]
      %v2722 = vld [vmem:[#allocation3 + $0x8] sm:$0xff]
      %v2723 = vld [vmem:[#allocation3 + $0x18] sm:$0xff]
      %v2724 = vld [vmem:[#allocation3 + $0x20] sm:$0xff]
      %v2725 = vld [vmem:[#allocation3 + $0x30] sm:$0xff]
      %v2726 = vld [vmem:[#allocation3 + $0x38] sm:$0xff]
      %v2727 = vld [vmem:[#allocation3 + $0x48] sm:$0xff]
      %v2728 = vld [vmem:[#allocation3 + $0x50] sm:$0xff]
      %v2729 = vld [vmem:[#allocation3 + $0x60] sm:$0xff]
      %v2730 = vld [vmem:[#allocation3 + $0x68] sm:$0xff]
      %v2731 = vld [vmem:[#allocation3 + $0x78] sm:$0xff]
      %v2732 = vld [vmem:[#allocation3 + $0x80] sm:$0xff]
      %v2733 = vld [vmem:[#allocation3 + $0x90] sm:$0xff]
      %v2734 = vld [vmem:[#allocation3 + $0x98] sm:$0xff]
      %v2735 = vld [vmem:[#allocation3 + $0xa8] sm:$0xff]
      %v2736 = vld [vmem:[#allocation3 + $0xb0] sm:$0xff]
      %v2737 = vld [vmem:[#allocation3 + $0xc0] sm:$0xff]
      %v2738 = vld [vmem:[#allocation3 + $0xc8] sm:$0xff]
      %v2739 = vld [vmem:[#allocation3 + $0xd8] sm:$0xff]
      %v2740 = vld [vmem:[#allocation3 + $0xe0] sm:$0xff]
      %v2741 = vld [vmem:[#allocation3 + $0xf0] sm:$0xff]
      %v2742 = vld [vmem:[#allocation3 + $0xf8] sm:$0xff]
      %v2743 = vld [vmem:[#allocation3 + $0x108] sm:$0xff]
      %v2744 = vld [vmem:[#allocation3 + $0x110] sm:$0xff]
      %v2745 = vld [vmem:[#allocation3 + $0x120] sm:$0xff]
      %v2746 = vld [vmem:[#allocation3 + $0x128] sm:$0xff]
      %v2747 = vld [vmem:[#allocation3 + $0x138] sm:$0xff]
      %v2748 = vld [vmem:[#allocation3 + $0x140] sm:$0xff]
      %v2749 = vld [vmem:[#allocation3 + $0x150] sm:$0xff]
      %v2750 = vld [vmem:[#allocation3 + $0x158] sm:$0xff]
      %v2751 = vld [vmem:[#allocation3 + $0x168] sm:$0xff]
      %v2752 = vld [vmem:[#allocation3 + $0x170] sm:$0xff]
      %v2753 = vld [vmem:[#allocation3 + $0x1] sm:$0xff]
      %v2754 = vld [vmem:[#allocation3 + $0x9] sm:$0xff]
      %v2755 = vld [vmem:[#allocation3 + $0x19] sm:$0xff]
      %v2756 = vld [vmem:[#allocation3 + $0x21] sm:$0xff]
      %v2757 = vld [vmem:[#allocation3 + $0x31] sm:$0xff]
      %v2758 = vld [vmem:[#allocation3 + $0x39] sm:$0xff]
      %v2759 = vld [vmem:[#allocation3 + $0x49] sm:$0xff]
      %v2760 = vld [vmem:[#allocation3 + $0x51] sm:$0xff]
      %v2761 = vld [vmem:[#allocation3 + $0x61] sm:$0xff]
      %v2762 = vld [vmem:[#allocation3 + $0x69] sm:$0xff]
      %v2763 = vld [vmem:[#allocation3 + $0x79] sm:$0xff]
      %v2764 = vld [vmem:[#allocation3 + $0x81] sm:$0xff]
      %v2765 = vld [vmem:[#allocation3 + $0x91] sm:$0xff]
      %v2766 = vld [vmem:[#allocation3 + $0x99] sm:$0xff]
      %v2767 = vld [vmem:[#allocation3 + $0xa9] sm:$0xff]
      %v2768 = vld [vmem:[#allocation3 + $0xb1] sm:$0xff]
      %v2769 = vld [vmem:[#allocation3 + $0xc1] sm:$0xff]
      %v2770 = vld [vmem:[#allocation3 + $0xc9] sm:$0xff]
      %v2771 = vld [vmem:[#allocation3 + $0xd9] sm:$0xff]
      %v2772 = vld [vmem:[#allocation3 + $0xe1] sm:$0xff]
      %v2773 = vld [vmem:[#allocation3 + $0xf1] sm:$0xff]
      %v2774 = vld [vmem:[#allocation3 + $0xf9] sm:$0xff]
      %v2775 = vld [vmem:[#allocation3 + $0x109] sm:$0xff]
      %v2776 = vld [vmem:[#allocation3 + $0x111] sm:$0xff]
      %v2777 = vld [vmem:[#allocation3 + $0x121] sm:$0xff]
      %v2778 = vld [vmem:[#allocation3 + $0x129] sm:$0xff]
      %v2779 = vld [vmem:[#allocation3 + $0x139] sm:$0xff]
      %v2780 = vld [vmem:[#allocation3 + $0x141] sm:$0xff]
      %v2781 = vld [vmem:[#allocation3 + $0x151] sm:$0xff]
      %v2782 = vld [vmem:[#allocation3 + $0x159] sm:$0xff]
      %v2783 = vld [vmem:[#allocation3 + $0x169] sm:$0xff]
      %v2784 = vld [vmem:[#allocation3 + $0x171] sm:$0xff]
      %v2785 = vld [vmem:[#allocation3 + $0x2] sm:$0xff]
      %v2786 = vld [vmem:[#allocation3 + $0xa] sm:$0xff]
      %v2787 = vld [vmem:[#allocation3 + $0x1a] sm:$0xff]
      %v2788 = vld [vmem:[#allocation3 + $0x22] sm:$0xff]
      %v2789 = vld [vmem:[#allocation3 + $0x32] sm:$0xff]
      %v2790 = vld [vmem:[#allocation3 + $0x3a] sm:$0xff]
      %v2791 = vld [vmem:[#allocation3 + $0x4a] sm:$0xff]
      %v2792 = vld [vmem:[#allocation3 + $0x52] sm:$0xff]
      %v2793 = vld [vmem:[#allocation3 + $0x62] sm:$0xff]
      %v2794 = vld [vmem:[#allocation3 + $0x6a] sm:$0xff]
      %v2795 = vld [vmem:[#allocation3 + $0x7a] sm:$0xff]
      %v2796 = vld [vmem:[#allocation3 + $0x82] sm:$0xff]
      %v2797 = vld [vmem:[#allocation3 + $0x92] sm:$0xff]
      %v2798 = vld [vmem:[#allocation3 + $0x9a] sm:$0xff]
      %v2799 = vld [vmem:[#allocation3 + $0xaa] sm:$0xff]
      %v2800 = vld [vmem:[#allocation3 + $0xb2] sm:$0xff]
      %v2801 = vld [vmem:[#allocation3 + $0xc2] sm:$0xff]
      %v2802 = vld [vmem:[#allocation3 + $0xca] sm:$0xff]
      %v2803 = vld [vmem:[#allocation3 + $0xda] sm:$0xff]
      %v2804 = vld [vmem:[#allocation3 + $0xe2] sm:$0xff]
      %v2805 = vld [vmem:[#allocation3 + $0xf2] sm:$0xff]
      %v2806 = vld [vmem:[#allocation3 + $0xfa] sm:$0xff]
      %v2807 = vld [vmem:[#allocation3 + $0x10a] sm:$0xff]
      %v2808 = vld [vmem:[#allocation3 + $0x112] sm:$0xff]
      %v2809 = vld [vmem:[#allocation3 + $0x122] sm:$0xff]
      %v2810 = vld [vmem:[#allocation3 + $0x12a] sm:$0xff]
      %v2811 = vld [vmem:[#allocation3 + $0x13a] sm:$0xff]
      %v2812 = vld [vmem:[#allocation3 + $0x142] sm:$0xff]
      %v2813 = vld [vmem:[#allocation3 + $0x152] sm:$0xff]
      %v2814 = vld [vmem:[#allocation3 + $0x15a] sm:$0xff]
      %v2815 = vld [vmem:[#allocation3 + $0x16a] sm:$0xff]
      %v2816 = vld [vmem:[#allocation3 + $0x172] sm:$0xff]
      %v2817 = vld [vmem:[%s2688] sm:$0xff]
      %v2818 = vld [vmem:[%s2688 + $0x8] sm:$0xff]
      %v2819 = vld [vmem:[%s2688 + $0x18] sm:$0xff]
      %v2820 = vld [vmem:[%s2688 + $0x20] sm:$0xff]
      %v2821 = vld [vmem:[%s2688 + $0x30] sm:$0xff]
      %v2822 = vld [vmem:[%s2688 + $0x38] sm:$0xff]
      %v2823 = vld [vmem:[%s2688 + $0x48] sm:$0xff]
      %v2824 = vld [vmem:[%s2688 + $0x50] sm:$0xff]
      %v2825 = vld [vmem:[%s2688 + $0x60] sm:$0xff]
      %v2826 = vld [vmem:[%s2688 + $0x68] sm:$0xff]
      %v2827 = vld [vmem:[%s2688 + $0x78] sm:$0xff]
      %v2828 = vld [vmem:[%s2688 + $0x80] sm:$0xff]
      %v2829 = vld [vmem:[%s2688 + $0x90] sm:$0xff]
      %v2830 = vld [vmem:[%s2688 + $0x98] sm:$0xff]
      %v2831 = vld [vmem:[%s2688 + $0xa8] sm:$0xff]
      %v2832 = vld [vmem:[%s2688 + $0xb0] sm:$0xff]
      %v2833 = vld [vmem:[%s2688 + $0xc0] sm:$0xff]
      %v2834 = vld [vmem:[%s2688 + $0xc8] sm:$0xff]
      %v2835 = vld [vmem:[%s2688 + $0xd8] sm:$0xff]
      %v2836 = vld [vmem:[%s2688 + $0xe0] sm:$0xff]
      %v2837 = vld [vmem:[%s2688 + $0xf0] sm:$0xff]
      %v2838 = vld [vmem:[%s2688 + $0xf8] sm:$0xff]
      %v2839 = vld [vmem:[%s2688 + $0x108] sm:$0xff]
      %v2840 = vld [vmem:[%s2688 + $0x110] sm:$0xff]
      %v2841 = vld [vmem:[%s2688 + $0x120] sm:$0xff]
      %v2842 = vld [vmem:[%s2688 + $0x128] sm:$0xff]
      %v2843 = vld [vmem:[%s2688 + $0x138] sm:$0xff]
      %v2844 = vld [vmem:[%s2688 + $0x140] sm:$0xff]
      %v2845 = vld [vmem:[%s2688 + $0x150] sm:$0xff]
      %v2846 = vld [vmem:[%s2688 + $0x158] sm:$0xff]
      %v2847 = vld [vmem:[%s2688 + $0x168] sm:$0xff]
      %v2848 = vld [vmem:[%s2688 + $0x170] sm:$0xff]
      %v2849 = vld [vmem:[%s2688 + $0x1] sm:$0xff]
      %v2850 = vld [vmem:[%s2688 + $0x9] sm:$0xff]
      %v2851 = vld [vmem:[%s2688 + $0x19] sm:$0xff]
      %v2852 = vld [vmem:[%s2688 + $0x21] sm:$0xff]
      %v2853 = vld [vmem:[%s2688 + $0x31] sm:$0xff]
      %v2854 = vld [vmem:[%s2688 + $0x39] sm:$0xff]
      %v2855 = vld [vmem:[%s2688 + $0x49] sm:$0xff]
      %v2856 = vld [vmem:[%s2688 + $0x51] sm:$0xff]
      %v2857 = vld [vmem:[%s2688 + $0x61] sm:$0xff]
      %v2858 = vld [vmem:[%s2688 + $0x69] sm:$0xff]
      %v2859 = vld [vmem:[%s2688 + $0x79] sm:$0xff]
      %v2860 = vld [vmem:[%s2688 + $0x81] sm:$0xff]
      %v2861 = vld [vmem:[%s2688 + $0x91] sm:$0xff]
      %v2862 = vld [vmem:[%s2688 + $0x99] sm:$0xff]
      %v2863 = vld [vmem:[%s2688 + $0xa9] sm:$0xff]
      %v2864 = vld [vmem:[%s2688 + $0xb1] sm:$0xff]
      %v2865 = vld [vmem:[%s2688 + $0xc1] sm:$0xff]
      %v2866 = vld [vmem:[%s2688 + $0xc9] sm:$0xff]
      %v2867 = vld [vmem:[%s2688 + $0xd9] sm:$0xff]
      %v2868 = vld [vmem:[%s2688 + $0xe1] sm:$0xff]
      %v2869 = vld [vmem:[%s2688 + $0xf1] sm:$0xff]
      %v2870 = vld [vmem:[%s2688 + $0xf9] sm:$0xff]
      %v2871 = vld [vmem:[%s2688 + $0x109] sm:$0xff]
      %v2872 = vld [vmem:[%s2688 + $0x111] sm:$0xff]
      %v2873 = vld [vmem:[%s2688 + $0x121] sm:$0xff]
      %v2874 = vld [vmem:[%s2688 + $0x129] sm:$0xff]
      %v2875 = vld [vmem:[%s2688 + $0x139] sm:$0xff]
      %v2876 = vld [vmem:[%s2688 + $0x141] sm:$0xff]
      %v2877 = vld [vmem:[%s2688 + $0x151] sm:$0xff]
      %v2878 = vld [vmem:[%s2688 + $0x159] sm:$0xff]
      %v2879 = vld [vmem:[%s2688 + $0x169] sm:$0xff]
      %v2880 = vld [vmem:[%s2688 + $0x171] sm:$0xff]
      %v2881 = vld [vmem:[%s2688 + $0x2] sm:$0xff]
      %v2882 = vld [vmem:[%s2688 + $0xa] sm:$0xff]
      %v2883 = vld [vmem:[%s2688 + $0x1a] sm:$0xff]
      %v2884 = vld [vmem:[%s2688 + $0x22] sm:$0xff]
      %v2885 = vld [vmem:[%s2688 + $0x32] sm:$0xff]
      %v2886 = vld [vmem:[%s2688 + $0x3a] sm:$0xff]
      %v2887 = vld [vmem:[%s2688 + $0x4a] sm:$0xff]
      %v2888 = vld [vmem:[%s2688 + $0x52] sm:$0xff]
      %v2889 = vld [vmem:[%s2688 + $0x62] sm:$0xff]
      %v2890 = vld [vmem:[%s2688 + $0x6a] sm:$0xff]
      %v2891 = vld [vmem:[%s2688 + $0x7a] sm:$0xff]
      %v2892 = vld [vmem:[%s2688 + $0x82] sm:$0xff]
      %v2893 = vld [vmem:[%s2688 + $0x92] sm:$0xff]
      %v2894 = vld [vmem:[%s2688 + $0x9a] sm:$0xff]
      %v2895 = vld [vmem:[%s2688 + $0xaa] sm:$0xff]
      %v2896 = vld [vmem:[%s2688 + $0xb2] sm:$0xff]
      %v2897 = vld [vmem:[%s2688 + $0xc2] sm:$0xff]
      %v2898 = vld [vmem:[%s2688 + $0xca] sm:$0xff]
      %v2899 = vld [vmem:[%s2688 + $0xda] sm:$0xff]
      %v2900 = vld [vmem:[%s2688 + $0xe2] sm:$0xff]
      %v2901 = vld [vmem:[%s2688 + $0xf2] sm:$0xff]
      %v2902 = vld [vmem:[%s2688 + $0xfa] sm:$0xff]
      %v2903 = vld [vmem:[%s2688 + $0x10a] sm:$0xff]
      %v2904 = vld [vmem:[%s2688 + $0x112] sm:$0xff]
      %v2905 = vld [vmem:[%s2688 + $0x122] sm:$0xff]
      %v2906 = vld [vmem:[%s2688 + $0x12a] sm:$0xff]
      %v2907 = vld [vmem:[%s2688 + $0x13a] sm:$0xff]
      %v2908 = vld [vmem:[%s2688 + $0x142] sm:$0xff]
      %v2909 = vld [vmem:[%s2688 + $0x152] sm:$0xff]
      %v2910 = vld [vmem:[%s2688 + $0x15a] sm:$0xff]
      %v2911 = vld [vmem:[%s2688 + $0x16a] sm:$0xff]
      %v2912 = vld [vmem:[%s2688 + $0x172] sm:$0xff]
      %s2913 = scalar_lea.vmem [#allocation3], 48
      %v2914 = vld [vmem:[%s2913] sm:$0xff]
      %v2915 = vld [vmem:[%s2913 + $0x8] sm:$0xff]
      %v2916 = vld [vmem:[%s2913 + $0x18] sm:$0xff]
      %v2917 = vld [vmem:[%s2913 + $0x20] sm:$0xff]
      %v2918 = vld [vmem:[%s2913 + $0x30] sm:$0xff]
      %v2919 = vld [vmem:[%s2913 + $0x38] sm:$0xff]
      %v2920 = vld [vmem:[%s2913 + $0x48] sm:$0xff]
      %v2921 = vld [vmem:[%s2913 + $0x50] sm:$0xff]
      %v2922 = vld [vmem:[%s2913 + $0x60] sm:$0xff]
      %v2923 = vld [vmem:[%s2913 + $0x68] sm:$0xff]
      %v2924 = vld [vmem:[%s2913 + $0x78] sm:$0xff]
      %v2925 = vld [vmem:[%s2913 + $0x80] sm:$0xff]
      %v2926 = vld [vmem:[%s2913 + $0x90] sm:$0xff]
      %v2927 = vld [vmem:[%s2913 + $0x98] sm:$0xff]
      %v2928 = vld [vmem:[%s2913 + $0xa8] sm:$0xff]
      %v2929 = vld [vmem:[%s2913 + $0xb0] sm:$0xff]
      %v2930 = vld [vmem:[%s2913 + $0xc0] sm:$0xff]
      %v2931 = vld [vmem:[%s2913 + $0xc8] sm:$0xff]
      %v2932 = vld [vmem:[%s2913 + $0xd8] sm:$0xff]
      %v2933 = vld [vmem:[%s2913 + $0xe0] sm:$0xff]
      %v2934 = vld [vmem:[%s2913 + $0xf0] sm:$0xff]
      %v2935 = vld [vmem:[%s2913 + $0xf8] sm:$0xff]
      %v2936 = vld [vmem:[%s2913 + $0x108] sm:$0xff]
      %v2937 = vld [vmem:[%s2913 + $0x110] sm:$0xff]
      %v2938 = vld [vmem:[%s2913 + $0x120] sm:$0xff]
      %v2939 = vld [vmem:[%s2913 + $0x128] sm:$0xff]
      %v2940 = vld [vmem:[%s2913 + $0x138] sm:$0xff]
      %v2941 = vld [vmem:[%s2913 + $0x140] sm:$0xff]
      %v2942 = vld [vmem:[%s2913 + $0x150] sm:$0xff]
      %v2943 = vld [vmem:[%s2913 + $0x158] sm:$0xff]
      %v2944 = vld [vmem:[%s2913 + $0x168] sm:$0xff]
      %v2945 = vld [vmem:[%s2913 + $0x170] sm:$0xff]
      %v2946 = vld [vmem:[%s2913 + $0x1] sm:$0xff]
      %v2947 = vld [vmem:[%s2913 + $0x9] sm:$0xff]
      %v2948 = vld [vmem:[%s2913 + $0x19] sm:$0xff]
      %v2949 = vld [vmem:[%s2913 + $0x21] sm:$0xff]
      %v2950 = vld [vmem:[%s2913 + $0x31] sm:$0xff]
      %v2951 = vld [vmem:[%s2913 + $0x39] sm:$0xff]
      %v2952 = vld [vmem:[%s2913 + $0x49] sm:$0xff]
      %v2953 = vld [vmem:[%s2913 + $0x51] sm:$0xff]
      %v2954 = vld [vmem:[%s2913 + $0x61] sm:$0xff]
      %v2955 = vld [vmem:[%s2913 + $0x69] sm:$0xff]
      %v2956 = vld [vmem:[%s2913 + $0x79] sm:$0xff]
      %v2957 = vld [vmem:[%s2913 + $0x81] sm:$0xff]
      %v2958 = vld [vmem:[%s2913 + $0x91] sm:$0xff]
      %v2959 = vld [vmem:[%s2913 + $0x99] sm:$0xff]
      %v2960 = vld [vmem:[%s2913 + $0xa9] sm:$0xff]
      %v2961 = vld [vmem:[%s2913 + $0xb1] sm:$0xff]
      %v2962 = vld [vmem:[%s2913 + $0xc1] sm:$0xff]
      %v2963 = vld [vmem:[%s2913 + $0xc9] sm:$0xff]
      %v2964 = vld [vmem:[%s2913 + $0xd9] sm:$0xff]
      %v2965 = vld [vmem:[%s2913 + $0xe1] sm:$0xff]
      %v2966 = vld [vmem:[%s2913 + $0xf1] sm:$0xff]
      %v2967 = vld [vmem:[%s2913 + $0xf9] sm:$0xff]
      %v2968 = vld [vmem:[%s2913 + $0x109] sm:$0xff]
      %v2969 = vld [vmem:[%s2913 + $0x111] sm:$0xff]
      %v2970 = vld [vmem:[%s2913 + $0x121] sm:$0xff]
      %v2971 = vld [vmem:[%s2913 + $0x129] sm:$0xff]
      %v2972 = vld [vmem:[%s2913 + $0x139] sm:$0xff]
      %v2973 = vld [vmem:[%s2913 + $0x141] sm:$0xff]
      %v2974 = vld [vmem:[%s2913 + $0x151] sm:$0xff]
      %v2975 = vld [vmem:[%s2913 + $0x159] sm:$0xff]
      %v2976 = vld [vmem:[%s2913 + $0x169] sm:$0xff]
      %v2977 = vld [vmem:[%s2913 + $0x171] sm:$0xff]
      %v2978 = vld [vmem:[%s2913 + $0x2] sm:$0xff]
      %v2979 = vld [vmem:[%s2913 + $0xa] sm:$0xff]
      %v2980 = vld [vmem:[%s2913 + $0x1a] sm:$0xff]
      %v2981 = vld [vmem:[%s2913 + $0x22] sm:$0xff]
      %v2982 = vld [vmem:[%s2913 + $0x32] sm:$0xff]
      %v2983 = vld [vmem:[%s2913 + $0x3a] sm:$0xff]
      %v2984 = vld [vmem:[%s2913 + $0x4a] sm:$0xff]
      %v2985 = vld [vmem:[%s2913 + $0x52] sm:$0xff]
      %v2986 = vld [vmem:[%s2913 + $0x62] sm:$0xff]
      %v2987 = vld [vmem:[%s2913 + $0x6a] sm:$0xff]
      %v2988 = vld [vmem:[%s2913 + $0x7a] sm:$0xff]
      %v2989 = vld [vmem:[%s2913 + $0x82] sm:$0xff]
      %v2990 = vld [vmem:[%s2913 + $0x92] sm:$0xff]
      %v2991 = vld [vmem:[%s2913 + $0x9a] sm:$0xff]
      %v2992 = vld [vmem:[%s2913 + $0xaa] sm:$0xff]
      %v2993 = vld [vmem:[%s2913 + $0xb2] sm:$0xff]
      %v2994 = vld [vmem:[%s2913 + $0xc2] sm:$0xff]
      %v2995 = vld [vmem:[%s2913 + $0xca] sm:$0xff]
      %v2996 = vld [vmem:[%s2913 + $0xda] sm:$0xff]
      %v2997 = vld [vmem:[%s2913 + $0xe2] sm:$0xff]
      %v2998 = vld [vmem:[%s2913 + $0xf2] sm:$0xff]
      %v2999 = vld [vmem:[%s2913 + $0xfa] sm:$0xff]
      %v3000 = vld [vmem:[%s2913 + $0x10a] sm:$0xff]
      %v3001 = vld [vmem:[%s2913 + $0x112] sm:$0xff]
      %v3002 = vld [vmem:[%s2913 + $0x122] sm:$0xff]
      %v3003 = vld [vmem:[%s2913 + $0x12a] sm:$0xff]
      %v3004 = vld [vmem:[%s2913 + $0x13a] sm:$0xff]
      %v3005 = vld [vmem:[%s2913 + $0x142] sm:$0xff]
      %v3006 = vld [vmem:[%s2913 + $0x152] sm:$0xff]
      %v3007 = vld [vmem:[%s2913 + $0x15a] sm:$0xff]
      %v3008 = vld [vmem:[%s2913 + $0x16a] sm:$0xff]
      %v3009 = vld [vmem:[%s2913 + $0x172] sm:$0xff]
      %3042 = vrot.lane.b32.xlu0 %v2753, 4
      %v3043 = vpop.permute.xlu0 %3042
      %3044 = vrot.lane.b32.xlu0 %v2754, 4
      %v3045 = vpop.permute.xlu0 %3044
      %3046 = vrot.lane.b32.xlu0 %v2755, 4
      %v3047 = vpop.permute.xlu0 %3046
      %3048 = vrot.lane.b32.xlu0 %v2756, 4
      %v3049 = vpop.permute.xlu0 %3048
      %3050 = vrot.lane.b32.xlu0 %v2757, 4
      %v3051 = vpop.permute.xlu0 %3050
      %3052 = vrot.lane.b32.xlu0 %v2758, 4
      %v3053 = vpop.permute.xlu0 %3052
      %3054 = vrot.lane.b32.xlu0 %v2759, 4
      %v3055 = vpop.permute.xlu0 %3054
      %3056 = vrot.lane.b32.xlu0 %v2760, 4
      %v3057 = vpop.permute.xlu0 %3056
      %3058 = vrot.lane.b32.xlu0 %v2761, 4
      %v3059 = vpop.permute.xlu0 %3058
      %3060 = vrot.lane.b32.xlu0 %v2762, 4
      %v3061 = vpop.permute.xlu0 %3060
      %3062 = vrot.lane.b32.xlu0 %v2763, 4
      %v3063 = vpop.permute.xlu0 %3062
      %3064 = vrot.lane.b32.xlu0 %v2764, 4
      %v3065 = vpop.permute.xlu0 %3064
      %3066 = vrot.lane.b32.xlu0 %v2765, 4
      %v3067 = vpop.permute.xlu0 %3066
      %3068 = vrot.lane.b32.xlu0 %v2766, 4
      %v3069 = vpop.permute.xlu0 %3068
      %3070 = vrot.lane.b32.xlu0 %v2767, 4
      %v3071 = vpop.permute.xlu0 %3070
      %3072 = vrot.lane.b32.xlu0 %v2768, 4
      %v3073 = vpop.permute.xlu0 %3072
      %3074 = vrot.lane.b32.xlu0 %v2769, 4
      %v3075 = vpop.permute.xlu0 %3074
      %3076 = vrot.lane.b32.xlu0 %v2770, 4
      %v3077 = vpop.permute.xlu0 %3076
      %3078 = vrot.lane.b32.xlu0 %v2771, 4
      %v3079 = vpop.permute.xlu0 %3078
      %3080 = vrot.lane.b32.xlu0 %v2772, 4
      %v3081 = vpop.permute.xlu0 %3080
      %3082 = vrot.lane.b32.xlu0 %v2773, 4
      %v3083 = vpop.permute.xlu0 %3082
      %3084 = vrot.lane.b32.xlu0 %v2774, 4
      %v3085 = vpop.permute.xlu0 %3084
      %3086 = vrot.lane.b32.xlu0 %v2775, 4
      %v3087 = vpop.permute.xlu0 %3086
      %3088 = vrot.lane.b32.xlu0 %v2776, 4
      %v3089 = vpop.permute.xlu0 %3088
      %3090 = vrot.lane.b32.xlu0 %v2777, 4
      %v3091 = vpop.permute.xlu0 %3090
      %3092 = vrot.lane.b32.xlu0 %v2778, 4
      %v3093 = vpop.permute.xlu0 %3092
      %3094 = vrot.lane.b32.xlu0 %v2779, 4
      %v3095 = vpop.permute.xlu0 %3094
      %3096 = vrot.lane.b32.xlu0 %v2780, 4
      %v3097 = vpop.permute.xlu0 %3096
      %3098 = vrot.lane.b32.xlu0 %v2781, 4
      %v3099 = vpop.permute.xlu0 %3098
      %3100 = vrot.lane.b32.xlu0 %v2782, 4
      %v3101 = vpop.permute.xlu0 %3100
      %3102 = vrot.lane.b32.xlu0 %v2783, 4
      %v3103 = vpop.permute.xlu0 %3102
      %3104 = vrot.lane.b32.xlu0 %v2784, 4
      %v3105 = vpop.permute.xlu0 %3104
      %3170 = vrot.lane.b32.xlu0 %v2785, 8
      %v3171 = vpop.permute.xlu0 %3170
      %3172 = vrot.lane.b32.xlu0 %v2786, 8
      %v3173 = vpop.permute.xlu0 %3172
      %3174 = vrot.lane.b32.xlu0 %v2787, 8
      %v3175 = vpop.permute.xlu0 %3174
      %3176 = vrot.lane.b32.xlu0 %v2788, 8
      %v3177 = vpop.permute.xlu0 %3176
      %3178 = vrot.lane.b32.xlu0 %v2789, 8
      %v3179 = vpop.permute.xlu0 %3178
      %3180 = vrot.lane.b32.xlu0 %v2790, 8
      %v3181 = vpop.permute.xlu0 %3180
      %3182 = vrot.lane.b32.xlu0 %v2791, 8
      %v3183 = vpop.permute.xlu0 %3182
      %3184 = vrot.lane.b32.xlu0 %v2792, 8
      %v3185 = vpop.permute.xlu0 %3184
      %3186 = vrot.lane.b32.xlu0 %v2793, 8
      %v3187 = vpop.permute.xlu0 %3186
      %3188 = vrot.lane.b32.xlu0 %v2794, 8
      %v3189 = vpop.permute.xlu0 %3188
      %3190 = vrot.lane.b32.xlu0 %v2795, 8
      %v3191 = vpop.permute.xlu0 %3190
      %3192 = vrot.lane.b32.xlu0 %v2796, 8
      %v3193 = vpop.permute.xlu0 %3192
      %3194 = vrot.lane.b32.xlu0 %v2797, 8
      %v3195 = vpop.permute.xlu0 %3194
      %3196 = vrot.lane.b32.xlu0 %v2798, 8
      %v3197 = vpop.permute.xlu0 %3196
      %3198 = vrot.lane.b32.xlu0 %v2799, 8
      %v3199 = vpop.permute.xlu0 %3198
      %3200 = vrot.lane.b32.xlu0 %v2800, 8
      %v3201 = vpop.permute.xlu0 %3200
      %3202 = vrot.lane.b32.xlu0 %v2801, 8
      %v3203 = vpop.permute.xlu0 %3202
      %3204 = vrot.lane.b32.xlu0 %v2802, 8
      %v3205 = vpop.permute.xlu0 %3204
      %3206 = vrot.lane.b32.xlu0 %v2803, 8
      %v3207 = vpop.permute.xlu0 %3206
      %3208 = vrot.lane.b32.xlu0 %v2804, 8
      %v3209 = vpop.permute.xlu0 %3208
      %3210 = vrot.lane.b32.xlu0 %v2805, 8
      %v3211 = vpop.permute.xlu0 %3210
      %3212 = vrot.lane.b32.xlu0 %v2806, 8
      %v3213 = vpop.permute.xlu0 %3212
      %3214 = vrot.lane.b32.xlu0 %v2807, 8
      %v3215 = vpop.permute.xlu0 %3214
      %3216 = vrot.lane.b32.xlu0 %v2808, 8
      %v3217 = vpop.permute.xlu0 %3216
      %3218 = vrot.lane.b32.xlu0 %v2809, 8
      %v3219 = vpop.permute.xlu0 %3218
      %3220 = vrot.lane.b32.xlu0 %v2810, 8
      %v3221 = vpop.permute.xlu0 %3220
      %3222 = vrot.lane.b32.xlu0 %v2811, 8
      %v3223 = vpop.permute.xlu0 %3222
      %3224 = vrot.lane.b32.xlu0 %v2812, 8
      %v3225 = vpop.permute.xlu0 %3224
      %3226 = vrot.lane.b32.xlu0 %v2813, 8
      %v3227 = vpop.permute.xlu0 %3226
      %3228 = vrot.lane.b32.xlu0 %v2814, 8
      %v3229 = vpop.permute.xlu0 %3228
      %3230 = vrot.lane.b32.xlu0 %v2815, 8
      %v3231 = vpop.permute.xlu0 %3230
      %3232 = vrot.lane.b32.xlu0 %v2816, 8
      %v3233 = vpop.permute.xlu0 %3232
      %3298 = vrot.lane.b32.xlu0 %v2817, 12
      %v3299 = vpop.permute.xlu0 %3298
      %3300 = vrot.lane.b32.xlu0 %v2818, 12
      %v3301 = vpop.permute.xlu0 %3300
      %3302 = vrot.lane.b32.xlu0 %v2819, 12
      %v3303 = vpop.permute.xlu0 %3302
      %3304 = vrot.lane.b32.xlu0 %v2820, 12
      %v3305 = vpop.permute.xlu0 %3304
      %3306 = vrot.lane.b32.xlu0 %v2821, 12
      %v3307 = vpop.permute.xlu0 %3306
      %3308 = vrot.lane.b32.xlu0 %v2822, 12
      %v3309 = vpop.permute.xlu0 %3308
      %3310 = vrot.lane.b32.xlu0 %v2823, 12
      %v3311 = vpop.permute.xlu0 %3310
      %3312 = vrot.lane.b32.xlu0 %v2824, 12
      %v3313 = vpop.permute.xlu0 %3312
      %3314 = vrot.lane.b32.xlu0 %v2825, 12
      %v3315 = vpop.permute.xlu0 %3314
      %3316 = vrot.lane.b32.xlu0 %v2826, 12
      %v3317 = vpop.permute.xlu0 %3316
      %3318 = vrot.lane.b32.xlu0 %v2827, 12
      %v3319 = vpop.permute.xlu0 %3318
      %3320 = vrot.lane.b32.xlu0 %v2828, 12
      %v3321 = vpop.permute.xlu0 %3320
      %3322 = vrot.lane.b32.xlu0 %v2829, 12
      %v3323 = vpop.permute.xlu0 %3322
      %3324 = vrot.lane.b32.xlu0 %v2830, 12
      %v3325 = vpop.permute.xlu0 %3324
      %3326 = vrot.lane.b32.xlu0 %v2831, 12
      %v3327 = vpop.permute.xlu0 %3326
      %3328 = vrot.lane.b32.xlu0 %v2832, 12
      %v3329 = vpop.permute.xlu0 %3328
      %3330 = vrot.lane.b32.xlu0 %v2833, 12
      %v3331 = vpop.permute.xlu0 %3330
      %3332 = vrot.lane.b32.xlu0 %v2834, 12
      %v3333 = vpop.permute.xlu0 %3332
      %3334 = vrot.lane.b32.xlu0 %v2835, 12
      %v3335 = vpop.permute.xlu0 %3334
      %3336 = vrot.lane.b32.xlu0 %v2836, 12
      %v3337 = vpop.permute.xlu0 %3336
      %3338 = vrot.lane.b32.xlu0 %v2837, 12
      %v3339 = vpop.permute.xlu0 %3338
      %3340 = vrot.lane.b32.xlu0 %v2838, 12
      %v3341 = vpop.permute.xlu0 %3340
      %3342 = vrot.lane.b32.xlu0 %v2839, 12
      %v3343 = vpop.permute.xlu0 %3342
      %3344 = vrot.lane.b32.xlu0 %v2840, 12
      %v3345 = vpop.permute.xlu0 %3344
      %3346 = vrot.lane.b32.xlu0 %v2841, 12
      %v3347 = vpop.permute.xlu0 %3346
      %3348 = vrot.lane.b32.xlu0 %v2842, 12
      %v3349 = vpop.permute.xlu0 %3348
      %3350 = vrot.lane.b32.xlu0 %v2843, 12
      %v3351 = vpop.permute.xlu0 %3350
      %3352 = vrot.lane.b32.xlu0 %v2844, 12
      %v3353 = vpop.permute.xlu0 %3352
      %3354 = vrot.lane.b32.xlu0 %v2845, 12
      %v3355 = vpop.permute.xlu0 %3354
      %3356 = vrot.lane.b32.xlu0 %v2846, 12
      %v3357 = vpop.permute.xlu0 %3356
      %3358 = vrot.lane.b32.xlu0 %v2847, 12
      %v3359 = vpop.permute.xlu0 %3358
      %3360 = vrot.lane.b32.xlu0 %v2848, 12
      %v3361 = vpop.permute.xlu0 %3360
      %3426 = vrot.lane.b32.xlu0 %v2849, 16
      %v3427 = vpop.permute.xlu0 %3426
      %3428 = vrot.lane.b32.xlu0 %v2850, 16
      %v3429 = vpop.permute.xlu0 %3428
      %3430 = vrot.lane.b32.xlu0 %v2851, 16
      %v3431 = vpop.permute.xlu0 %3430
      %3432 = vrot.lane.b32.xlu0 %v2852, 16
      %v3433 = vpop.permute.xlu0 %3432
      %3434 = vrot.lane.b32.xlu0 %v2853, 16
      %v3435 = vpop.permute.xlu0 %3434
      %3436 = vrot.lane.b32.xlu0 %v2854, 16
      %v3437 = vpop.permute.xlu0 %3436
      %3438 = vrot.lane.b32.xlu0 %v2855, 16
      %v3439 = vpop.permute.xlu0 %3438
      %3440 = vrot.lane.b32.xlu0 %v2856, 16
      %v3441 = vpop.permute.xlu0 %3440
      %3442 = vrot.lane.b32.xlu0 %v2857, 16
      %v3443 = vpop.permute.xlu0 %3442
      %3444 = vrot.lane.b32.xlu0 %v2858, 16
      %v3445 = vpop.permute.xlu0 %3444
      %3446 = vrot.lane.b32.xlu0 %v2859, 16
      %v3447 = vpop.permute.xlu0 %3446
      %3448 = vrot.lane.b32.xlu0 %v2860, 16
      %v3449 = vpop.permute.xlu0 %3448
      %3450 = vrot.lane.b32.xlu0 %v2861, 16
      %v3451 = vpop.permute.xlu0 %3450
      %3452 = vrot.lane.b32.xlu0 %v2862, 16
      %v3453 = vpop.permute.xlu0 %3452
      %3454 = vrot.lane.b32.xlu0 %v2863, 16
      %v3455 = vpop.permute.xlu0 %3454
      %3456 = vrot.lane.b32.xlu0 %v2864, 16
      %v3457 = vpop.permute.xlu0 %3456
      %3458 = vrot.lane.b32.xlu0 %v2865, 16
      %v3459 = vpop.permute.xlu0 %3458
      %3460 = vrot.lane.b32.xlu0 %v2866, 16
      %v3461 = vpop.permute.xlu0 %3460
      %3462 = vrot.lane.b32.xlu0 %v2867, 16
      %v3463 = vpop.permute.xlu0 %3462
      %3464 = vrot.lane.b32.xlu0 %v2868, 16
      %v3465 = vpop.permute.xlu0 %3464
      %3466 = vrot.lane.b32.xlu0 %v2869, 16
      %v3467 = vpop.permute.xlu0 %3466
      %3468 = vrot.lane.b32.xlu0 %v2870, 16
      %v3469 = vpop.permute.xlu0 %3468
      %3470 = vrot.lane.b32.xlu0 %v2871, 16
      %v3471 = vpop.permute.xlu0 %3470
      %3472 = vrot.lane.b32.xlu0 %v2872, 16
      %v3473 = vpop.permute.xlu0 %3472
      %3474 = vrot.lane.b32.xlu0 %v2873, 16
      %v3475 = vpop.permute.xlu0 %3474
      %3476 = vrot.lane.b32.xlu0 %v2874, 16
      %v3477 = vpop.permute.xlu0 %3476
      %3478 = vrot.lane.b32.xlu0 %v2875, 16
      %v3479 = vpop.permute.xlu0 %3478
      %3480 = vrot.lane.b32.xlu0 %v2876, 16
      %v3481 = vpop.permute.xlu0 %3480
      %3482 = vrot.lane.b32.xlu0 %v2877, 16
      %v3483 = vpop.permute.xlu0 %3482
      %3484 = vrot.lane.b32.xlu0 %v2878, 16
      %v3485 = vpop.permute.xlu0 %3484
      %3486 = vrot.lane.b32.xlu0 %v2879, 16
      %v3487 = vpop.permute.xlu0 %3486
      %3488 = vrot.lane.b32.xlu0 %v2880, 16
      %v3489 = vpop.permute.xlu0 %3488
      %3554 = vrot.lane.b32.xlu0 %v2881, 20
      %v3555 = vpop.permute.xlu0 %3554
      %3556 = vrot.lane.b32.xlu0 %v2882, 20
      %v3557 = vpop.permute.xlu0 %3556
      %3558 = vrot.lane.b32.xlu0 %v2883, 20
      %v3559 = vpop.permute.xlu0 %3558
      %3560 = vrot.lane.b32.xlu0 %v2884, 20
      %v3561 = vpop.permute.xlu0 %3560
      %3562 = vrot.lane.b32.xlu0 %v2885, 20
      %v3563 = vpop.permute.xlu0 %3562
      %3564 = vrot.lane.b32.xlu0 %v2886, 20
      %v3565 = vpop.permute.xlu0 %3564
      %3566 = vrot.lane.b32.xlu0 %v2887, 20
      %v3567 = vpop.permute.xlu0 %3566
      %3568 = vrot.lane.b32.xlu0 %v2888, 20
      %v3569 = vpop.permute.xlu0 %3568
      %3570 = vrot.lane.b32.xlu0 %v2889, 20
      %v3571 = vpop.permute.xlu0 %3570
      %3572 = vrot.lane.b32.xlu0 %v2890, 20
      %v3573 = vpop.permute.xlu0 %3572
      %3574 = vrot.lane.b32.xlu0 %v2891, 20
      %v3575 = vpop.permute.xlu0 %3574
      %3576 = vrot.lane.b32.xlu0 %v2892, 20
      %v3577 = vpop.permute.xlu0 %3576
      %3578 = vrot.lane.b32.xlu0 %v2893, 20
      %v3579 = vpop.permute.xlu0 %3578
      %3580 = vrot.lane.b32.xlu0 %v2894, 20
      %v3581 = vpop.permute.xlu0 %3580
      %3582 = vrot.lane.b32.xlu0 %v2895, 20
      %v3583 = vpop.permute.xlu0 %3582
      %3584 = vrot.lane.b32.xlu0 %v2896, 20
      %v3585 = vpop.permute.xlu0 %3584
      %3586 = vrot.lane.b32.xlu0 %v2897, 20
      %v3587 = vpop.permute.xlu0 %3586
      %3588 = vrot.lane.b32.xlu0 %v2898, 20
      %v3589 = vpop.permute.xlu0 %3588
      %3590 = vrot.lane.b32.xlu0 %v2899, 20
      %v3591 = vpop.permute.xlu0 %3590
      %3592 = vrot.lane.b32.xlu0 %v2900, 20
      %v3593 = vpop.permute.xlu0 %3592
      %3594 = vrot.lane.b32.xlu0 %v2901, 20
      %v3595 = vpop.permute.xlu0 %3594
      %3596 = vrot.lane.b32.xlu0 %v2902, 20
      %v3597 = vpop.permute.xlu0 %3596
      %3598 = vrot.lane.b32.xlu0 %v2903, 20
      %v3599 = vpop.permute.xlu0 %3598
      %3600 = vrot.lane.b32.xlu0 %v2904, 20
      %v3601 = vpop.permute.xlu0 %3600
      %3602 = vrot.lane.b32.xlu0 %v2905, 20
      %v3603 = vpop.permute.xlu0 %3602
      %3604 = vrot.lane.b32.xlu0 %v2906, 20
      %v3605 = vpop.permute.xlu0 %3604
      %3606 = vrot.lane.b32.xlu0 %v2907, 20
      %v3607 = vpop.permute.xlu0 %3606
      %3608 = vrot.lane.b32.xlu0 %v2908, 20
      %v3609 = vpop.permute.xlu0 %3608
      %3610 = vrot.lane.b32.xlu0 %v2909, 20
      %v3611 = vpop.permute.xlu0 %3610
      %3612 = vrot.lane.b32.xlu0 %v2910, 20
      %v3613 = vpop.permute.xlu0 %3612
      %3614 = vrot.lane.b32.xlu0 %v2911, 20
      %v3615 = vpop.permute.xlu0 %3614
      %3616 = vrot.lane.b32.xlu0 %v2912, 20
      %v3617 = vpop.permute.xlu0 %3616
      %3682 = vrot.lane.b32.xlu0 %v2914, 24
      %v3683 = vpop.permute.xlu0 %3682
      %3684 = vrot.lane.b32.xlu0 %v2915, 24
      %v3685 = vpop.permute.xlu0 %3684
      %3686 = vrot.lane.b32.xlu0 %v2916, 24
      %v3687 = vpop.permute.xlu0 %3686
      %3688 = vrot.lane.b32.xlu0 %v2917, 24
      %v3689 = vpop.permute.xlu0 %3688
      %3690 = vrot.lane.b32.xlu0 %v2918, 24
      %v3691 = vpop.permute.xlu0 %3690
      %3692 = vrot.lane.b32.xlu0 %v2919, 24
      %v3693 = vpop.permute.xlu0 %3692
      %3694 = vrot.lane.b32.xlu0 %v2920, 24
      %v3695 = vpop.permute.xlu0 %3694
      %3696 = vrot.lane.b32.xlu0 %v2921, 24
      %v3697 = vpop.permute.xlu0 %3696
      %3698 = vrot.lane.b32.xlu0 %v2922, 24
      %v3699 = vpop.permute.xlu0 %3698
      %3700 = vrot.lane.b32.xlu0 %v2923, 24
      %v3701 = vpop.permute.xlu0 %3700
      %3702 = vrot.lane.b32.xlu0 %v2924, 24
      %v3703 = vpop.permute.xlu0 %3702
      %3704 = vrot.lane.b32.xlu0 %v2925, 24
      %v3705 = vpop.permute.xlu0 %3704
      %3706 = vrot.lane.b32.xlu0 %v2926, 24
      %v3707 = vpop.permute.xlu0 %3706
      %3708 = vrot.lane.b32.xlu0 %v2927, 24
      %v3709 = vpop.permute.xlu0 %3708
      %3710 = vrot.lane.b32.xlu0 %v2928, 24
      %v3711 = vpop.permute.xlu0 %3710
      %3712 = vrot.lane.b32.xlu0 %v2929, 24
      %v3713 = vpop.permute.xlu0 %3712
      %3714 = vrot.lane.b32.xlu0 %v2930, 24
      %v3715 = vpop.permute.xlu0 %3714
      %3716 = vrot.lane.b32.xlu0 %v2931, 24
      %v3717 = vpop.permute.xlu0 %3716
      %3718 = vrot.lane.b32.xlu0 %v2932, 24
      %v3719 = vpop.permute.xlu0 %3718
      %3720 = vrot.lane.b32.xlu0 %v2933, 24
      %v3721 = vpop.permute.xlu0 %3720
      %3722 = vrot.lane.b32.xlu0 %v2934, 24
      %v3723 = vpop.permute.xlu0 %3722
      %3724 = vrot.lane.b32.xlu0 %v2935, 24
      %v3725 = vpop.permute.xlu0 %3724
      %3726 = vrot.lane.b32.xlu0 %v2936, 24
      %v3727 = vpop.permute.xlu0 %3726
      %3728 = vrot.lane.b32.xlu0 %v2937, 24
      %v3729 = vpop.permute.xlu0 %3728
      %3730 = vrot.lane.b32.xlu0 %v2938, 24
      %v3731 = vpop.permute.xlu0 %3730
      %3732 = vrot.lane.b32.xlu0 %v2939, 24
      %v3733 = vpop.permute.xlu0 %3732
      %3734 = vrot.lane.b32.xlu0 %v2940, 24
      %v3735 = vpop.permute.xlu0 %3734
      %3736 = vrot.lane.b32.xlu0 %v2941, 24
      %v3737 = vpop.permute.xlu0 %3736
      %3738 = vrot.lane.b32.xlu0 %v2942, 24
      %v3739 = vpop.permute.xlu0 %3738
      %3740 = vrot.lane.b32.xlu0 %v2943, 24
      %v3741 = vpop.permute.xlu0 %3740
      %3742 = vrot.lane.b32.xlu0 %v2944, 24
      %v3743 = vpop.permute.xlu0 %3742
      %3744 = vrot.lane.b32.xlu0 %v2945, 24
      %v3745 = vpop.permute.xlu0 %3744
      %3810 = vrot.lane.b32.xlu0 %v2946, 28
      %v3811 = vpop.permute.xlu0 %3810
      %3812 = vrot.lane.b32.xlu0 %v2947, 28
      %v3813 = vpop.permute.xlu0 %3812
      %3814 = vrot.lane.b32.xlu0 %v2948, 28
      %v3815 = vpop.permute.xlu0 %3814
      %3816 = vrot.lane.b32.xlu0 %v2949, 28
      %v3817 = vpop.permute.xlu0 %3816
      %3818 = vrot.lane.b32.xlu0 %v2950, 28
      %v3819 = vpop.permute.xlu0 %3818
      %3820 = vrot.lane.b32.xlu0 %v2951, 28
      %v3821 = vpop.permute.xlu0 %3820
      %3822 = vrot.lane.b32.xlu0 %v2952, 28
      %v3823 = vpop.permute.xlu0 %3822
      %3824 = vrot.lane.b32.xlu0 %v2953, 28
      %v3825 = vpop.permute.xlu0 %3824
      %3826 = vrot.lane.b32.xlu0 %v2954, 28
      %v3827 = vpop.permute.xlu0 %3826
      %3828 = vrot.lane.b32.xlu0 %v2955, 28
      %v3829 = vpop.permute.xlu0 %3828
      %3830 = vrot.lane.b32.xlu0 %v2956, 28
      %v3831 = vpop.permute.xlu0 %3830
      %3832 = vrot.lane.b32.xlu0 %v2957, 28
      %v3833 = vpop.permute.xlu0 %3832
      %3834 = vrot.lane.b32.xlu0 %v2958, 28
      %v3835 = vpop.permute.xlu0 %3834
      %3836 = vrot.lane.b32.xlu0 %v2959, 28
      %v3837 = vpop.permute.xlu0 %3836
      %3838 = vrot.lane.b32.xlu0 %v2960, 28
      %v3839 = vpop.permute.xlu0 %3838
      %3840 = vrot.lane.b32.xlu0 %v2961, 28
      %v3841 = vpop.permute.xlu0 %3840
      %3842 = vrot.lane.b32.xlu0 %v2962, 28
      %v3843 = vpop.permute.xlu0 %3842
      %3844 = vrot.lane.b32.xlu0 %v2963, 28
      %v3845 = vpop.permute.xlu0 %3844
      %3846 = vrot.lane.b32.xlu0 %v2964, 28
      %v3847 = vpop.permute.xlu0 %3846
      %3848 = vrot.lane.b32.xlu0 %v2965, 28
      %v3849 = vpop.permute.xlu0 %3848
      %3850 = vrot.lane.b32.xlu0 %v2966, 28
      %v3851 = vpop.permute.xlu0 %3850
      %3852 = vrot.lane.b32.xlu0 %v2967, 28
      %v3853 = vpop.permute.xlu0 %3852
      %3854 = vrot.lane.b32.xlu0 %v2968, 28
      %v3855 = vpop.permute.xlu0 %3854
      %3856 = vrot.lane.b32.xlu0 %v2969, 28
      %v3857 = vpop.permute.xlu0 %3856
      %3858 = vrot.lane.b32.xlu0 %v2970, 28
      %v3859 = vpop.permute.xlu0 %3858
      %3860 = vrot.lane.b32.xlu0 %v2971, 28
      %v3861 = vpop.permute.xlu0 %3860
      %3862 = vrot.lane.b32.xlu0 %v2972, 28
      %v3863 = vpop.permute.xlu0 %3862
      %3864 = vrot.lane.b32.xlu0 %v2973, 28
      %v3865 = vpop.permute.xlu0 %3864
      %3866 = vrot.lane.b32.xlu0 %v2974, 28
      %v3867 = vpop.permute.xlu0 %3866
      %3868 = vrot.lane.b32.xlu0 %v2975, 28
      %v3869 = vpop.permute.xlu0 %3868
      %3870 = vrot.lane.b32.xlu0 %v2976, 28
      %v3871 = vpop.permute.xlu0 %3870
      %3872 = vrot.lane.b32.xlu0 %v2977, 28
      %v3873 = vpop.permute.xlu0 %3872
      %3938 = vrot.lane.b32.xlu0 %v2978, 32
      %v3939 = vpop.permute.xlu0 %3938
      %3940 = vrot.lane.b32.xlu0 %v2979, 32
      %v3941 = vpop.permute.xlu0 %3940
      %3942 = vrot.lane.b32.xlu0 %v2980, 32
      %v3943 = vpop.permute.xlu0 %3942
      %3944 = vrot.lane.b32.xlu0 %v2981, 32
      %v3945 = vpop.permute.xlu0 %3944
      %3946 = vrot.lane.b32.xlu0 %v2982, 32
      %v3947 = vpop.permute.xlu0 %3946
      %3948 = vrot.lane.b32.xlu0 %v2983, 32
      %v3949 = vpop.permute.xlu0 %3948
      %3950 = vrot.lane.b32.xlu0 %v2984, 32
      %v3951 = vpop.permute.xlu0 %3950
      %3952 = vrot.lane.b32.xlu0 %v2985, 32
      %v3953 = vpop.permute.xlu0 %3952
      %3954 = vrot.lane.b32.xlu0 %v2986, 32
      %v3955 = vpop.permute.xlu0 %3954
      %3956 = vrot.lane.b32.xlu0 %v2987, 32
      %v3957 = vpop.permute.xlu0 %3956
      %3958 = vrot.lane.b32.xlu0 %v2988, 32
      %v3959 = vpop.permute.xlu0 %3958
      %3960 = vrot.lane.b32.xlu0 %v2989, 32
      %v3961 = vpop.permute.xlu0 %3960
      %3962 = vrot.lane.b32.xlu0 %v2990, 32
      %v3963 = vpop.permute.xlu0 %3962
      %3964 = vrot.lane.b32.xlu0 %v2991, 32
      %v3965 = vpop.permute.xlu0 %3964
      %3966 = vrot.lane.b32.xlu0 %v2992, 32
      %v3967 = vpop.permute.xlu0 %3966
      %3968 = vrot.lane.b32.xlu0 %v2993, 32
      %v3969 = vpop.permute.xlu0 %3968
      %3970 = vrot.lane.b32.xlu0 %v2994, 32
      %v3971 = vpop.permute.xlu0 %3970
      %3972 = vrot.lane.b32.xlu0 %v2995, 32
      %v3973 = vpop.permute.xlu0 %3972
      %3974 = vrot.lane.b32.xlu0 %v2996, 32
      %v3975 = vpop.permute.xlu0 %3974
      %3976 = vrot.lane.b32.xlu0 %v2997, 32
      %v3977 = vpop.permute.xlu0 %3976
      %3978 = vrot.lane.b32.xlu0 %v2998, 32
      %v3979 = vpop.permute.xlu0 %3978
      %3980 = vrot.lane.b32.xlu0 %v2999, 32
      %v3981 = vpop.permute.xlu0 %3980
      %3982 = vrot.lane.b32.xlu0 %v3000, 32
      %v3983 = vpop.permute.xlu0 %3982
      %3984 = vrot.lane.b32.xlu0 %v3001, 32
      %v3985 = vpop.permute.xlu0 %3984
      %3986 = vrot.lane.b32.xlu0 %v3002, 32
      %v3987 = vpop.permute.xlu0 %3986
      %3988 = vrot.lane.b32.xlu0 %v3003, 32
      %v3989 = vpop.permute.xlu0 %3988
      %3990 = vrot.lane.b32.xlu0 %v3004, 32
      %v3991 = vpop.permute.xlu0 %3990
      %3992 = vrot.lane.b32.xlu0 %v3005, 32
      %v3993 = vpop.permute.xlu0 %3992
      %3994 = vrot.lane.b32.xlu0 %v3006, 32
      %v3995 = vpop.permute.xlu0 %3994
      %3996 = vrot.lane.b32.xlu0 %v3007, 32
      %v3997 = vpop.permute.xlu0 %3996
      %3998 = vrot.lane.b32.xlu0 %v3008, 32
      %v3999 = vpop.permute.xlu0 %3998
      %4000 = vrot.lane.b32.xlu0 %v3009, 32
      %v4001 = vpop.permute.xlu0 %4000
      %v4034 = vsel %vm361, %v2721, %v3043
      %v4035 = vsel %vm361, %v2722, %v3045
      %v4036 = vsel %vm361, %v2723, %v3047
      %v4037 = vsel %vm361, %v2724, %v3049
      %v4038 = vsel %vm361, %v2725, %v3051
      %v4039 = vsel %vm361, %v2726, %v3053
      %v4040 = vsel %vm361, %v2727, %v3055
      %v4041 = vsel %vm361, %v2728, %v3057
      %v4042 = vsel %vm361, %v2729, %v3059
      %v4043 = vsel %vm361, %v2730, %v3061
      %v4044 = vsel %vm361, %v2731, %v3063
      %v4045 = vsel %vm361, %v2732, %v3065
      %v4046 = vsel %vm361, %v2733, %v3067
      %v4047 = vsel %vm361, %v2734, %v3069
      %v4048 = vsel %vm361, %v2735, %v3071
      %v4049 = vsel %vm361, %v2736, %v3073
      %v4050 = vsel %vm361, %v2737, %v3075
      %v4051 = vsel %vm361, %v2738, %v3077
      %v4052 = vsel %vm361, %v2739, %v3079
      %v4053 = vsel %vm361, %v2740, %v3081
      %v4054 = vsel %vm361, %v2741, %v3083
      %v4055 = vsel %vm361, %v2742, %v3085
      %v4056 = vsel %vm361, %v2743, %v3087
      %v4057 = vsel %vm361, %v2744, %v3089
      %v4058 = vsel %vm361, %v2745, %v3091
      %v4059 = vsel %vm361, %v2746, %v3093
      %v4060 = vsel %vm361, %v2747, %v3095
      %v4061 = vsel %vm361, %v2748, %v3097
      %v4062 = vsel %vm361, %v2749, %v3099
      %v4063 = vsel %vm361, %v2750, %v3101
      %v4064 = vsel %vm361, %v2751, %v3103
      %v4065 = vsel %vm361, %v2752, %v3105
      %v4066 = vsel %vm272, %v4034, %v3171
      %v4067 = vsel %vm272, %v4035, %v3173
      %v4068 = vsel %vm272, %v4036, %v3175
      %v4069 = vsel %vm272, %v4037, %v3177
      %v4070 = vsel %vm272, %v4038, %v3179
      %v4071 = vsel %vm272, %v4039, %v3181
      %v4072 = vsel %vm272, %v4040, %v3183
      %v4073 = vsel %vm272, %v4041, %v3185
      %v4074 = vsel %vm272, %v4042, %v3187
      %v4075 = vsel %vm272, %v4043, %v3189
      %v4076 = vsel %vm272, %v4044, %v3191
      %v4077 = vsel %vm272, %v4045, %v3193
      %v4078 = vsel %vm272, %v4046, %v3195
      %v4079 = vsel %vm272, %v4047, %v3197
      %v4080 = vsel %vm272, %v4048, %v3199
      %v4081 = vsel %vm272, %v4049, %v3201
      %v4082 = vsel %vm272, %v4050, %v3203
      %v4083 = vsel %vm272, %v4051, %v3205
      %v4084 = vsel %vm272, %v4052, %v3207
      %v4085 = vsel %vm272, %v4053, %v3209
      %v4086 = vsel %vm272, %v4054, %v3211
      %v4087 = vsel %vm272, %v4055, %v3213
      %v4088 = vsel %vm272, %v4056, %v3215
      %v4089 = vsel %vm272, %v4057, %v3217
      %v4090 = vsel %vm272, %v4058, %v3219
      %v4091 = vsel %vm272, %v4059, %v3221
      %v4092 = vsel %vm272, %v4060, %v3223
      %v4093 = vsel %vm272, %v4061, %v3225
      %v4094 = vsel %vm272, %v4062, %v3227
      %v4095 = vsel %vm272, %v4063, %v3229
      %v4096 = vsel %vm272, %v4064, %v3231
      %v4097 = vsel %vm272, %v4065, %v3233
      %vm4098 = vcmask 97280
      %v4099 = vsel %vm4098, %v4066, %v3299
      %v4100 = vsel %vm4098, %v4067, %v3301
      %v4101 = vsel %vm4098, %v4068, %v3303
      %v4102 = vsel %vm4098, %v4069, %v3305
      %v4103 = vsel %vm4098, %v4070, %v3307
      %v4104 = vsel %vm4098, %v4071, %v3309
      %v4105 = vsel %vm4098, %v4072, %v3311
      %v4106 = vsel %vm4098, %v4073, %v3313
      %v4107 = vsel %vm4098, %v4074, %v3315
      %v4108 = vsel %vm4098, %v4075, %v3317
      %v4109 = vsel %vm4098, %v4076, %v3319
      %v4110 = vsel %vm4098, %v4077, %v3321
      %v4111 = vsel %vm4098, %v4078, %v3323
      %v4112 = vsel %vm4098, %v4079, %v3325
      %v4113 = vsel %vm4098, %v4080, %v3327
      %v4114 = vsel %vm4098, %v4081, %v3329
      %v4115 = vsel %vm4098, %v4082, %v3331
      %v4116 = vsel %vm4098, %v4083, %v3333
      %v4117 = vsel %vm4098, %v4084, %v3335
      %v4118 = vsel %vm4098, %v4085, %v3337
      %v4119 = vsel %vm4098, %v4086, %v3339
      %v4120 = vsel %vm4098, %v4087, %v3341
      %v4121 = vsel %vm4098, %v4088, %v3343
      %v4122 = vsel %vm4098, %v4089, %v3345
      %v4123 = vsel %vm4098, %v4090, %v3347
      %v4124 = vsel %vm4098, %v4091, %v3349
      %v4125 = vsel %vm4098, %v4092, %v3351
      %v4126 = vsel %vm4098, %v4093, %v3353
      %v4127 = vsel %vm4098, %v4094, %v3355
      %v4128 = vsel %vm4098, %v4095, %v3357
      %v4129 = vsel %vm4098, %v4096, %v3359
      %v4130 = vsel %vm4098, %v4097, %v3361
      %v4131 = vsel %vm1968, %v4099, %v3427
      %v4132 = vsel %vm1968, %v4100, %v3429
      %v4133 = vsel %vm1968, %v4101, %v3431
      %v4134 = vsel %vm1968, %v4102, %v3433
      %v4135 = vsel %vm1968, %v4103, %v3435
      %v4136 = vsel %vm1968, %v4104, %v3437
      %v4137 = vsel %vm1968, %v4105, %v3439
      %v4138 = vsel %vm1968, %v4106, %v3441
      %v4139 = vsel %vm1968, %v4107, %v3443
      %v4140 = vsel %vm1968, %v4108, %v3445
      %v4141 = vsel %vm1968, %v4109, %v3447
      %v4142 = vsel %vm1968, %v4110, %v3449
      %v4143 = vsel %vm1968, %v4111, %v3451
      %v4144 = vsel %vm1968, %v4112, %v3453
      %v4145 = vsel %vm1968, %v4113, %v3455
      %v4146 = vsel %vm1968, %v4114, %v3457
      %v4147 = vsel %vm1968, %v4115, %v3459
      %v4148 = vsel %vm1968, %v4116, %v3461
      %v4149 = vsel %vm1968, %v4117, %v3463
      %v4150 = vsel %vm1968, %v4118, %v3465
      %v4151 = vsel %vm1968, %v4119, %v3467
      %v4152 = vsel %vm1968, %v4120, %v3469
      %v4153 = vsel %vm1968, %v4121, %v3471
      %v4154 = vsel %vm1968, %v4122, %v3473
      %v4155 = vsel %vm1968, %v4123, %v3475
      %v4156 = vsel %vm1968, %v4124, %v3477
      %v4157 = vsel %vm1968, %v4125, %v3479
      %v4158 = vsel %vm1968, %v4126, %v3481
      %v4159 = vsel %vm1968, %v4127, %v3483
      %v4160 = vsel %vm1968, %v4128, %v3485
      %v4161 = vsel %vm1968, %v4129, %v3487
      %v4162 = vsel %vm1968, %v4130, %v3489
      %vm4163 = vcmask 162816
      %v4164 = vsel %vm4163, %v4131, %v3555
      %v4165 = vsel %vm4163, %v4132, %v3557
      %v4166 = vsel %vm4163, %v4133, %v3559
      %v4167 = vsel %vm4163, %v4134, %v3561
      %v4168 = vsel %vm4163, %v4135, %v3563
      %v4169 = vsel %vm4163, %v4136, %v3565
      %v4170 = vsel %vm4163, %v4137, %v3567
      %v4171 = vsel %vm4163, %v4138, %v3569
      %v4172 = vsel %vm4163, %v4139, %v3571
      %v4173 = vsel %vm4163, %v4140, %v3573
      %v4174 = vsel %vm4163, %v4141, %v3575
      %v4175 = vsel %vm4163, %v4142, %v3577
      %v4176 = vsel %vm4163, %v4143, %v3579
      %v4177 = vsel %vm4163, %v4144, %v3581
      %v4178 = vsel %vm4163, %v4145, %v3583
      %v4179 = vsel %vm4163, %v4146, %v3585
      %v4180 = vsel %vm4163, %v4147, %v3587
      %v4181 = vsel %vm4163, %v4148, %v3589
      %v4182 = vsel %vm4163, %v4149, %v3591
      %v4183 = vsel %vm4163, %v4150, %v3593
      %v4184 = vsel %vm4163, %v4151, %v3595
      %v4185 = vsel %vm4163, %v4152, %v3597
      %v4186 = vsel %vm4163, %v4153, %v3599
      %v4187 = vsel %vm4163, %v4154, %v3601
      %v4188 = vsel %vm4163, %v4155, %v3603
      %v4189 = vsel %vm4163, %v4156, %v3605
      %v4190 = vsel %vm4163, %v4157, %v3607
      %v4191 = vsel %vm4163, %v4158, %v3609
      %v4192 = vsel %vm4163, %v4159, %v3611
      %v4193 = vsel %vm4163, %v4160, %v3613
      %v4194 = vsel %vm4163, %v4161, %v3615
      %v4195 = vsel %vm4163, %v4162, %v3617
      %v4196 = vsel %vm2001, %v4164, %v3683
      %v4197 = vsel %vm2001, %v4165, %v3685
      %v4198 = vsel %vm2001, %v4166, %v3687
      %v4199 = vsel %vm2001, %v4167, %v3689
      %v4200 = vsel %vm2001, %v4168, %v3691
      %v4201 = vsel %vm2001, %v4169, %v3693
      %v4202 = vsel %vm2001, %v4170, %v3695
      %v4203 = vsel %vm2001, %v4171, %v3697
      %v4204 = vsel %vm2001, %v4172, %v3699
      %v4205 = vsel %vm2001, %v4173, %v3701
      %v4206 = vsel %vm2001, %v4174, %v3703
      %v4207 = vsel %vm2001, %v4175, %v3705
      %v4208 = vsel %vm2001, %v4176, %v3707
      %v4209 = vsel %vm2001, %v4177, %v3709
      %v4210 = vsel %vm2001, %v4178, %v3711
      %v4211 = vsel %vm2001, %v4179, %v3713
      %v4212 = vsel %vm2001, %v4180, %v3715
      %v4213 = vsel %vm2001, %v4181, %v3717
      %v4214 = vsel %vm2001, %v4182, %v3719
      %v4215 = vsel %vm2001, %v4183, %v3721
      %v4216 = vsel %vm2001, %v4184, %v3723
      %v4217 = vsel %vm2001, %v4185, %v3725
      %v4218 = vsel %vm2001, %v4186, %v3727
      %v4219 = vsel %vm2001, %v4187, %v3729
      %v4220 = vsel %vm2001, %v4188, %v3731
      %v4221 = vsel %vm2001, %v4189, %v3733
      %v4222 = vsel %vm2001, %v4190, %v3735
      %v4223 = vsel %vm2001, %v4191, %v3737
      %v4224 = vsel %vm2001, %v4192, %v3739
      %v4225 = vsel %vm2001, %v4193, %v3741
      %v4226 = vsel %vm2001, %v4194, %v3743
      %v4227 = vsel %vm2001, %v4195, %v3745
      %vm4228 = vcmask 228352
      %v4229 = vsel %vm4228, %v4196, %v3811
      %v4230 = vsel %vm4228, %v4197, %v3813
      %v4231 = vsel %vm4228, %v4198, %v3815
      %v4232 = vsel %vm4228, %v4199, %v3817
      %v4233 = vsel %vm4228, %v4200, %v3819
      %v4234 = vsel %vm4228, %v4201, %v3821
      %v4235 = vsel %vm4228, %v4202, %v3823
      %v4236 = vsel %vm4228, %v4203, %v3825
      %v4237 = vsel %vm4228, %v4204, %v3827
      %v4238 = vsel %vm4228, %v4205, %v3829
      %v4239 = vsel %vm4228, %v4206, %v3831
      %v4240 = vsel %vm4228, %v4207, %v3833
      %v4241 = vsel %vm4228, %v4208, %v3835
      %v4242 = vsel %vm4228, %v4209, %v3837
      %v4243 = vsel %vm4228, %v4210, %v3839
      %v4244 = vsel %vm4228, %v4211, %v3841
      %v4245 = vsel %vm4228, %v4212, %v3843
      %v4246 = vsel %vm4228, %v4213, %v3845
      %v4247 = vsel %vm4228, %v4214, %v3847
      %v4248 = vsel %vm4228, %v4215, %v3849
      %v4249 = vsel %vm4228, %v4216, %v3851
      %v4250 = vsel %vm4228, %v4217, %v3853
      %v4251 = vsel %vm4228, %v4218, %v3855
      %v4252 = vsel %vm4228, %v4219, %v3857
      %v4253 = vsel %vm4228, %v4220, %v3859
      %v4254 = vsel %vm4228, %v4221, %v3861
      %v4255 = vsel %vm4228, %v4222, %v3863
      %v4256 = vsel %vm4228, %v4223, %v3865
      %v4257 = vsel %vm4228, %v4224, %v3867
      %v4258 = vsel %vm4228, %v4225, %v3869
      %v4259 = vsel %vm4228, %v4226, %v3871
      %v4260 = vsel %vm4228, %v4227, %v3873
      %v4261 = vsel %vm2034, %v4229, %v3939
      %v4262 = vsel %vm2034, %v4230, %v3941
      %v4263 = vsel %vm2034, %v4231, %v3943
      %v4264 = vsel %vm2034, %v4232, %v3945
      %v4265 = vsel %vm2034, %v4233, %v3947
      %v4266 = vsel %vm2034, %v4234, %v3949
      %v4267 = vsel %vm2034, %v4235, %v3951
      %v4268 = vsel %vm2034, %v4236, %v3953
      %v4269 = vsel %vm2034, %v4237, %v3955
      %v4270 = vsel %vm2034, %v4238, %v3957
      %v4271 = vsel %vm2034, %v4239, %v3959
      %v4272 = vsel %vm2034, %v4240, %v3961
      %v4273 = vsel %vm2034, %v4241, %v3963
      %v4274 = vsel %vm2034, %v4242, %v3965
      %v4275 = vsel %vm2034, %v4243, %v3967
      %v4276 = vsel %vm2034, %v4244, %v3969
      %v4277 = vsel %vm2034, %v4245, %v3971
      %v4278 = vsel %vm2034, %v4246, %v3973
      %v4279 = vsel %vm2034, %v4247, %v3975
      %v4280 = vsel %vm2034, %v4248, %v3977
      %v4281 = vsel %vm2034, %v4249, %v3979
      %v4282 = vsel %vm2034, %v4250, %v3981
      %v4283 = vsel %vm2034, %v4251, %v3983
      %v4284 = vsel %vm2034, %v4252, %v3985
      %v4285 = vsel %vm2034, %v4253, %v3987
      %v4286 = vsel %vm2034, %v4254, %v3989
      %v4287 = vsel %vm2034, %v4255, %v3991
      %v4288 = vsel %vm2034, %v4256, %v3993
      %v4289 = vsel %vm2034, %v4257, %v3995
      %v4290 = vsel %vm2034, %v4258, %v3997
      %v4291 = vsel %vm2034, %v4259, %v3999
      %v4292 = vsel %vm2034, %v4260, %v4001
      %v4293 = vld [vmem:[%s4] sm:$0xff]
      %v4294 = vld [vmem:[%s4 + $0x8] sm:$0xff]
      %v4295 = vld [vmem:[%s4 + $0x10] sm:$0xff]
      %v4296 = vld [vmem:[%s4 + $0x18] sm:$0xff]
      %v4297 = vld [vmem:[%s4 + $0x20] sm:$0xf]
      %v4298 = vld [vmem:[%s5] sm:$0x1]
      %v4300 = vlaneseq
      %v4301 = vshrl.u32 %v4300, 7
      %v4302 = vsub.s32 0, %v4301
      %v4303 = vrot.slane %v4298, %v4302
      %vm4305 = vcmask 293888
      %v4307 = vsel %vm4305, %v4261, 0
      %v4310 = vsel %vm4305, %v4262, 0
      %v4313 = vsel %vm4305, %v4263, 0
      %v4316 = vsel %vm4305, %v4264, 0
      %v4319 = vsel %vm4305, %v4265, 0
      %v4322 = vsel %vm4305, %v4266, 0
      %v4325 = vsel %vm4305, %v4267, 0
      %v4328 = vsel %vm4305, %v4268, 0
      %v4331 = vsel %vm4305, %v4269, 0
      %v4334 = vsel %vm4305, %v4270, 0
      %v4337 = vsel %vm4305, %v4271, 0
      %v4340 = vsel %vm4305, %v4272, 0
      %v4343 = vsel %vm4305, %v4273, 0
      %v4346 = vsel %vm4305, %v4274, 0
      %v4349 = vsel %vm4305, %v4275, 0
      %v4352 = vsel %vm4305, %v4276, 0
      %v4355 = vsel %vm4305, %v4277, 0
      %v4358 = vsel %vm4305, %v4278, 0
      %v4361 = vsel %vm4305, %v4279, 0
      %v4364 = vsel %vm4305, %v4280, 0
      %v4367 = vsel %vm4305, %v4281, 0
      %v4370 = vsel %vm4305, %v4282, 0
      %v4373 = vsel %vm4305, %v4283, 0
      %v4376 = vsel %vm4305, %v4284, 0
      %v4379 = vsel %vm4305, %v4285, 0
      %v4382 = vsel %vm4305, %v4286, 0
      %v4385 = vsel %vm4305, %v4287, 0
      %v4388 = vsel %vm4305, %v4288, 0
      %v4391 = vsel %vm4305, %v4289, 0
      %v4394 = vsel %vm4305, %v4290, 0
      %v4397 = vsel %vm4305, %v4291, 0
      %v4400 = vsel %vm4305, %v4292, 0
      %vm4402 = vcmask 1043456
      %v4404 = vsel %vm4402, %v4297, 0
      %4406 = vmatprep.subr.mxu0 0.0
      %4407 = vmatpush1.msra.mxu0 %v4293
      %4408 = vmatprep.subr.mxu0 0.0
      %4409 = vmatpush1.msra.mxu0 %v4294
      %4410 = vmatprep.subr.mxu0 0.0
      %4411 = vmatpush1.msra.mxu0 %v4295
      %4412 = vmatprep.subr.mxu0 0.0
      %4413 = vmatpush1.msra.mxu0 %v4296
      %4414 = vmatprep.subr.mxu0 0.0
      %4415 = vmatpush1.msra.mxu0 %v4404
      %4416 = vmatprep.subr.mxu0 0.0
      %4417 = vmatpush1.msra.mxu0 0.0
      %4418 = vmatprep.subr.mxu0 0.0
      %4419 = vmatpush1.msra.mxu0 0.0
      %4420 = vmatprep.subr.mxu0 0.0
      %4421 = vmatpush1.msra.mxu0 0.0
      %4422 = vmatprep.subr.mxu0 0.0
      %4423 = vmatpush1.msra.mxu0 0.0
      %4424 = vmatprep.subr.mxu0 0.0
      %4425 = vmatpush1.msra.mxu0 0.0
      %4426 = vmatprep.subr.mxu0 0.0
      %4427 = vmatpush1.msra.mxu0 0.0
      %4428 = vmatprep.subr.mxu0 0.0
      %4429 = vmatpush1.msra.mxu0 0.0
      %4430 = vmatprep.subr.mxu0 0.0
      %4431 = vmatpush1.msra.mxu0 0.0
      %4432 = vmatprep.subr.mxu0 0.0
      %4433 = vmatpush1.msra.mxu0 0.0
      %4434 = vmatprep.subr.mxu0 0.0
      %4435 = vmatpush1.msra.mxu0 0.0
      %4436 = vmatprep.subr.mxu0 0.0
      %4437 = vmatpush1.msra.mxu0 0.0
      %4438 = vmatprep.subr.mxu0 0.0
      %4439 = vmatpush1.msra.mxu0 0.0
      %4440 = vmatprep.subr.mxu0 0.0
      %4441 = vmatpush1.msra.mxu0 0.0
      %4442 = vmatprep.subr.mxu0 0.0
      %4443 = vmatpush1.msra.mxu0 0.0
      %4444 = vmatprep.subr.mxu0 0.0
      %4445 = vmatpush1.msra.mxu0 0.0
      %4446 = vmatprep.subr.mxu0 0.0
      %4447 = vmatpush1.msra.mxu0 0.0
      %4448 = vmatprep.subr.mxu0 0.0
      %4449 = vmatpush1.msra.mxu0 0.0
      %4450 = vmatprep.subr.mxu0 0.0
      %4451 = vmatpush1.msra.mxu0 0.0
      %4452 = vmatprep.subr.mxu0 0.0
      %4453 = vmatpush1.msra.mxu0 0.0
      %4454 = vmatprep.subr.mxu0 0.0
      %4455 = vmatpush1.msra.mxu0 0.0
      %4456 = vmatprep.subr.mxu0 0.0
      %4457 = vmatpush1.msra.mxu0 0.0
      %4458 = vmatprep.subr.mxu0 0.0
      %4459 = vmatpush1.msra.mxu0 0.0
      %4460 = vmatprep.subr.mxu0 0.0
      %4461 = vmatpush1.msra.mxu0 0.0
      %4462 = vmatprep.subr.mxu0 0.0
      %4463 = vmatpush1.msra.mxu0 0.0
      %4464 = vmatprep.subr.mxu0 0.0
      %4465 = vmatpush1.msra.mxu0 0.0
      %4466 = vmatprep.subr.mxu0 0.0
      %4467 = vmatpush1.msra.mxu0 0.0
      %4468 = vmatprep.subr.mxu0 0.0
      %4469 = vmatpush1.msra.mxu0 0.0
      %4470 = vmatprep.mubr.f32.mxu0 0.0
      %4471 = vmatmul.mubr.f32.gmra.mrb[0].mxu0 %v4307
      %v4472 = vpop.f32.mrb[0].mxu0
      %v4473 = vadd.f32 %v4303, %v4472
      %v4474 = vpop.f32.mrb[0].mxu0
      %4475 = vmatprep.mubr.f32.mxu0 0.0
      %4476 = vmatmul.mubr.f32.gmra.mrb[0].mxu0 %v4310
      %v4477 = vpop.f32.mrb[0].mxu0
      %v4478 = vadd.f32 %v4303, %v4477
      %v4479 = vpop.f32.mrb[0].mxu0
      %4480 = vmatprep.mubr.f32.mxu0 0.0
      %4481 = vmatmul.mubr.f32.gmra.mrb[0].mxu0 %v4313
      %v4482 = vpop.f32.mrb[0].mxu0
      %v4483 = vadd.f32 %v4303, %v4482
      %v4484 = vpop.f32.mrb[0].mxu0
      %4485 = vmatprep.mubr.f32.mxu0 0.0
      %4486 = vmatmul.mubr.f32.gmra.mrb[0].mxu0 %v4316
      %v4487 = vpop.f32.mrb[0].mxu0
      %v4488 = vadd.f32 %v4303, %v4487
      %v4489 = vpop.f32.mrb[0].mxu0
      %4490 = vmatprep.mubr.f32.mxu0 0.0
      %4491 = vmatmul.mubr.f32.gmra.mrb[0].mxu0 %v4319
      %v4492 = vpop.f32.mrb[0].mxu0
      %v4493 = vadd.f32 %v4303, %v4492
      %v4494 = vpop.f32.mrb[0].mxu0
      %4495 = vmatprep.mubr.f32.mxu0 0.0
      %4496 = vmatmul.mubr.f32.gmra.mrb[0].mxu0 %v4322
      %v4497 = vpop.f32.mrb[0].mxu0
      %v4498 = vadd.f32 %v4303, %v4497
      %v4499 = vpop.f32.mrb[0].mxu0
      %4500 = vmatprep.mubr.f32.mxu0 0.0
      %4501 = vmatmul.mubr.f32.gmra.mrb[0].mxu0 %v4325
      %v4502 = vpop.f32.mrb[0].mxu0
      %v4503 = vadd.f32 %v4303, %v4502
      %v4504 = vpop.f32.mrb[0].mxu0
      %4505 = vmatprep.mubr.f32.mxu0 0.0
      %4506 = vmatmul.mubr.f32.gmra.mrb[0].mxu0 %v4328
      %v4507 = vpop.f32.mrb[0].mxu0
      %v4508 = vadd.f32 %v4303, %v4507
      %v4509 = vpop.f32.mrb[0].mxu0
      %4510 = vmatprep.mubr.f32.mxu0 0.0
      %4511 = vmatmul.mubr.f32.gmra.mrb[0].mxu0 %v4331
      %v4512 = vpop.f32.mrb[0].mxu0
      %v4513 = vadd.f32 %v4303, %v4512
      %v4514 = vpop.f32.mrb[0].mxu0
      %4515 = vmatprep.mubr.f32.mxu0 0.0
      %4516 = vmatmul.mubr.f32.gmra.mrb[0].mxu0 %v4334
      %v4517 = vpop.f32.mrb[0].mxu0
      %v4518 = vadd.f32 %v4303, %v4517
      %v4519 = vpop.f32.mrb[0].mxu0
      %4520 = vmatprep.mubr.f32.mxu0 0.0
      %4521 = vmatmul.mubr.f32.gmra.mrb[0].mxu0 %v4337
      %v4522 = vpop.f32.mrb[0].mxu0
      %v4523 = vadd.f32 %v4303, %v4522
      %v4524 = vpop.f32.mrb[0].mxu0
      %4525 = vmatprep.mubr.f32.mxu0 0.0
      %4526 = vmatmul.mubr.f32.gmra.mrb[0].mxu0 %v4340
      %v4527 = vpop.f32.mrb[0].mxu0
      %v4528 = vadd.f32 %v4303, %v4527
      %v4529 = vpop.f32.mrb[0].mxu0
      %4530 = vmatprep.mubr.f32.mxu0 0.0
      %4531 = vmatmul.mubr.f32.gmra.mrb[0].mxu0 %v4343
      %v4532 = vpop.f32.mrb[0].mxu0
      %v4533 = vadd.f32 %v4303, %v4532
      %v4534 = vpop.f32.mrb[0].mxu0
      %4535 = vmatprep.mubr.f32.mxu0 0.0
      %4536 = vmatmul.mubr.f32.gmra.mrb[0].mxu0 %v4346
      %v4537 = vpop.f32.mrb[0].mxu0
      %v4538 = vadd.f32 %v4303, %v4537
      %v4539 = vpop.f32.mrb[0].mxu0
      %4540 = vmatprep.mubr.f32.mxu0 0.0
      %4541 = vmatmul.mubr.f32.gmra.mrb[0].mxu0 %v4349
      %v4542 = vpop.f32.mrb[0].mxu0
      %v4543 = vadd.f32 %v4303, %v4542
      %v4544 = vpop.f32.mrb[0].mxu0
      %4545 = vmatprep.mubr.f32.mxu0 0.0
      %4546 = vmatmul.mubr.f32.gmra.mrb[0].mxu0 %v4352
      %v4547 = vpop.f32.mrb[0].mxu0
      %v4548 = vadd.f32 %v4303, %v4547
      %v4549 = vpop.f32.mrb[0].mxu0
      %4550 = vmatprep.mubr.f32.mxu0 0.0
      %4551 = vmatmul.mubr.f32.gmra.mrb[0].mxu0 %v4355
      %v4552 = vpop.f32.mrb[0].mxu0
      %v4553 = vadd.f32 %v4303, %v4552
      %v4554 = vpop.f32.mrb[0].mxu0
      %4555 = vmatprep.mubr.f32.mxu0 0.0
      %4556 = vmatmul.mubr.f32.gmra.mrb[0].mxu0 %v4358
      %v4557 = vpop.f32.mrb[0].mxu0
      %v4558 = vadd.f32 %v4303, %v4557
      %v4559 = vpop.f32.mrb[0].mxu0
      %4560 = vmatprep.mubr.f32.mxu0 0.0
      %4561 = vmatmul.mubr.f32.gmra.mrb[0].mxu0 %v4361
      %v4562 = vpop.f32.mrb[0].mxu0
      %v4563 = vadd.f32 %v4303, %v4562
      %v4564 = vpop.f32.mrb[0].mxu0
      %4565 = vmatprep.mubr.f32.mxu0 0.0
      %4566 = vmatmul.mubr.f32.gmra.mrb[0].mxu0 %v4364
      %v4567 = vpop.f32.mrb[0].mxu0
      %v4568 = vadd.f32 %v4303, %v4567
      %v4569 = vpop.f32.mrb[0].mxu0
      %4570 = vmatprep.mubr.f32.mxu0 0.0
      %4571 = vmatmul.mubr.f32.gmra.mrb[0].mxu0 %v4367
      %v4572 = vpop.f32.mrb[0].mxu0
      %v4573 = vadd.f32 %v4303, %v4572
      %v4574 = vpop.f32.mrb[0].mxu0
      %4575 = vmatprep.mubr.f32.mxu0 0.0
      %4576 = vmatmul.mubr.f32.gmra.mrb[0].mxu0 %v4370
      %v4577 = vpop.f32.mrb[0].mxu0
      %v4578 = vadd.f32 %v4303, %v4577
      %v4579 = vpop.f32.mrb[0].mxu0
      %4580 = vmatprep.mubr.f32.mxu0 0.0
      %4581 = vmatmul.mubr.f32.gmra.mrb[0].mxu0 %v4373
      %v4582 = vpop.f32.mrb[0].mxu0
      %v4583 = vadd.f32 %v4303, %v4582
      %v4584 = vpop.f32.mrb[0].mxu0
      %4585 = vmatprep.mubr.f32.mxu0 0.0
      %4586 = vmatmul.mubr.f32.gmra.mrb[0].mxu0 %v4376
      %v4587 = vpop.f32.mrb[0].mxu0
      %v4588 = vadd.f32 %v4303, %v4587
      %v4589 = vpop.f32.mrb[0].mxu0
      %4590 = vmatprep.mubr.f32.mxu0 0.0
      %4591 = vmatmul.mubr.f32.gmra.mrb[0].mxu0 %v4379
      %v4592 = vpop.f32.mrb[0].mxu0
      %v4593 = vadd.f32 %v4303, %v4592
      %v4594 = vpop.f32.mrb[0].mxu0
      %4595 = vmatprep.mubr.f32.mxu0 0.0
      %4596 = vmatmul.mubr.f32.gmra.mrb[0].mxu0 %v4382
      %v4597 = vpop.f32.mrb[0].mxu0
      %v4598 = vadd.f32 %v4303, %v4597
      %v4599 = vpop.f32.mrb[0].mxu0
      %4600 = vmatprep.mubr.f32.mxu0 0.0
      %4601 = vmatmul.mubr.f32.gmra.mrb[0].mxu0 %v4385
      %v4602 = vpop.f32.mrb[0].mxu0
      %v4603 = vadd.f32 %v4303, %v4602
      %v4604 = vpop.f32.mrb[0].mxu0
      %4605 = vmatprep.mubr.f32.mxu0 0.0
      %4606 = vmatmul.mubr.f32.gmra.mrb[0].mxu0 %v4388
      %v4607 = vpop.f32.mrb[0].mxu0
      %v4608 = vadd.f32 %v4303, %v4607
      %v4609 = vpop.f32.mrb[0].mxu0
      %4610 = vmatprep.mubr.f32.mxu0 0.0
      %4611 = vmatmul.mubr.f32.gmra.mrb[0].mxu0 %v4391
      %v4612 = vpop.f32.mrb[0].mxu0
      %v4613 = vadd.f32 %v4303, %v4612
      %v4614 = vpop.f32.mrb[0].mxu0
      %4615 = vmatprep.mubr.f32.mxu0 0.0
      %4616 = vmatmul.mubr.f32.gmra.mrb[0].mxu0 %v4394
      %v4617 = vpop.f32.mrb[0].mxu0
      %v4618 = vadd.f32 %v4303, %v4617
      %v4619 = vpop.f32.mrb[0].mxu0
      %4620 = vmatprep.mubr.f32.mxu0 0.0
      %4621 = vmatmul.mubr.f32.gmra.mrb[0].mxu0 %v4397
      %v4622 = vpop.f32.mrb[0].mxu0
      %v4623 = vadd.f32 %v4303, %v4622
      %v4624 = vpop.f32.mrb[0].mxu0
      %4625 = vmatprep.mubr.f32.mxu0 0.0
      %4626 = vmatmul.mubr.f32.gmra.mrb[0].mxu0 %v4400
      %v4627 = vpop.f32.mrb[0].mxu0
      %v4628 = vadd.f32 %v4303, %v4627
      %v4629 = vpop.f32.mrb[0].mxu0
      %4630 = vdwg.mxu0
      %vm4631 = vcmp.ge.f32.partialorder %v4473, 0.0
      %vm4632 = vcmp.ge.f32.partialorder %v4478, 0.0
      %vm4633 = vcmp.ge.f32.partialorder %v4483, 0.0
      %vm4634 = vcmp.ge.f32.partialorder %v4488, 0.0
      %vm4635 = vcmp.ge.f32.partialorder %v4493, 0.0
      %vm4636 = vcmp.ge.f32.partialorder %v4498, 0.0
      %vm4637 = vcmp.ge.f32.partialorder %v4503, 0.0
      %vm4638 = vcmp.ge.f32.partialorder %v4508, 0.0
      %vm4639 = vcmp.ge.f32.partialorder %v4513, 0.0
      %vm4640 = vcmp.ge.f32.partialorder %v4518, 0.0
      %vm4641 = vcmp.ge.f32.partialorder %v4523, 0.0
      %vm4642 = vcmp.ge.f32.partialorder %v4528, 0.0
      %vm4643 = vcmp.ge.f32.partialorder %v4533, 0.0
      %vm4644 = vcmp.ge.f32.partialorder %v4538, 0.0
      %vm4645 = vcmp.ge.f32.partialorder %v4543, 0.0
      %vm4646 = vcmp.ge.f32.partialorder %v4548, 0.0
      %vm4647 = vcmp.ge.f32.partialorder %v4553, 0.0
      %vm4648 = vcmp.ge.f32.partialorder %v4558, 0.0
      %vm4649 = vcmp.ge.f32.partialorder %v4563, 0.0
      %vm4650 = vcmp.ge.f32.partialorder %v4568, 0.0
      %vm4651 = vcmp.ge.f32.partialorder %v4573, 0.0
      %vm4652 = vcmp.ge.f32.partialorder %v4578, 0.0
      %vm4653 = vcmp.ge.f32.partialorder %v4583, 0.0
      %vm4654 = vcmp.ge.f32.partialorder %v4588, 0.0
      %vm4655 = vcmp.ge.f32.partialorder %v4593, 0.0
      %vm4656 = vcmp.ge.f32.partialorder %v4598, 0.0
      %vm4657 = vcmp.ge.f32.partialorder %v4603, 0.0
      %vm4658 = vcmp.ge.f32.partialorder %v4608, 0.0
      %vm4659 = vcmp.ge.f32.partialorder %v4613, 0.0
      %vm4660 = vcmp.ge.f32.partialorder %v4618, 0.0
      %vm4661 = vcmp.ge.f32.partialorder %v4623, 0.0
      %vm4662 = vcmp.ge.f32.partialorder %v4628, 0.0
      %v4663 = vmul.f32 %v4473, 0.125
      %v4664 = vmul.f32 %v4478, 0.125
      %v4665 = vmul.f32 %v4483, 0.125
      %v4666 = vmul.f32 %v4488, 0.125
      %v4667 = vmul.f32 %v4493, 0.125
      %v4668 = vmul.f32 %v4498, 0.125
      %v4669 = vmul.f32 %v4503, 0.125
      %v4670 = vmul.f32 %v4508, 0.125
      %v4671 = vmul.f32 %v4513, 0.125
      %v4672 = vmul.f32 %v4518, 0.125
      %v4673 = vmul.f32 %v4523, 0.125
      %v4674 = vmul.f32 %v4528, 0.125
      %v4675 = vmul.f32 %v4533, 0.125
      %v4676 = vmul.f32 %v4538, 0.125
      %v4677 = vmul.f32 %v4543, 0.125
      %v4678 = vmul.f32 %v4548, 0.125
      %v4679 = vmul.f32 %v4553, 0.125
      %v4680 = vmul.f32 %v4558, 0.125
      %v4681 = vmul.f32 %v4563, 0.125
      %v4682 = vmul.f32 %v4568, 0.125
      %v4683 = vmul.f32 %v4573, 0.125
      %v4684 = vmul.f32 %v4578, 0.125
      %v4685 = vmul.f32 %v4583, 0.125
      %v4686 = vmul.f32 %v4588, 0.125
      %v4687 = vmul.f32 %v4593, 0.125
      %v4688 = vmul.f32 %v4598, 0.125
      %v4689 = vmul.f32 %v4603, 0.125
      %v4690 = vmul.f32 %v4608, 0.125
      %v4691 = vmul.f32 %v4613, 0.125
      %v4692 = vmul.f32 %v4618, 0.125
      %v4693 = vmul.f32 %v4623, 0.125
      %v4694 = vmul.f32 %v4628, 0.125
      %v4695 = vsel %vm4631, %v4473, %v4663
      %v4696 = vsel %vm4632, %v4478, %v4664
      %v4697 = vsel %vm4633, %v4483, %v4665
      %v4698 = vsel %vm4634, %v4488, %v4666
      %v4699 = vsel %vm4635, %v4493, %v4667
      %v4700 = vsel %vm4636, %v4498, %v4668
      %v4701 = vsel %vm4637, %v4503, %v4669
      %v4702 = vsel %vm4638, %v4508, %v4670
      %v4703 = vsel %vm4639, %v4513, %v4671
      %v4704 = vsel %vm4640, %v4518, %v4672
      %v4705 = vsel %vm4641, %v4523, %v4673
      %v4706 = vsel %vm4642, %v4528, %v4674
      %v4707 = vsel %vm4643, %v4533, %v4675
      %v4708 = vsel %vm4644, %v4538, %v4676
      %v4709 = vsel %vm4645, %v4543, %v4677
      %v4710 = vsel %vm4646, %v4548, %v4678
      %v4711 = vsel %vm4647, %v4553, %v4679
      %v4712 = vsel %vm4648, %v4558, %v4680
      %v4713 = vsel %vm4649, %v4563, %v4681
      %v4714 = vsel %vm4650, %v4568, %v4682
      %v4715 = vsel %vm4651, %v4573, %v4683
      %v4716 = vsel %vm4652, %v4578, %v4684
      %v4717 = vsel %vm4653, %v4583, %v4685
      %v4718 = vsel %vm4654, %v4588, %v4686
      %v4719 = vsel %vm4655, %v4593, %v4687
      %v4720 = vsel %vm4656, %v4598, %v4688
      %v4721 = vsel %vm4657, %v4603, %v4689
      %v4722 = vsel %vm4658, %v4608, %v4690
      %v4723 = vsel %vm4659, %v4613, %v4691
      %v4724 = vsel %vm4660, %v4618, %v4692
      %v4725 = vsel %vm4661, %v4623, %v4693
      %v4726 = vsel %vm4662, %v4628, %v4694
      %4727 = vxpose.xlu0.b32.start [1/16] %v4695, 128
      %4728 = vxpose.xlu0.b32.cont [2/16] %v4696, 128
      %4729 = vxpose.xlu0.b32.cont [3/16] %v4697, 128
      %4730 = vxpose.xlu0.b32.cont [4/16] %v4698, 128
      %4731 = vxpose.xlu0.b32.cont [5/16] %v4699, 128
      %4732 = vxpose.xlu0.b32.cont [6/16] %v4700, 128
      %4733 = vxpose.xlu0.b32.cont [7/16] %v4701, 128
      %4734 = vxpose.xlu0.b32.cont [8/16] %v4702, 128
      %4735 = vxpose.xlu0.b32.cont [9/16] %v4703, 128
      %4736 = vxpose.xlu0.b32.cont [10/16] %v4704, 128
      %4737 = vxpose.xlu0.b32.cont [11/16] %v4705, 128
      %4738 = vxpose.xlu0.b32.cont [12/16] %v4706, 128
      %4739 = vxpose.xlu0.b32.cont [13/16] %v4707, 128
      %4740 = vxpose.xlu0.b32.cont [14/16] %v4708, 128
      %4741 = vxpose.xlu0.b32.cont [15/16] %v4709, 128
      %4742 = vxpose.xlu0.b32.end [16/16] %v4710, 128
      %v4743 = vpop.trf.xlu0
      %v4744 = vpop.trf.xlu0
      %v4745 = vpop.trf.xlu0
      %v4746 = vpop.trf.xlu0
      %v4747 = vpop.trf.xlu0
      %v4748 = vpop.trf.xlu0
      %v4749 = vpop.trf.xlu0
      %v4750 = vpop.trf.xlu0
      %v4751 = vpop.trf.xlu0
      %v4752 = vpop.trf.xlu0
      %v4753 = vpop.trf.xlu0
      %v4754 = vpop.trf.xlu0
      %v4755 = vpop.trf.xlu0
      %v4756 = vpop.trf.xlu0
      %v4757 = vpop.trf.xlu0
      %v4758 = vpop.trf.xlu0
      %4759 = vxpose.xlu0.b32.start [1/16] %v4711, 128
      %4760 = vxpose.xlu0.b32.cont [2/16] %v4712, 128
      %4761 = vxpose.xlu0.b32.cont [3/16] %v4713, 128
      %4762 = vxpose.xlu0.b32.cont [4/16] %v4714, 128
      %4763 = vxpose.xlu0.b32.cont [5/16] %v4715, 128
      %4764 = vxpose.xlu0.b32.cont [6/16] %v4716, 128
      %4765 = vxpose.xlu0.b32.cont [7/16] %v4717, 128
      %4766 = vxpose.xlu0.b32.cont [8/16] %v4718, 128
      %4767 = vxpose.xlu0.b32.cont [9/16] %v4719, 128
      %4768 = vxpose.xlu0.b32.cont [10/16] %v4720, 128
      %4769 = vxpose.xlu0.b32.cont [11/16] %v4721, 128
      %4770 = vxpose.xlu0.b32.cont [12/16] %v4722, 128
      %4771 = vxpose.xlu0.b32.cont [13/16] %v4723, 128
      %4772 = vxpose.xlu0.b32.cont [14/16] %v4724, 128
      %4773 = vxpose.xlu0.b32.cont [15/16] %v4725, 128
      %4774 = vxpose.xlu0.b32.end [16/16] %v4726, 128
      %v4775 = vpop.trf.xlu0
      %v4776 = vpop.trf.xlu0
      %v4777 = vpop.trf.xlu0
      %v4778 = vpop.trf.xlu0
      %v4779 = vpop.trf.xlu0
      %v4780 = vpop.trf.xlu0
      %v4781 = vpop.trf.xlu0
      %v4782 = vpop.trf.xlu0
      %v4783 = vpop.trf.xlu0
      %v4784 = vpop.trf.xlu0
      %v4785 = vpop.trf.xlu0
      %v4786 = vpop.trf.xlu0
      %v4787 = vpop.trf.xlu0
      %v4788 = vpop.trf.xlu0
      %v4789 = vpop.trf.xlu0
      %v4790 = vpop.trf.xlu0
      %v4793 = vcombine.low %v4743, %v4775
      %4795 = vst [vmem:[%s271] sm:$0xff] %v4793
      %p4796 = scmp.lt.s32.totalorder %s17, 1
      %s4797 = scalar_select %p4796, %s17, 1
      %s4798 = smul.addr %s4797, 2
      %s4799 = smul.addr %s4798, 4
      %s4800 = scalar_lea.vmem %s6, %s4799
      // Predicated region
      $region45: #{unet_up_origin_forward.3} parent=43 // pred_check
        %p4801 = pneg %p171
      $region46: #{unet_up_origin_forward.3} parent=43 // pred_check_branch
        %4803 = sbr.rel (%p4801) target = $region48
      $region47: #{unet_up_origin_forward.3} parent=43 // pred_region
        _
      $region48: #{unet_up_origin_forward.3} parent=43 // pred_fallthru
        _
    $region44: #{unet_up_origin_forward.3} parent=5 // pred_fallthru
      _
    %p4804 = scmp.le.s32.totalorder 2, %s12
    // Predicated region
    $region49: #{unet_up_origin_forward.3} parent=5 // pred_check
      %p4805 = pneg %p4804
    $region50: #{unet_up_origin_forward.3} parent=5 // pred_check_branch
      %4807 = sbr.rel (%p4805) target = $region52
    $region51: #{unet_up_origin_forward.3} parent=5 // pred_region
      %s4808 = ssub.s32 %s12, 2
      // Predicated region
      $region53: #{unet_up_origin_forward.3} parent=51 // pred_check
        %p4809 = pneg %p177
      $region54: #{unet_up_origin_forward.3} parent=51 // pred_check_branch
        %4811 = sbr.rel (%p4809) target = $region56
      $region55: #{unet_up_origin_forward.3} parent=51 // pred_region
        %p4812 = scmp.lt.s32.totalorder %s18, 1
        %s4813 = scalar_select %p4812, %s18, 1
        %s4814 = smul.addr %s4813, 2
        %s4815 = smul.addr %s4814, 4
        %s4816 = scalar_lea.vmem %s6, %s4815
      $region56: #{unet_up_origin_forward.3} parent=51 // pred_fallthru
        _
    $region52: #{unet_up_origin_forward.3} parent=5 // pred_fallthru
      _
  $region6: #{unet_up_origin_forward.3} parent=0 // loop_footer
    %s16 = sadd.s32 1, %s12
  $region7: #{unet_up_origin_forward.3} parent=0 // loop_footer_branch
    %11 = sbr.rel target = $region3
  $region8: #{unet_up_origin_forward.3} parent=0 // loop_exit
    _

</llo_original>
